<compile_context>
chip_gen: v7x
topology: tpu7x:2x2x1
jax: 0.10.0
libtpu: 0.0.40
codegen_flags: <defaults>
</compile_context>

<pallas_src>
import functools
import math

import jax
import jax.numpy as jnp
from jax import lax
from jax.experimental import pallas as pl
from jax.experimental.pallas import tpu as pltpu


def _mix32(x):
    """splitmix32-style finalizer: avalanche a uint32 counter into random bits."""
    x = x ^ (x >> 16)
    x = x * jnp.uint32(0x7FEB352D)
    x = x ^ (x >> 15)
    x = x * jnp.uint32(0x846CA68B)
    x = x ^ (x >> 16)
    return x


def _sdpa_dropout_kernel(seed_ref, q_ref, k_ref, v_ref, o_ref, *, dropout_p):
    # q_ref/k_ref: (HB, S, D)   v_ref/o_ref: (HB, S, Dv)
    q = q_ref[...]
    k = k_ref[...]
    v = v_ref[...]
    hb, s_len, d = q.shape

    # Fold the sqrt(D) *multiplication* (as in the PyTorch module) into q, then
    # cast MXU operands to bf16 (f32 accumulation).
    scale = jnp.float32(math.sqrt(d))
    q_b = (q * scale).astype(jnp.bfloat16)
    k_b = k.astype(jnp.bfloat16)

    # scores[h, i, j] = sum_d q[h, i, d] * k[h, j, d]   (no explicit transpose)
    scores = jnp.einsum("hsd,htd->hst", q_b, k_b,
                        preferred_element_type=jnp.float32)

    # Numerically stable softmax pieces (normalization applied later, fused with
    # the dropout rescale).
    m = jnp.max(scores, axis=-1, keepdims=True)
    e = jnp.exp(scores - m)
    denom = jnp.sum(e, axis=-1, keepdims=True)

    # ---- Dropout: keep prob (1-p), scaled by 1/(1-p) -----------------------
    # Counter-based stateless hash PRNG (portable; works on TPU and in
    # interpret mode).  The keep decision is a single compare on raw uint32
    # bits: P(bits >= p * 2^32) == 1 - p.
    # TODO(synk): random stream cannot bit-match torch.nn.functional.dropout.
    keep_prob = 1.0 - float(dropout_p)
    head_local = lax.broadcasted_iota(jnp.int32, scores.shape, 0)
    row = lax.broadcasted_iota(jnp.int32, scores.shape, 1)
    col = lax.broadcasted_iota(jnp.int32, scores.shape, 2)
    head_global = pl.program_id(0) * hb + head_local
    ctr = ((head_global * s_len + row) * s_len + col).astype(jnp.uint32)
    seed_u = seed_ref[0].astype(jnp.uint32)
    mixed_seed = _mix32(seed_u + jnp.uint32(0x9E3779B9))
    bits = _mix32(ctr ^ mixed_seed)
    thresh = jnp.uint32(min(int(float(dropout_p) * (1 << 32)), (1 << 32) - 1))
    keep = bits >= thresh

    # One (HB,S,1) reciprocal carries both the softmax normalization and the
    # dropout rescale -> only one S*S-sized multiply plus one select.
    inv = 1.0 / (denom * jnp.float32(keep_prob))
    attn = (jnp.where(keep, e, 0.0) * inv).astype(jnp.bfloat16)

    out = jnp.einsum("hst,htv->hsv", attn, v.astype(jnp.bfloat16),
                     preferred_element_type=jnp.float32)
    o_ref[...] = out.astype(o_ref.dtype)


def model_forward(query, key, value, *, dropout_p=0.9, seed=0):
    B, H, S, D = query.shape
    Bv, Hv, Sv, Dv = value.shape
    assert key.shape == (B, H, S, D)
    assert (Bv, Hv, Sv) == (B, H, S)

    BH = B * H
    q = query.reshape(BH, S, D)
    k = key.reshape(BH, S, D)
    v = value.reshape(BH, S, Dv)

    # Heads per grid step: amortize per-step overhead / batch the MXU work while
    # keeping (double-buffered IO blocks + SxS intermediates) well inside the
    # default scoped VMEM budget.
    vmem_budget = 12 * 1024 * 1024
    per_head_bytes = 16 * S * (D + Dv) + 24 * S * S
    hb = 1
    for cand in range(1, min(BH, 8) + 1):
        if BH % cand == 0 and cand * per_head_bytes <= vmem_budget:
            hb = cand
    grid = (BH // hb,)

    seed_arr = jnp.array([seed], dtype=jnp.int32)
    kernel = functools.partial(_sdpa_dropout_kernel, dropout_p=float(dropout_p))

    out = pl.pallas_call(
        kernel,
        out_shape=jax.ShapeDtypeStruct((BH, S, Dv), jnp.float32),
        grid_spec=pltpu.PrefetchScalarGridSpec(
            num_scalar_prefetch=1,
            grid=grid,
            in_specs=[
                pl.BlockSpec((hb, S, D), lambda g, seed: (g, 0, 0)),
                pl.BlockSpec((hb, S, D), lambda g, seed: (g, 0, 0)),
                pl.BlockSpec((hb, S, Dv), lambda g, seed: (g, 0, 0)),
            ],
            out_specs=pl.BlockSpec((hb, S, Dv), lambda g, seed: (g, 0, 0)),
        ),
        compiler_params=pltpu.CompilerParams(
            dimension_semantics=("parallel",),
        ),
    )(seed_arr, q, k, v)

    return out.reshape(B, H, S, Dv)


if __name__ == "__main__":
    # Small, self-consistent shapes (the original script's `value` shape was
    # incompatible with its own forward; Dv is chosen lane-dense = 128).
    B, H, S, D, Dv = 2, 8, 128, 128, 128
    k0 = jax.random.PRNGKey(0)
    kq, kk, kv = jax.random.split(k0, 3)
    query = jax.random.normal(kq, (B, H, S, D), dtype=jnp.float32)
    key = jax.random.normal(kk, (B, H, S, D), dtype=jnp.float32)
    value = jax.random.normal(kv, (B, H, S, Dv), dtype=jnp.float32)

    # Sanity check with dropout disabled against a plain-JAX reference that
    # mirrors the kernel's bf16 MXU casts.
    out0 = jax.block_until_ready(
        model_forward(query, key, value, dropout_p=0.0, seed=0))
    scale = math.sqrt(D)
    qb = (query * scale).astype(jnp.bfloat16)
    kb = key.astype(jnp.bfloat16)
    s_ref = jnp.einsum("bhsd,bhtd->bhst", qb, kb,
                       preferred_element_type=jnp.float32)
    p_ref = jax.nn.softmax(s_ref, axis=-1)
    ref0 = jnp.einsum("bhst,bhtv->bhsv", p_ref.astype(jnp.bfloat16),
                      value.astype(jnp.bfloat16),
                      preferred_element_type=jnp.float32)
    assert out0.shape == (B, H, S, Dv)
    assert bool(jnp.allclose(out0, ref0, rtol=5e-2, atol=5e-2)), \
        float(jnp.max(jnp.abs(out0 - ref0)))

    # Full forward with the module's dropout_p = 0.9 (training semantics).
    out = jax.block_until_ready(
        model_forward(query, key, value, dropout_p=0.9, seed=123))
    assert out.shape == (B, H, S, Dv)
    assert bool(jnp.isfinite(out).all())
    print("KERNEL_OK")
</pallas_src>

<mosaic_0001>
module attributes {stable_mosaic.version = 11 : i64} {
  func.func @_sdpa_dropout_kernel(%arg0: i32, %arg1: memref<1xi32, #tpu.memory_space<smem>>, %arg2: memref<8x128x128xf32, #tpu.memory_space<vmem>>, %arg3: memref<8x128x128xf32, #tpu.memory_space<vmem>>, %arg4: memref<8x128x128xf32, #tpu.memory_space<vmem>>, %arg5: memref<8x128x128xf32, #tpu.memory_space<vmem>>) attributes {dimension_semantics = [#tpu.dimension_semantics<parallel>], iteration_bounds = array<i64: 2>, scalar_prefetch = 1 : i64, scratch_operands = 0 : i64, tpu.core_type = #tpu.core_type<tc>, window_params = [{transform_indices = @transform_0, window_bounds = array<i64: 8, 128, 128>}, {transform_indices = @transform_1, window_bounds = array<i64: 8, 128, 128>}, {transform_indices = @transform_2, window_bounds = array<i64: 8, 128, 128>}, {transform_indices = @transform_3, window_bounds = array<i64: 8, 128, 128>}]} {
    %c0 = arith.constant 0 : index
    %c0_0 = arith.constant 0 : index
    %c0_1 = arith.constant 0 : index
    %0 = vector.load %arg2[%c0, %c0_0, %c0_1] : memref<8x128x128xf32, #tpu.memory_space<vmem>>, vector<8x128x128xf32>
    %c0_2 = arith.constant 0 : index
    %c0_3 = arith.constant 0 : index
    %c0_4 = arith.constant 0 : index
    %1 = vector.load %arg3[%c0_2, %c0_3, %c0_4] : memref<8x128x128xf32, #tpu.memory_space<vmem>>, vector<8x128x128xf32>
    %c0_5 = arith.constant 0 : index
    %c0_6 = arith.constant 0 : index
    %c0_7 = arith.constant 0 : index
    %2 = vector.load %arg4[%c0_5, %c0_6, %c0_7] : memref<8x128x128xf32, #tpu.memory_space<vmem>>, vector<8x128x128xf32>
    %cst = arith.constant 11.3137083 : f32
    %3 = vector.broadcast %cst : f32 to vector<8x128x128xf32>
    %4 = arith.mulf %0, %3 : vector<8x128x128xf32>
    %5 = arith.truncf %4 : vector<8x128x128xf32> to vector<8x128x128xbf16>
    %6 = arith.truncf %1 : vector<8x128x128xf32> to vector<8x128x128xbf16>
    "tpu.trace_start"() <{level = 10 : i32, message = "hsd,htd->hst"}> : () -> ()
    %cst_8 = arith.constant dense<0.000000e+00> : vector<8x128x128xf32>
    %7 = tpu.matmul %5, %6, %cst_8 {dimension_numbers = #tpu.dot_dimension_numbers<[2], [2], [1], [1], [0, 0, 0, 1, 1, 1], [0], [0]>} : vector<8x128x128xbf16>, vector<8x128x128xbf16>, vector<8x128x128xf32> -> vector<8x128x128xf32>
    "tpu.trace_stop"() : () -> ()
    %cst_9 = arith.constant dense<0xFF800000> : vector<8x128xf32>
    %8 = vector.multi_reduction <maximumf>, %7, %cst_9 [2] : vector<8x128x128xf32> to vector<8x128xf32>
    %9 = vector.shape_cast %8 : vector<8x128xf32> to vector<8x128x1xf32>
    %10 = vector.broadcast %9 : vector<8x128x1xf32> to vector<8x128x128xf32>
    %11 = arith.subf %7, %10 : vector<8x128x128xf32>
    %12 = math.exp %11 : vector<8x128x128xf32>
    %cst_10 = arith.constant dense<0.000000e+00> : vector<8x128xf32>
    %13 = vector.multi_reduction <add>, %12, %cst_10 [2] : vector<8x128x128xf32> to vector<8x128xf32>
    %14 = vector.shape_cast %13 : vector<8x128xf32> to vector<8x128x1xf32>
    %15 = tpu.iota {dimensions = array<i32: 0>} : vector<8x128x128xi32>
    %16 = tpu.iota {dimensions = array<i32: 1>} : vector<8x128x128xi32>
    %17 = tpu.iota {dimensions = array<i32: 2>} : vector<8x128x128xi32>
    %c8_i32 = arith.constant 8 : i32
    %18 = arith.muli %arg0, %c8_i32 : i32
    %19 = vector.broadcast %18 : i32 to vector<8x128x128xi32>
    %20 = arith.addi %19, %15 : vector<8x128x128xi32>
    %c128_i32 = arith.constant 128 : i32
    %21 = vector.broadcast %c128_i32 : i32 to vector<8x128x128xi32>
    %22 = arith.muli %20, %21 : vector<8x128x128xi32>
    %23 = arith.addi %22, %16 : vector<8x128x128xi32>
    %c128_i32_11 = arith.constant 128 : i32
    %24 = vector.broadcast %c128_i32_11 : i32 to vector<8x128x128xi32>
    %25 = arith.muli %23, %24 : vector<8x128x128xi32>
    %26 = arith.addi %25, %17 : vector<8x128x128xi32>
    %c0_12 = arith.constant 0 : index
    %27 = memref.load %arg1[%c0_12] : memref<1xi32, #tpu.memory_space<smem>>
    %c-1640531527_i32 = arith.constant -1640531527 : i32
    %28 = arith.addi %27, %c-1640531527_i32 : i32
    %c16_i32 = arith.constant 16 : i32
    %29 = arith.shrui %28, %c16_i32 : i32
    %30 = arith.xori %28, %29 : i32
    %c2146121005_i32 = arith.constant 2146121005 : i32
    %31 = arith.muli %30, %c2146121005_i32 : i32
    %c15_i32 = arith.constant 15 : i32
    %32 = arith.shrui %31, %c15_i32 : i32
    %33 = arith.xori %31, %32 : i32
    %c-2073254261_i32 = arith.constant -2073254261 : i32
    %34 = arith.muli %33, %c-2073254261_i32 : i32
    %c16_i32_13 = arith.constant 16 : i32
    %35 = arith.shrui %34, %c16_i32_13 : i32
    %36 = arith.xori %34, %35 : i32
    %37 = vector.broadcast %36 : i32 to vector<8x128x128xi32>
    %38 = arith.xori %26, %37 : vector<8x128x128xi32>
    %c16_i32_14 = arith.constant 16 : i32
    %39 = vector.broadcast %c16_i32_14 : i32 to vector<8x128x128xi32>
    %40 = arith.shrui %38, %39 : vector<8x128x128xi32>
    %41 = arith.xori %38, %40 : vector<8x128x128xi32>
    %c2146121005_i32_15 = arith.constant 2146121005 : i32
    %42 = vector.broadcast %c2146121005_i32_15 : i32 to vector<8x128x128xi32>
    %43 = arith.muli %41, %42 : vector<8x128x128xi32>
    %c15_i32_16 = arith.constant 15 : i32
    %44 = vector.broadcast %c15_i32_16 : i32 to vector<8x128x128xi32>
    %45 = arith.shrui %43, %44 : vector<8x128x128xi32>
    %46 = arith.xori %43, %45 : vector<8x128x128xi32>
    %c-2073254261_i32_17 = arith.constant -2073254261 : i32
    %47 = vector.broadcast %c-2073254261_i32_17 : i32 to vector<8x128x128xi32>
    %48 = arith.muli %46, %47 : vector<8x128x128xi32>
    %c16_i32_18 = arith.constant 16 : i32
    %49 = vector.broadcast %c16_i32_18 : i32 to vector<8x128x128xi32>
    %50 = arith.shrui %48, %49 : vector<8x128x128xi32>
    %51 = arith.xori %48, %50 : vector<8x128x128xi32>
    %c0_i32 = arith.constant 0 : i32
    %52 = vector.broadcast %c0_i32 : i32 to vector<8x128x128xi32>
    %53 = arith.cmpi uge, %51, %52 : vector<8x128x128xi32>
    %cst_19 = arith.constant 1.000000e+00 : f32
    %54 = vector.broadcast %cst_19 : f32 to vector<8x128x1xf32>
    %55 = arith.mulf %14, %54 : vector<8x128x1xf32>
    %cst_20 = arith.constant 1.000000e+00 : f32
    %56 = vector.broadcast %cst_20 : f32 to vector<8x128x1xf32>
    %57 = arith.divf %56, %55 : vector<8x128x1xf32>
    %cst_21 = arith.constant 0.000000e+00 : f32
    %58 = vector.broadcast %cst_21 : f32 to vector<8x128x128xf32>
    %59 = arith.select %53, %12, %58 : vector<8x128x128xi1>, vector<8x128x128xf32>
    %60 = vector.broadcast %57 : vector<8x128x1xf32> to vector<8x128x128xf32>
    %61 = arith.mulf %59, %60 : vector<8x128x128xf32>
    %62 = arith.truncf %61 : vector<8x128x128xf32> to vector<8x128x128xbf16>
    %63 = arith.truncf %2 : vector<8x128x128xf32> to vector<8x128x128xbf16>
    "tpu.trace_start"() <{level = 10 : i32, message = "hst,htv->hsv"}> : () -> ()
    %cst_22 = arith.constant dense<0.000000e+00> : vector<8x128x128xf32>
    %64 = tpu.matmul %62, %63, %cst_22 {dimension_numbers = #tpu.dot_dimension_numbers<[2], [1], [1], [2], [0, 0, 0, 1, 1, 2], [0], [0]>} : vector<8x128x128xbf16>, vector<8x128x128xbf16>, vector<8x128x128xf32> -> vector<8x128x128xf32>
    "tpu.trace_stop"() : () -> ()
    %c0_23 = arith.constant 0 : index
    %c0_24 = arith.constant 0 : index
    %c0_25 = arith.constant 0 : index
    %65 = vector.load %arg5[%c0_23, %c0_24, %c0_25] : memref<8x128x128xf32, #tpu.memory_space<vmem>>, vector<8x128x128xf32>
    tpu.vector_store %arg5[%c0_23, %c0_24, %c0_25], %64 {strides = array<i32>} : memref<8x128x128xf32, #tpu.memory_space<vmem>>, vector<8x128x128xf32>,
    return
  }
  func.func @transform_0(%arg0: i32, %arg1: memref<1xi32, #tpu.memory_space<smem>>) -> (i32, i32, i32) {
    %c0_i32 = arith.constant 0 : i32
    %c0_i32_0 = arith.constant 0 : i32
    %c0_i32_1 = arith.constant 0 : i32
    return %arg0, %c0_i32, %c0_i32_0 : i32, i32, i32
  }
  func.func @transform_1(%arg0: i32, %arg1: memref<1xi32, #tpu.memory_space<smem>>) -> (i32, i32, i32) {
    %c0_i32 = arith.constant 0 : i32
    %c0_i32_0 = arith.constant 0 : i32
    %c0_i32_1 = arith.constant 0 : i32
    return %arg0, %c0_i32, %c0_i32_0 : i32, i32, i32
  }
  func.func @transform_2(%arg0: i32, %arg1: memref<1xi32, #tpu.memory_space<smem>>) -> (i32, i32, i32) {
    %c0_i32 = arith.constant 0 : i32
    %c0_i32_0 = arith.constant 0 : i32
    %c0_i32_1 = arith.constant 0 : i32
    return %arg0, %c0_i32, %c0_i32_0 : i32, i32, i32
  }
  func.func @transform_3(%arg0: i32, %arg1: memref<1xi32, #tpu.memory_space<smem>>) -> (i32, i32, i32) {
    %c0_i32 = arith.constant 0 : i32
    %c0_i32_0 = arith.constant 0 : i32
    %c0_i32_1 = arith.constant 0 : i32
    return %arg0, %c0_i32, %c0_i32_0 : i32, i32, i32
  }
}

</mosaic_0001>

<llo_original>
// kernel: tpu_custom_call.1
$region0: #{tpu_custom_call.1}
  #allocation0 [shape = 'u32[]', space=smem, size = 0x4, offset = 0x4, fixed_abs, tag = 'smem constant byte address 0x4 - core index']
  #allocation1 [shape = 'u32[144,128]{1,0:T(1,128)}', space=vmem, size = 0x12000, scoped, tag = 'internal scratch']
  #allocation2 [shape = 's32[1]{0}', space=sflag, size = 0x4, scoped, tag = 'scoped memory for tpu_custom_call.1']
  #allocation3 [shape = 's32[1]{0:T(128)S(6)}', space=smem, size = 0x200, scoped, tag = 'prefetched SMEM operand 0']
  %s0 = inlined_call_operand.<no memory space> [shape: s32[1], index: 0, kind: input, shape index: {}]
  %s1 = inlined_call_operand.hbm [shape: f32[16,128,128], index: 1, kind: input, shape index: {}]
  %s2 = inlined_call_operand.hbm [shape: f32[16,128,128], index: 2, kind: input, shape index: {}]
  %s3 = inlined_call_operand.hbm [shape: f32[16,128,128], index: 3, kind: input, shape index: {}]
  %s4 = inlined_call_operand.hbm [shape: f32[16,128,128], index: 4, kind: output, shape index: {}]
  %s5 = sld [smem:[#allocation0]]
  $region57: #{tpu_custom_call.1} parent=0
    _
  %s7 = ssub.s32 1, %s5
  %s8 = scalar_select 0, %s7, %s5
  %9 = sst [smem:[#allocation3]] %s0
  $region1: #{tpu_custom_call.1} parent=0
    #allocation4 [shape = 'u8[1048576]{0}', space=vmem, size = 0x100000, scoped, tag = 'input window, operand 1']
    #allocation5 [shape = 's32[2]{0}', space=sflag, size = 0x8, scoped, tag = 'scoped memory for tpu_custom_call.1']
    #allocation6 [shape = 's32[2]{0}', space=sflag, size = 0x8, scoped, tag = 'scoped memory for tpu_custom_call.1']
    #allocation7 [shape = 'u8[1048576]{0}', space=vmem, size = 0x100000, scoped, tag = 'input window, operand 2']
    #allocation8 [shape = 's32[2]{0}', space=sflag, size = 0x8, scoped, tag = 'scoped memory for tpu_custom_call.1']
    #allocation9 [shape = 'u8[1048576]{0}', space=vmem, size = 0x100000, scoped, tag = 'input window, operand 3']
    #allocation10 [shape = 'u8[1048576]{0}', space=vmem, size = 0x100000, scoped, tag = 'output window, operand 0']
    %10 = vsyncpa [#allocation5], 0
    %s11 = scalar_lea.sflag [#allocation5], 1
    %12 = vsyncpa %s11, 0
    %13 = vsyncpa [#allocation8], 0
    %s14 = scalar_lea.sflag [#allocation8], 1
    %15 = vsyncpa %s14, 0
    %16 = vsyncpa [#allocation6], 0
    %s17 = scalar_lea.sflag [#allocation6], 1
    %18 = vsyncpa %s17, 0
    loop: start=0, step=1, limit=4
    $region2: #{tpu_custom_call.1} parent=1 // loop_pre_header
      _
    $region3: #{tpu_custom_call.1} parent=1 // loop_header
      %s20 = sphi 0, %s24
      %p21 = scmp.ge.s32.totalorder %s20, 4
      %s30 = sphi 0, %s32
      %s33 = sphi 0, %s30
      %s34 = sphi 0, %s33
      %s50 = sphi 0, %s34
      %s56 = sphi 0, %s58
      %s59 = sphi 0, %s56
      %s60 = sphi 0, %s59
      %s76 = sphi 0, %s60
      %s82 = sphi 0, %s84
      %s85 = sphi 0, %s82
      %s86 = sphi 0, %s85
      %s102 = sphi 0, %s86
      %s108 = sphi 0, %s110
      %s111 = sphi 0, %s108
      %s112 = sphi 0, %s111
      %s128 = sphi 0, %s112
    $region4: #{tpu_custom_call.1} parent=1 // loop_header_branch
      %23 = sbr.rel (%p21) target = $region8
    $region5: #{tpu_custom_call.1} parent=1 // loop_body
      %s25 = ssub.s32 %s20, 1
      %s26 = ssub.s32 %s20, 2
      %s27 = sadd.s32 %s20, 1
      %s28 = ssub.s32 %s20, %s27
      %p29 = scmp.eq.s32.totalorder %s28, 0
      %s31 = sadd.s32 %s30, 1
      %s32 = scalar_select %p29, %s30, %s31
      %p35 = pneg %p29
      %p36 = scmp.eq.s32.totalorder %s20, 1
      %p37 = por %p35, %p36
      %p38 = scmp.ne.s32.totalorder %s30, %s33
      %p39 = scmp.eq.s32.totalorder %s20, 0
      %p40 = por %p38, %p39
      %p41 = scmp.ne.s32.totalorder %s30, %s33
      %p42 = scmp.eq.s32.totalorder %s25, 1
      %p43 = por %p41, %p42
      %p44 = scmp.ne.s32.totalorder %s33, %s34
      %p45 = scmp.eq.s32.totalorder %s25, 0
      %p46 = por %p44, %p45
      %p47 = scmp.ne.s32.totalorder %s33, %s34
      %p48 = scmp.eq.s32.totalorder %s26, 1
      %p49 = por %p47, %p48
      %p51 = scmp.ne.s32.totalorder %s34, %s50
      %p52 = scmp.eq.s32.totalorder %s26, 0
      %p53 = por %p51, %p52
      %s54 = ssub.s32 %s20, %s27
      %p55 = scmp.eq.s32.totalorder %s54, 0
      %s57 = sadd.s32 %s56, 1
      %s58 = scalar_select %p55, %s56, %s57
      %p61 = pneg %p55
      %p62 = scmp.eq.s32.totalorder %s20, 1
      %p63 = por %p61, %p62
      %p64 = scmp.ne.s32.totalorder %s56, %s59
      %p65 = scmp.eq.s32.totalorder %s20, 0
      %p66 = por %p64, %p65
      %p67 = scmp.ne.s32.totalorder %s56, %s59
      %p68 = scmp.eq.s32.totalorder %s25, 1
      %p69 = por %p67, %p68
      %p70 = scmp.ne.s32.totalorder %s59, %s60
      %p71 = scmp.eq.s32.totalorder %s25, 0
      %p72 = por %p70, %p71
      %p73 = scmp.ne.s32.totalorder %s59, %s60
      %p74 = scmp.eq.s32.totalorder %s26, 1
      %p75 = por %p73, %p74
      %p77 = scmp.ne.s32.totalorder %s60, %s76
      %p78 = scmp.eq.s32.totalorder %s26, 0
      %p79 = por %p77, %p78
      %s80 = ssub.s32 %s20, %s27
      %p81 = scmp.eq.s32.totalorder %s80, 0
      %s83 = sadd.s32 %s82, 1
      %s84 = scalar_select %p81, %s82, %s83
      %p87 = pneg %p81
      %p88 = scmp.eq.s32.totalorder %s20, 1
      %p89 = por %p87, %p88
      %p90 = scmp.ne.s32.totalorder %s82, %s85
      %p91 = scmp.eq.s32.totalorder %s20, 0
      %p92 = por %p90, %p91
      %p93 = scmp.ne.s32.totalorder %s82, %s85
      %p94 = scmp.eq.s32.totalorder %s25, 1
      %p95 = por %p93, %p94
      %p96 = scmp.ne.s32.totalorder %s85, %s86
      %p97 = scmp.eq.s32.totalorder %s25, 0
      %p98 = por %p96, %p97
      %p99 = scmp.ne.s32.totalorder %s85, %s86
      %p100 = scmp.eq.s32.totalorder %s26, 1
      %p101 = por %p99, %p100
      %p103 = scmp.ne.s32.totalorder %s86, %s102
      %p104 = scmp.eq.s32.totalorder %s26, 0
      %p105 = por %p103, %p104
      %s106 = ssub.s32 %s20, %s27
      %p107 = scmp.eq.s32.totalorder %s106, 0
      %s109 = sadd.s32 %s108, 1
      %s110 = scalar_select %p107, %s108, %s109
      %p113 = pneg %p107
      %p114 = scmp.eq.s32.totalorder %s20, 1
      %p115 = por %p113, %p114
      %p116 = scmp.ne.s32.totalorder %s108, %s111
      %p117 = scmp.eq.s32.totalorder %s20, 0
      %p118 = por %p116, %p117
      %p119 = scmp.ne.s32.totalorder %s108, %s111
      %p120 = scmp.eq.s32.totalorder %s25, 1
      %p121 = por %p119, %p120
      %p122 = scmp.ne.s32.totalorder %s111, %s112
      %p123 = scmp.eq.s32.totalorder %s25, 0
      %p124 = por %p122, %p123
      %p125 = scmp.ne.s32.totalorder %s111, %s112
      %p126 = scmp.eq.s32.totalorder %s26, 1
      %p127 = por %p125, %p126
      %p129 = scmp.ne.s32.totalorder %s112, %s128
      %p130 = scmp.eq.s32.totalorder %s26, 0
      %p131 = por %p129, %p130
      %p132 = scmp.le.s32.totalorder 1, %s20
      %p133 = scmp.lt.s32.totalorder %s20, 3
      %p134 = pnand %p132, %p133
      %p135 = pneg %p134
      // Predicated region
      $region9: #{tpu_custom_call.1} parent=5 // pred_check
        _
      $region10: #{tpu_custom_call.1} parent=5 // pred_check_branch
        %137 = sbr.rel (%p134) target = $region12
      $region11: #{tpu_custom_call.1} parent=5 // pred_region
        %s138 = ssub.s32 %s20, 1
      $region12: #{tpu_custom_call.1} parent=5 // pred_fallthru
        _
      %p139 = scmp.lt.s32.totalorder %s20, 2
      // Predicated region
      $region13: #{tpu_custom_call.1} parent=5 // pred_check
        %p140 = pneg %p139
      $region14: #{tpu_custom_call.1} parent=5 // pred_check_branch
        %142 = sbr.rel (%p140) target = $region16
      $region15: #{tpu_custom_call.1} parent=5 // pred_region
        // Predicated region
        $region17: #{tpu_custom_call.1} parent=15 // pred_check
          %p143 = pneg %p40
        $region18: #{tpu_custom_call.1} parent=15 // pred_check_branch
          %145 = sbr.rel (%p143) target = $region20
        $region19: #{tpu_custom_call.1} parent=15 // pred_region
          %s146 = sand.u32 %s30, 1
          %s147 = scalar_lea.sflag [#allocation5], %s146
          %s148 = sand.u32 %s30, 1
          %s149 = smul.addr %s148, 1024
          %s150 = scalar_lea.vmem [#allocation4], %s149
          %s151 = smul.u32 8, %s20
          %s153 = ssub.s32 16384, 16384
          %154 = vsyncadd %s147, %s153
          %s155 = smul.addr %s151, 16
          %s156 = smul.addr %s155, 128
          %s157 = scalar_lea.hbm %s1, %s156
          %s158 = sshll.u32 %s150, 4
          %s159 = int_to_ptr.vmem [resolvable:$true] %s158
          %164 = dma.hbm_to_vmem [thread:$0]  %s157, 16384, %s159, %s147, 128, 128, 8
        $region20: #{tpu_custom_call.1} parent=15 // pred_fallthru
          _
        // Predicated region
        $region21: #{tpu_custom_call.1} parent=15 // pred_check
          %p165 = pneg %p66
        $region22: #{tpu_custom_call.1} parent=15 // pred_check_branch
          %167 = sbr.rel (%p165) target = $region24
        $region23: #{tpu_custom_call.1} parent=15 // pred_region
          %s168 = sand.u32 %s20, 1
          %s169 = scalar_lea.sflag [#allocation8], %s168
          %s170 = sand.u32 %s56, 1
          %s171 = smul.addr %s170, 1024
          %s172 = scalar_lea.vmem [#allocation7], %s171
          %s173 = smul.u32 8, %s20
          %s175 = ssub.s32 16384, 16384
          %176 = vsyncadd %s169, %s175
          %s177 = smul.addr %s173, 16
          %s178 = smul.addr %s177, 128
          %s179 = scalar_lea.hbm %s2, %s178
          %s180 = sshll.u32 %s172, 4
          %s181 = int_to_ptr.vmem [resolvable:$true] %s180
          %186 = dma.hbm_to_vmem [thread:$0]  %s179, 16384, %s181, %s169, 128, 128, 8
        $region24: #{tpu_custom_call.1} parent=15 // pred_fallthru
          _
        // Predicated region
        $region25: #{tpu_custom_call.1} parent=15 // pred_check
          %p187 = pneg %p92
        $region26: #{tpu_custom_call.1} parent=15 // pred_check_branch
          %189 = sbr.rel (%p187) target = $region28
        $region27: #{tpu_custom_call.1} parent=15 // pred_region
          %s190 = sand.u32 %s20, 1
          %s191 = scalar_lea.sflag [#allocation8], %s190
          %s192 = sand.u32 %s82, 1
          %s193 = smul.addr %s192, 1024
          %s194 = scalar_lea.vmem [#allocation9], %s193
          %s195 = smul.u32 8, %s20
          %s197 = ssub.s32 16384, 16384
          %198 = vsyncadd %s191, %s197
          %s199 = smul.addr %s195, 16
          %s200 = smul.addr %s199, 128
          %s201 = scalar_lea.hbm %s3, %s200
          %s202 = sshll.u32 %s194, 4
          %s203 = int_to_ptr.vmem [resolvable:$true] %s202
          %208 = dma.hbm_to_vmem [thread:$0]  %s201, 16384, %s203, %s191, 128, 128, 8
        $region28: #{tpu_custom_call.1} parent=15 // pred_fallthru
          _
      $region16: #{tpu_custom_call.1} parent=5 // pred_fallthru
        _
      %p209 = scmp.le.s32.totalorder 1, %s20
      %p210 = scmp.lt.s32.totalorder %s20, 3
      %p211 = pnand %p209, %p210
      %p212 = pneg %p211
      // Predicated region
      $region29: #{tpu_custom_call.1} parent=5 // pred_check
        _
      $region30: #{tpu_custom_call.1} parent=5 // pred_check_branch
        %214 = sbr.rel (%p211) target = $region32
      $region31: #{tpu_custom_call.1} parent=5 // pred_region
        %s215 = ssub.s32 %s20, 1
        %s216 = sand.u32 %s33, 1
        %s217 = scalar_lea.sflag [#allocation5], %s216
        %s218 = sand.u32 %s33, 1
        %s219 = smul.addr %s218, 1024
        %s220 = scalar_lea.vmem [#allocation4], %s219
        // Predicated region
        $region33: #{tpu_custom_call.1} parent=31 // pred_check
          %p221 = pneg %p46
        $region34: #{tpu_custom_call.1} parent=31 // pred_check_branch
          %223 = sbr.rel (%p221) target = $region36
        $region35: #{tpu_custom_call.1} parent=31 // pred_region
          %224 = dma.done %s217, 16384
        $region36: #{tpu_custom_call.1} parent=31 // pred_fallthru
          _
        %s225 = sand.u32 %s25, 1
        %s226 = scalar_lea.sflag [#allocation8], %s225
        %s227 = sand.u32 %s59, 1
        %s228 = smul.addr %s227, 1024
        %s229 = scalar_lea.vmem [#allocation7], %s228
        // Predicated region
        $region37: #{tpu_custom_call.1} parent=31 // pred_check
          %p230 = pneg %p72
        $region38: #{tpu_custom_call.1} parent=31 // pred_check_branch
          %232 = sbr.rel (%p230) target = $region40
        $region39: #{tpu_custom_call.1} parent=31 // pred_region
          %233 = dma.done %s226, 16384
        $region40: #{tpu_custom_call.1} parent=31 // pred_fallthru
          _
        %s234 = sand.u32 %s25, 1
        %s235 = scalar_lea.sflag [#allocation8], %s234
        %s236 = sand.u32 %s85, 1
        %s237 = smul.addr %s236, 1024
        %s238 = scalar_lea.vmem [#allocation9], %s237
        // Predicated region
        $region41: #{tpu_custom_call.1} parent=31 // pred_check
          %p239 = pneg %p98
        $region42: #{tpu_custom_call.1} parent=31 // pred_check_branch
          %241 = sbr.rel (%p239) target = $region44
        $region43: #{tpu_custom_call.1} parent=31 // pred_region
          %242 = dma.done %s235, 16384
        $region44: #{tpu_custom_call.1} parent=31 // pred_fallthru
          _
        %s243 = sand.u32 %s33, 1
        %s244 = scalar_lea.sflag [#allocation5], %s243
        %s245 = sand.u32 %s33, 1
        %s246 = smul.addr %s245, 1024
        %s247 = scalar_lea.vmem [#allocation4], %s246
        %p248 = pneg %p46
        %p249 = pneg %p43
        %s250 = sand.u32 %s25, 1
        %s251 = scalar_lea.sflag [#allocation8], %s250
        %s252 = sand.u32 %s59, 1
        %s253 = smul.addr %s252, 1024
        %s254 = scalar_lea.vmem [#allocation7], %s253
        %p255 = pneg %p72
        %p256 = pneg %p69
        %s257 = sand.u32 %s25, 1
        %s258 = scalar_lea.sflag [#allocation8], %s257
        %s259 = sand.u32 %s85, 1
        %s260 = smul.addr %s259, 1024
        %s261 = scalar_lea.vmem [#allocation9], %s260
        %p262 = pneg %p98
        %p263 = pneg %p95
        %p264 = pneg %p124
        %p265 = pneg %p121
        %s266 = sand.u32 %s111, 1
        %s267 = scalar_lea.sflag [#allocation6], %s266
        %s268 = sand.u32 %s111, 1
        %s269 = smul.addr %s268, 1024
        %s270 = scalar_lea.vmem [#allocation10], %s269
        %s271 = smul.u32 8, %s25
        %s272 = smul.u32 8, %s25
        %s273 = smul.u32 8, %s25
        %s274 = smul.u32 8, %s25
        %v276 = vld [vmem:[%s220] sm:$0xff]
        %v277 = vld [vmem:[%s220 + $0x8] sm:$0xff]
        %v278 = vld [vmem:[%s220 + $0x10] sm:$0xff]
        %v279 = vld [vmem:[%s220 + $0x18] sm:$0xff]
        %v280 = vld [vmem:[%s220 + $0x20] sm:$0xff]
        %v281 = vld [vmem:[%s220 + $0x28] sm:$0xff]
        %v282 = vld [vmem:[%s220 + $0x30] sm:$0xff]
        %v283 = vld [vmem:[%s220 + $0x38] sm:$0xff]
        %v284 = vld [vmem:[%s220 + $0x40] sm:$0xff]
        %v285 = vld [vmem:[%s220 + $0x48] sm:$0xff]
        %v286 = vld [vmem:[%s220 + $0x50] sm:$0xff]
        %v287 = vld [vmem:[%s220 + $0x58] sm:$0xff]
        %v288 = vld [vmem:[%s220 + $0x60] sm:$0xff]
        %v289 = vld [vmem:[%s220 + $0x68] sm:$0xff]
        %v290 = vld [vmem:[%s220 + $0x70] sm:$0xff]
        %v291 = vld [vmem:[%s220 + $0x78] sm:$0xff]
        %v292 = vld [vmem:[%s220 + $0x80] sm:$0xff]
        %v293 = vld [vmem:[%s220 + $0x88] sm:$0xff]
        %v294 = vld [vmem:[%s220 + $0x90] sm:$0xff]
        %v295 = vld [vmem:[%s220 + $0x98] sm:$0xff]
        %v296 = vld [vmem:[%s220 + $0xa0] sm:$0xff]
        %v297 = vld [vmem:[%s220 + $0xa8] sm:$0xff]
        %v298 = vld [vmem:[%s220 + $0xb0] sm:$0xff]
        %v299 = vld [vmem:[%s220 + $0xb8] sm:$0xff]
        %v300 = vld [vmem:[%s220 + $0xc0] sm:$0xff]
        %v301 = vld [vmem:[%s220 + $0xc8] sm:$0xff]
        %v302 = vld [vmem:[%s220 + $0xd0] sm:$0xff]
        %v303 = vld [vmem:[%s220 + $0xd8] sm:$0xff]
        %v304 = vld [vmem:[%s220 + $0xe0] sm:$0xff]
        %v305 = vld [vmem:[%s220 + $0xe8] sm:$0xff]
        %v306 = vld [vmem:[%s220 + $0xf0] sm:$0xff]
        %v307 = vld [vmem:[%s220 + $0xf8] sm:$0xff]
        %v308 = vld [vmem:[%s220 + $0x100] sm:$0xff]
        %v309 = vld [vmem:[%s220 + $0x108] sm:$0xff]
        %v310 = vld [vmem:[%s220 + $0x110] sm:$0xff]
        %v311 = vld [vmem:[%s220 + $0x118] sm:$0xff]
        %v312 = vld [vmem:[%s220 + $0x120] sm:$0xff]
        %v313 = vld [vmem:[%s220 + $0x128] sm:$0xff]
        %v314 = vld [vmem:[%s220 + $0x130] sm:$0xff]
        %v315 = vld [vmem:[%s220 + $0x138] sm:$0xff]
        %v316 = vld [vmem:[%s220 + $0x140] sm:$0xff]
        %v317 = vld [vmem:[%s220 + $0x148] sm:$0xff]
        %v318 = vld [vmem:[%s220 + $0x150] sm:$0xff]
        %v319 = vld [vmem:[%s220 + $0x158] sm:$0xff]
        %v320 = vld [vmem:[%s220 + $0x160] sm:$0xff]
        %v321 = vld [vmem:[%s220 + $0x168] sm:$0xff]
        %v322 = vld [vmem:[%s220 + $0x170] sm:$0xff]
        %v323 = vld [vmem:[%s220 + $0x178] sm:$0xff]
        %v324 = vld [vmem:[%s220 + $0x180] sm:$0xff]
        %v325 = vld [vmem:[%s220 + $0x188] sm:$0xff]
        %v326 = vld [vmem:[%s220 + $0x190] sm:$0xff]
        %v327 = vld [vmem:[%s220 + $0x198] sm:$0xff]
        %v328 = vld [vmem:[%s220 + $0x1a0] sm:$0xff]
        %v329 = vld [vmem:[%s220 + $0x1a8] sm:$0xff]
        %v330 = vld [vmem:[%s220 + $0x1b0] sm:$0xff]
        %v331 = vld [vmem:[%s220 + $0x1b8] sm:$0xff]
        %v332 = vld [vmem:[%s220 + $0x1c0] sm:$0xff]
        %v333 = vld [vmem:[%s220 + $0x1c8] sm:$0xff]
        %v334 = vld [vmem:[%s220 + $0x1d0] sm:$0xff]
        %v335 = vld [vmem:[%s220 + $0x1d8] sm:$0xff]
        %v336 = vld [vmem:[%s220 + $0x1e0] sm:$0xff]
        %v337 = vld [vmem:[%s220 + $0x1e8] sm:$0xff]
        %v338 = vld [vmem:[%s220 + $0x1f0] sm:$0xff]
        %v339 = vld [vmem:[%s220 + $0x1f8] sm:$0xff]
        %v340 = vld [vmem:[%s220 + $0x200] sm:$0xff]
        %v341 = vld [vmem:[%s220 + $0x208] sm:$0xff]
        %v342 = vld [vmem:[%s220 + $0x210] sm:$0xff]
        %v343 = vld [vmem:[%s220 + $0x218] sm:$0xff]
        %v344 = vld [vmem:[%s220 + $0x220] sm:$0xff]
        %v345 = vld [vmem:[%s220 + $0x228] sm:$0xff]
        %v346 = vld [vmem:[%s220 + $0x230] sm:$0xff]
        %v347 = vld [vmem:[%s220 + $0x238] sm:$0xff]
        %v348 = vld [vmem:[%s220 + $0x240] sm:$0xff]
        %v349 = vld [vmem:[%s220 + $0x248] sm:$0xff]
        %v350 = vld [vmem:[%s220 + $0x250] sm:$0xff]
        %v351 = vld [vmem:[%s220 + $0x258] sm:$0xff]
        %v352 = vld [vmem:[%s220 + $0x260] sm:$0xff]
        %v353 = vld [vmem:[%s220 + $0x268] sm:$0xff]
        %v354 = vld [vmem:[%s220 + $0x270] sm:$0xff]
        %v355 = vld [vmem:[%s220 + $0x278] sm:$0xff]
        %v356 = vld [vmem:[%s220 + $0x280] sm:$0xff]
        %v357 = vld [vmem:[%s220 + $0x288] sm:$0xff]
        %v358 = vld [vmem:[%s220 + $0x290] sm:$0xff]
        %v359 = vld [vmem:[%s220 + $0x298] sm:$0xff]
        %v360 = vld [vmem:[%s220 + $0x2a0] sm:$0xff]
        %v361 = vld [vmem:[%s220 + $0x2a8] sm:$0xff]
        %v362 = vld [vmem:[%s220 + $0x2b0] sm:$0xff]
        %v363 = vld [vmem:[%s220 + $0x2b8] sm:$0xff]
        %v364 = vld [vmem:[%s220 + $0x2c0] sm:$0xff]
        %v365 = vld [vmem:[%s220 + $0x2c8] sm:$0xff]
        %v366 = vld [vmem:[%s220 + $0x2d0] sm:$0xff]
        %v367 = vld [vmem:[%s220 + $0x2d8] sm:$0xff]
        %v368 = vld [vmem:[%s220 + $0x2e0] sm:$0xff]
        %v369 = vld [vmem:[%s220 + $0x2e8] sm:$0xff]
        %v370 = vld [vmem:[%s220 + $0x2f0] sm:$0xff]
        %v371 = vld [vmem:[%s220 + $0x2f8] sm:$0xff]
        %v372 = vld [vmem:[%s220 + $0x300] sm:$0xff]
        %v373 = vld [vmem:[%s220 + $0x308] sm:$0xff]
        %v374 = vld [vmem:[%s220 + $0x310] sm:$0xff]
        %v375 = vld [vmem:[%s220 + $0x318] sm:$0xff]
        %v376 = vld [vmem:[%s220 + $0x320] sm:$0xff]
        %v377 = vld [vmem:[%s220 + $0x328] sm:$0xff]
        %v378 = vld [vmem:[%s220 + $0x330] sm:$0xff]
        %v379 = vld [vmem:[%s220 + $0x338] sm:$0xff]
        %v380 = vld [vmem:[%s220 + $0x340] sm:$0xff]
        %v381 = vld [vmem:[%s220 + $0x348] sm:$0xff]
        %v382 = vld [vmem:[%s220 + $0x350] sm:$0xff]
        %v383 = vld [vmem:[%s220 + $0x358] sm:$0xff]
        %v384 = vld [vmem:[%s220 + $0x360] sm:$0xff]
        %v385 = vld [vmem:[%s220 + $0x368] sm:$0xff]
        %v386 = vld [vmem:[%s220 + $0x370] sm:$0xff]
        %v387 = vld [vmem:[%s220 + $0x378] sm:$0xff]
        %v388 = vld [vmem:[%s220 + $0x380] sm:$0xff]
        %v389 = vld [vmem:[%s220 + $0x388] sm:$0xff]
        %v390 = vld [vmem:[%s220 + $0x390] sm:$0xff]
        %v391 = vld [vmem:[%s220 + $0x398] sm:$0xff]
        %v392 = vld [vmem:[%s220 + $0x3a0] sm:$0xff]
        %v393 = vld [vmem:[%s220 + $0x3a8] sm:$0xff]
        %v394 = vld [vmem:[%s220 + $0x3b0] sm:$0xff]
        %v395 = vld [vmem:[%s220 + $0x3b8] sm:$0xff]
        %v396 = vld [vmem:[%s220 + $0x3c0] sm:$0xff]
        %v397 = vld [vmem:[%s220 + $0x3c8] sm:$0xff]
        %v398 = vld [vmem:[%s220 + $0x3d0] sm:$0xff]
        %v399 = vld [vmem:[%s220 + $0x3d8] sm:$0xff]
        %v400 = vld [vmem:[%s220 + $0x3e0] sm:$0xff]
        %v401 = vld [vmem:[%s220 + $0x3e8] sm:$0xff]
        %v402 = vld [vmem:[%s220 + $0x3f0] sm:$0xff]
        %v403 = vld [vmem:[%s220 + $0x3f8] sm:$0xff]
        %v404 = vld [vmem:[%s229] sm:$0xff]
        %v405 = vld [vmem:[%s229 + $0x8] sm:$0xff]
        %v406 = vld [vmem:[%s229 + $0x10] sm:$0xff]
        %v407 = vld [vmem:[%s229 + $0x18] sm:$0xff]
        %v408 = vld [vmem:[%s229 + $0x20] sm:$0xff]
        %v409 = vld [vmem:[%s229 + $0x28] sm:$0xff]
        %v410 = vld [vmem:[%s229 + $0x30] sm:$0xff]
        %v411 = vld [vmem:[%s229 + $0x38] sm:$0xff]
        %v412 = vld [vmem:[%s229 + $0x40] sm:$0xff]
        %v413 = vld [vmem:[%s229 + $0x48] sm:$0xff]
        %v414 = vld [vmem:[%s229 + $0x50] sm:$0xff]
        %v415 = vld [vmem:[%s229 + $0x58] sm:$0xff]
        %v416 = vld [vmem:[%s229 + $0x60] sm:$0xff]
        %v417 = vld [vmem:[%s229 + $0x68] sm:$0xff]
        %v418 = vld [vmem:[%s229 + $0x70] sm:$0xff]
        %v419 = vld [vmem:[%s229 + $0x78] sm:$0xff]
        %v420 = vld [vmem:[%s229 + $0x80] sm:$0xff]
        %v421 = vld [vmem:[%s229 + $0x88] sm:$0xff]
        %v422 = vld [vmem:[%s229 + $0x90] sm:$0xff]
        %v423 = vld [vmem:[%s229 + $0x98] sm:$0xff]
        %v424 = vld [vmem:[%s229 + $0xa0] sm:$0xff]
        %v425 = vld [vmem:[%s229 + $0xa8] sm:$0xff]
        %v426 = vld [vmem:[%s229 + $0xb0] sm:$0xff]
        %v427 = vld [vmem:[%s229 + $0xb8] sm:$0xff]
        %v428 = vld [vmem:[%s229 + $0xc0] sm:$0xff]
        %v429 = vld [vmem:[%s229 + $0xc8] sm:$0xff]
        %v430 = vld [vmem:[%s229 + $0xd0] sm:$0xff]
        %v431 = vld [vmem:[%s229 + $0xd8] sm:$0xff]
        %v432 = vld [vmem:[%s229 + $0xe0] sm:$0xff]
        %v433 = vld [vmem:[%s229 + $0xe8] sm:$0xff]
        %v434 = vld [vmem:[%s229 + $0xf0] sm:$0xff]
        %v435 = vld [vmem:[%s229 + $0xf8] sm:$0xff]
        %v436 = vld [vmem:[%s229 + $0x100] sm:$0xff]
        %v437 = vld [vmem:[%s229 + $0x108] sm:$0xff]
        %v438 = vld [vmem:[%s229 + $0x110] sm:$0xff]
        %v439 = vld [vmem:[%s229 + $0x118] sm:$0xff]
        %v440 = vld [vmem:[%s229 + $0x120] sm:$0xff]
        %v441 = vld [vmem:[%s229 + $0x128] sm:$0xff]
        %v442 = vld [vmem:[%s229 + $0x130] sm:$0xff]
        %v443 = vld [vmem:[%s229 + $0x138] sm:$0xff]
        %v444 = vld [vmem:[%s229 + $0x140] sm:$0xff]
        %v445 = vld [vmem:[%s229 + $0x148] sm:$0xff]
        %v446 = vld [vmem:[%s229 + $0x150] sm:$0xff]
        %v447 = vld [vmem:[%s229 + $0x158] sm:$0xff]
        %v448 = vld [vmem:[%s229 + $0x160] sm:$0xff]
        %v449 = vld [vmem:[%s229 + $0x168] sm:$0xff]
        %v450 = vld [vmem:[%s229 + $0x170] sm:$0xff]
        %v451 = vld [vmem:[%s229 + $0x178] sm:$0xff]
        %v452 = vld [vmem:[%s229 + $0x180] sm:$0xff]
        %v453 = vld [vmem:[%s229 + $0x188] sm:$0xff]
        %v454 = vld [vmem:[%s229 + $0x190] sm:$0xff]
        %v455 = vld [vmem:[%s229 + $0x198] sm:$0xff]
        %v456 = vld [vmem:[%s229 + $0x1a0] sm:$0xff]
        %v457 = vld [vmem:[%s229 + $0x1a8] sm:$0xff]
        %v458 = vld [vmem:[%s229 + $0x1b0] sm:$0xff]
        %v459 = vld [vmem:[%s229 + $0x1b8] sm:$0xff]
        %v460 = vld [vmem:[%s229 + $0x1c0] sm:$0xff]
        %v461 = vld [vmem:[%s229 + $0x1c8] sm:$0xff]
        %v462 = vld [vmem:[%s229 + $0x1d0] sm:$0xff]
        %v463 = vld [vmem:[%s229 + $0x1d8] sm:$0xff]
        %v464 = vld [vmem:[%s229 + $0x1e0] sm:$0xff]
        %v465 = vld [vmem:[%s229 + $0x1e8] sm:$0xff]
        %v466 = vld [vmem:[%s229 + $0x1f0] sm:$0xff]
        %v467 = vld [vmem:[%s229 + $0x1f8] sm:$0xff]
        %v468 = vld [vmem:[%s229 + $0x200] sm:$0xff]
        %v469 = vld [vmem:[%s229 + $0x208] sm:$0xff]
        %v470 = vld [vmem:[%s229 + $0x210] sm:$0xff]
        %v471 = vld [vmem:[%s229 + $0x218] sm:$0xff]
        %v472 = vld [vmem:[%s229 + $0x220] sm:$0xff]
        %v473 = vld [vmem:[%s229 + $0x228] sm:$0xff]
        %v474 = vld [vmem:[%s229 + $0x230] sm:$0xff]
        %v475 = vld [vmem:[%s229 + $0x238] sm:$0xff]
        %v476 = vld [vmem:[%s229 + $0x240] sm:$0xff]
        %v477 = vld [vmem:[%s229 + $0x248] sm:$0xff]
        %v478 = vld [vmem:[%s229 + $0x250] sm:$0xff]
        %v479 = vld [vmem:[%s229 + $0x258] sm:$0xff]
        %v480 = vld [vmem:[%s229 + $0x260] sm:$0xff]
        %v481 = vld [vmem:[%s229 + $0x268] sm:$0xff]
        %v482 = vld [vmem:[%s229 + $0x270] sm:$0xff]
        %v483 = vld [vmem:[%s229 + $0x278] sm:$0xff]
        %v484 = vld [vmem:[%s229 + $0x280] sm:$0xff]
        %v485 = vld [vmem:[%s229 + $0x288] sm:$0xff]
        %v486 = vld [vmem:[%s229 + $0x290] sm:$0xff]
        %v487 = vld [vmem:[%s229 + $0x298] sm:$0xff]
        %v488 = vld [vmem:[%s229 + $0x2a0] sm:$0xff]
        %v489 = vld [vmem:[%s229 + $0x2a8] sm:$0xff]
        %v490 = vld [vmem:[%s229 + $0x2b0] sm:$0xff]
        %v491 = vld [vmem:[%s229 + $0x2b8] sm:$0xff]
        %v492 = vld [vmem:[%s229 + $0x2c0] sm:$0xff]
        %v493 = vld [vmem:[%s229 + $0x2c8] sm:$0xff]
        %v494 = vld [vmem:[%s229 + $0x2d0] sm:$0xff]
        %v495 = vld [vmem:[%s229 + $0x2d8] sm:$0xff]
        %v496 = vld [vmem:[%s229 + $0x2e0] sm:$0xff]
        %v497 = vld [vmem:[%s229 + $0x2e8] sm:$0xff]
        %v498 = vld [vmem:[%s229 + $0x2f0] sm:$0xff]
        %v499 = vld [vmem:[%s229 + $0x2f8] sm:$0xff]
        %v500 = vld [vmem:[%s229 + $0x300] sm:$0xff]
        %v501 = vld [vmem:[%s229 + $0x308] sm:$0xff]
        %v502 = vld [vmem:[%s229 + $0x310] sm:$0xff]
        %v503 = vld [vmem:[%s229 + $0x318] sm:$0xff]
        %v504 = vld [vmem:[%s229 + $0x320] sm:$0xff]
        %v505 = vld [vmem:[%s229 + $0x328] sm:$0xff]
        %v506 = vld [vmem:[%s229 + $0x330] sm:$0xff]
        %v507 = vld [vmem:[%s229 + $0x338] sm:$0xff]
        %v508 = vld [vmem:[%s229 + $0x340] sm:$0xff]
        %v509 = vld [vmem:[%s229 + $0x348] sm:$0xff]
        %v510 = vld [vmem:[%s229 + $0x350] sm:$0xff]
        %v511 = vld [vmem:[%s229 + $0x358] sm:$0xff]
        %v512 = vld [vmem:[%s229 + $0x360] sm:$0xff]
        %v513 = vld [vmem:[%s229 + $0x368] sm:$0xff]
        %v514 = vld [vmem:[%s229 + $0x370] sm:$0xff]
        %v515 = vld [vmem:[%s229 + $0x378] sm:$0xff]
        %v516 = vld [vmem:[%s229 + $0x380] sm:$0xff]
        %v517 = vld [vmem:[%s229 + $0x388] sm:$0xff]
        %v518 = vld [vmem:[%s229 + $0x390] sm:$0xff]
        %v519 = vld [vmem:[%s229 + $0x398] sm:$0xff]
        %v520 = vld [vmem:[%s229 + $0x3a0] sm:$0xff]
        %v521 = vld [vmem:[%s229 + $0x3a8] sm:$0xff]
        %v522 = vld [vmem:[%s229 + $0x3b0] sm:$0xff]
        %v523 = vld [vmem:[%s229 + $0x3b8] sm:$0xff]
        %v524 = vld [vmem:[%s229 + $0x3c0] sm:$0xff]
        %v525 = vld [vmem:[%s229 + $0x3c8] sm:$0xff]
        %v526 = vld [vmem:[%s229 + $0x3d0] sm:$0xff]
        %v527 = vld [vmem:[%s229 + $0x3d8] sm:$0xff]
        %v528 = vld [vmem:[%s229 + $0x3e0] sm:$0xff]
        %v529 = vld [vmem:[%s229 + $0x3e8] sm:$0xff]
        %v530 = vld [vmem:[%s229 + $0x3f0] sm:$0xff]
        %v531 = vld [vmem:[%s229 + $0x3f8] sm:$0xff]
        %v532 = vld [vmem:[%s238] sm:$0xff]
        %v533 = vld [vmem:[%s238 + $0x8] sm:$0xff]
        %v534 = vld [vmem:[%s238 + $0x10] sm:$0xff]
        %v535 = vld [vmem:[%s238 + $0x18] sm:$0xff]
        %v536 = vld [vmem:[%s238 + $0x20] sm:$0xff]
        %v537 = vld [vmem:[%s238 + $0x28] sm:$0xff]
        %v538 = vld [vmem:[%s238 + $0x30] sm:$0xff]
        %v539 = vld [vmem:[%s238 + $0x38] sm:$0xff]
        %v540 = vld [vmem:[%s238 + $0x40] sm:$0xff]
        %v541 = vld [vmem:[%s238 + $0x48] sm:$0xff]
        %v542 = vld [vmem:[%s238 + $0x50] sm:$0xff]
        %v543 = vld [vmem:[%s238 + $0x58] sm:$0xff]
        %v544 = vld [vmem:[%s238 + $0x60] sm:$0xff]
        %v545 = vld [vmem:[%s238 + $0x68] sm:$0xff]
        %v546 = vld [vmem:[%s238 + $0x70] sm:$0xff]
        %v547 = vld [vmem:[%s238 + $0x78] sm:$0xff]
        %v548 = vld [vmem:[%s238 + $0x80] sm:$0xff]
        %v549 = vld [vmem:[%s238 + $0x88] sm:$0xff]
        %v550 = vld [vmem:[%s238 + $0x90] sm:$0xff]
        %v551 = vld [vmem:[%s238 + $0x98] sm:$0xff]
        %v552 = vld [vmem:[%s238 + $0xa0] sm:$0xff]
        %v553 = vld [vmem:[%s238 + $0xa8] sm:$0xff]
        %v554 = vld [vmem:[%s238 + $0xb0] sm:$0xff]
        %v555 = vld [vmem:[%s238 + $0xb8] sm:$0xff]
        %v556 = vld [vmem:[%s238 + $0xc0] sm:$0xff]
        %v557 = vld [vmem:[%s238 + $0xc8] sm:$0xff]
        %v558 = vld [vmem:[%s238 + $0xd0] sm:$0xff]
        %v559 = vld [vmem:[%s238 + $0xd8] sm:$0xff]
        %v560 = vld [vmem:[%s238 + $0xe0] sm:$0xff]
        %v561 = vld [vmem:[%s238 + $0xe8] sm:$0xff]
        %v562 = vld [vmem:[%s238 + $0xf0] sm:$0xff]
        %v563 = vld [vmem:[%s238 + $0xf8] sm:$0xff]
        %v564 = vld [vmem:[%s238 + $0x100] sm:$0xff]
        %v565 = vld [vmem:[%s238 + $0x108] sm:$0xff]
        %v566 = vld [vmem:[%s238 + $0x110] sm:$0xff]
        %v567 = vld [vmem:[%s238 + $0x118] sm:$0xff]
        %v568 = vld [vmem:[%s238 + $0x120] sm:$0xff]
        %v569 = vld [vmem:[%s238 + $0x128] sm:$0xff]
        %v570 = vld [vmem:[%s238 + $0x130] sm:$0xff]
        %v571 = vld [vmem:[%s238 + $0x138] sm:$0xff]
        %v572 = vld [vmem:[%s238 + $0x140] sm:$0xff]
        %v573 = vld [vmem:[%s238 + $0x148] sm:$0xff]
        %v574 = vld [vmem:[%s238 + $0x150] sm:$0xff]
        %v575 = vld [vmem:[%s238 + $0x158] sm:$0xff]
        %v576 = vld [vmem:[%s238 + $0x160] sm:$0xff]
        %v577 = vld [vmem:[%s238 + $0x168] sm:$0xff]
        %v578 = vld [vmem:[%s238 + $0x170] sm:$0xff]
        %v579 = vld [vmem:[%s238 + $0x178] sm:$0xff]
        %v580 = vld [vmem:[%s238 + $0x180] sm:$0xff]
        %v581 = vld [vmem:[%s238 + $0x188] sm:$0xff]
        %v582 = vld [vmem:[%s238 + $0x190] sm:$0xff]
        %v583 = vld [vmem:[%s238 + $0x198] sm:$0xff]
        %v584 = vld [vmem:[%s238 + $0x1a0] sm:$0xff]
        %v585 = vld [vmem:[%s238 + $0x1a8] sm:$0xff]
        %v586 = vld [vmem:[%s238 + $0x1b0] sm:$0xff]
        %v587 = vld [vmem:[%s238 + $0x1b8] sm:$0xff]
        %v588 = vld [vmem:[%s238 + $0x1c0] sm:$0xff]
        %v589 = vld [vmem:[%s238 + $0x1c8] sm:$0xff]
        %v590 = vld [vmem:[%s238 + $0x1d0] sm:$0xff]
        %v591 = vld [vmem:[%s238 + $0x1d8] sm:$0xff]
        %v592 = vld [vmem:[%s238 + $0x1e0] sm:$0xff]
        %v593 = vld [vmem:[%s238 + $0x1e8] sm:$0xff]
        %v594 = vld [vmem:[%s238 + $0x1f0] sm:$0xff]
        %v595 = vld [vmem:[%s238 + $0x1f8] sm:$0xff]
        %v596 = vld [vmem:[%s238 + $0x200] sm:$0xff]
        %v597 = vld [vmem:[%s238 + $0x208] sm:$0xff]
        %v598 = vld [vmem:[%s238 + $0x210] sm:$0xff]
        %v599 = vld [vmem:[%s238 + $0x218] sm:$0xff]
        %v600 = vld [vmem:[%s238 + $0x220] sm:$0xff]
        %v601 = vld [vmem:[%s238 + $0x228] sm:$0xff]
        %v602 = vld [vmem:[%s238 + $0x230] sm:$0xff]
        %v603 = vld [vmem:[%s238 + $0x238] sm:$0xff]
        %v604 = vld [vmem:[%s238 + $0x240] sm:$0xff]
        %v605 = vld [vmem:[%s238 + $0x248] sm:$0xff]
        %v606 = vld [vmem:[%s238 + $0x250] sm:$0xff]
        %v607 = vld [vmem:[%s238 + $0x258] sm:$0xff]
        %v608 = vld [vmem:[%s238 + $0x260] sm:$0xff]
        %v609 = vld [vmem:[%s238 + $0x268] sm:$0xff]
        %v610 = vld [vmem:[%s238 + $0x270] sm:$0xff]
        %v611 = vld [vmem:[%s238 + $0x278] sm:$0xff]
        %v612 = vld [vmem:[%s238 + $0x280] sm:$0xff]
        %v613 = vld [vmem:[%s238 + $0x288] sm:$0xff]
        %v614 = vld [vmem:[%s238 + $0x290] sm:$0xff]
        %v615 = vld [vmem:[%s238 + $0x298] sm:$0xff]
        %v616 = vld [vmem:[%s238 + $0x2a0] sm:$0xff]
        %v617 = vld [vmem:[%s238 + $0x2a8] sm:$0xff]
        %v618 = vld [vmem:[%s238 + $0x2b0] sm:$0xff]
        %v619 = vld [vmem:[%s238 + $0x2b8] sm:$0xff]
        %v620 = vld [vmem:[%s238 + $0x2c0] sm:$0xff]
        %v621 = vld [vmem:[%s238 + $0x2c8] sm:$0xff]
        %v622 = vld [vmem:[%s238 + $0x2d0] sm:$0xff]
        %v623 = vld [vmem:[%s238 + $0x2d8] sm:$0xff]
        %v624 = vld [vmem:[%s238 + $0x2e0] sm:$0xff]
        %v625 = vld [vmem:[%s238 + $0x2e8] sm:$0xff]
        %v626 = vld [vmem:[%s238 + $0x2f0] sm:$0xff]
        %v627 = vld [vmem:[%s238 + $0x2f8] sm:$0xff]
        %v628 = vld [vmem:[%s238 + $0x300] sm:$0xff]
        %v629 = vld [vmem:[%s238 + $0x308] sm:$0xff]
        %v630 = vld [vmem:[%s238 + $0x310] sm:$0xff]
        %v631 = vld [vmem:[%s238 + $0x318] sm:$0xff]
        %v632 = vld [vmem:[%s238 + $0x320] sm:$0xff]
        %v633 = vld [vmem:[%s238 + $0x328] sm:$0xff]
        %v634 = vld [vmem:[%s238 + $0x330] sm:$0xff]
        %v635 = vld [vmem:[%s238 + $0x338] sm:$0xff]
        %v636 = vld [vmem:[%s238 + $0x340] sm:$0xff]
        %v637 = vld [vmem:[%s238 + $0x348] sm:$0xff]
        %v638 = vld [vmem:[%s238 + $0x350] sm:$0xff]
        %v639 = vld [vmem:[%s238 + $0x358] sm:$0xff]
        %v640 = vld [vmem:[%s238 + $0x360] sm:$0xff]
        %v641 = vld [vmem:[%s238 + $0x368] sm:$0xff]
        %v642 = vld [vmem:[%s238 + $0x370] sm:$0xff]
        %v643 = vld [vmem:[%s238 + $0x378] sm:$0xff]
        %v644 = vld [vmem:[%s238 + $0x380] sm:$0xff]
        %v645 = vld [vmem:[%s238 + $0x388] sm:$0xff]
        %v646 = vld [vmem:[%s238 + $0x390] sm:$0xff]
        %v647 = vld [vmem:[%s238 + $0x398] sm:$0xff]
        %v648 = vld [vmem:[%s238 + $0x3a0] sm:$0xff]
        %v649 = vld [vmem:[%s238 + $0x3a8] sm:$0xff]
        %v650 = vld [vmem:[%s238 + $0x3b0] sm:$0xff]
        %v651 = vld [vmem:[%s238 + $0x3b8] sm:$0xff]
        %v652 = vld [vmem:[%s238 + $0x3c0] sm:$0xff]
        %v653 = vld [vmem:[%s238 + $0x3c8] sm:$0xff]
        %v654 = vld [vmem:[%s238 + $0x3d0] sm:$0xff]
        %v655 = vld [vmem:[%s238 + $0x3d8] sm:$0xff]
        %v656 = vld [vmem:[%s238 + $0x3e0] sm:$0xff]
        %v657 = vld [vmem:[%s238 + $0x3e8] sm:$0xff]
        %v658 = vld [vmem:[%s238 + $0x3f0] sm:$0xff]
        %v659 = vld [vmem:[%s238 + $0x3f8] sm:$0xff]
        %v660 = vmul.f32 %v276, 11.313708
        %v661 = vmul.f32 %v277, 11.313708
        %v662 = vmul.f32 %v278, 11.313708
        %v663 = vmul.f32 %v279, 11.313708
        %v664 = vmul.f32 %v280, 11.313708
        %v665 = vmul.f32 %v281, 11.313708
        %v666 = vmul.f32 %v282, 11.313708
        %v667 = vmul.f32 %v283, 11.313708
        %v668 = vmul.f32 %v284, 11.313708
        %v669 = vmul.f32 %v285, 11.313708
        %v670 = vmul.f32 %v286, 11.313708
        %v671 = vmul.f32 %v287, 11.313708
        %v672 = vmul.f32 %v288, 11.313708
        %v673 = vmul.f32 %v289, 11.313708
        %v674 = vmul.f32 %v290, 11.313708
        %v675 = vmul.f32 %v291, 11.313708
        %v676 = vmul.f32 %v292, 11.313708
        %v677 = vmul.f32 %v293, 11.313708
        %v678 = vmul.f32 %v294, 11.313708
        %v679 = vmul.f32 %v295, 11.313708
        %v680 = vmul.f32 %v296, 11.313708
        %v681 = vmul.f32 %v297, 11.313708
        %v682 = vmul.f32 %v298, 11.313708
        %v683 = vmul.f32 %v299, 11.313708
        %v684 = vmul.f32 %v300, 11.313708
        %v685 = vmul.f32 %v301, 11.313708
        %v686 = vmul.f32 %v302, 11.313708
        %v687 = vmul.f32 %v303, 11.313708
        %v688 = vmul.f32 %v304, 11.313708
        %v689 = vmul.f32 %v305, 11.313708
        %v690 = vmul.f32 %v306, 11.313708
        %v691 = vmul.f32 %v307, 11.313708
        %v692 = vmul.f32 %v308, 11.313708
        %v693 = vmul.f32 %v309, 11.313708
        %v694 = vmul.f32 %v310, 11.313708
        %v695 = vmul.f32 %v311, 11.313708
        %v696 = vmul.f32 %v312, 11.313708
        %v697 = vmul.f32 %v313, 11.313708
        %v698 = vmul.f32 %v314, 11.313708
        %v699 = vmul.f32 %v315, 11.313708
        %v700 = vmul.f32 %v316, 11.313708
        %v701 = vmul.f32 %v317, 11.313708
        %v702 = vmul.f32 %v318, 11.313708
        %v703 = vmul.f32 %v319, 11.313708
        %v704 = vmul.f32 %v320, 11.313708
        %v705 = vmul.f32 %v321, 11.313708
        %v706 = vmul.f32 %v322, 11.313708
        %v707 = vmul.f32 %v323, 11.313708
        %v708 = vmul.f32 %v324, 11.313708
        %v709 = vmul.f32 %v325, 11.313708
        %v710 = vmul.f32 %v326, 11.313708
        %v711 = vmul.f32 %v327, 11.313708
        %v712 = vmul.f32 %v328, 11.313708
        %v713 = vmul.f32 %v329, 11.313708
        %v714 = vmul.f32 %v330, 11.313708
        %v715 = vmul.f32 %v331, 11.313708
        %v716 = vmul.f32 %v332, 11.313708
        %v717 = vmul.f32 %v333, 11.313708
        %v718 = vmul.f32 %v334, 11.313708
        %v719 = vmul.f32 %v335, 11.313708
        %v720 = vmul.f32 %v336, 11.313708
        %v721 = vmul.f32 %v337, 11.313708
        %v722 = vmul.f32 %v338, 11.313708
        %v723 = vmul.f32 %v339, 11.313708
        %v724 = vmul.f32 %v340, 11.313708
        %v725 = vmul.f32 %v341, 11.313708
        %v726 = vmul.f32 %v342, 11.313708
        %v727 = vmul.f32 %v343, 11.313708
        %v728 = vmul.f32 %v344, 11.313708
        %v729 = vmul.f32 %v345, 11.313708
        %v730 = vmul.f32 %v346, 11.313708
        %v731 = vmul.f32 %v347, 11.313708
        %v732 = vmul.f32 %v348, 11.313708
        %v733 = vmul.f32 %v349, 11.313708
        %v734 = vmul.f32 %v350, 11.313708
        %v735 = vmul.f32 %v351, 11.313708
        %v736 = vmul.f32 %v352, 11.313708
        %v737 = vmul.f32 %v353, 11.313708
        %v738 = vmul.f32 %v354, 11.313708
        %v739 = vmul.f32 %v355, 11.313708
        %v740 = vmul.f32 %v356, 11.313708
        %v741 = vmul.f32 %v357, 11.313708
        %v742 = vmul.f32 %v358, 11.313708
        %v743 = vmul.f32 %v359, 11.313708
        %v744 = vmul.f32 %v360, 11.313708
        %v745 = vmul.f32 %v361, 11.313708
        %v746 = vmul.f32 %v362, 11.313708
        %v747 = vmul.f32 %v363, 11.313708
        %v748 = vmul.f32 %v364, 11.313708
        %v749 = vmul.f32 %v365, 11.313708
        %v750 = vmul.f32 %v366, 11.313708
        %v751 = vmul.f32 %v367, 11.313708
        %v752 = vmul.f32 %v368, 11.313708
        %v753 = vmul.f32 %v369, 11.313708
        %v754 = vmul.f32 %v370, 11.313708
        %v755 = vmul.f32 %v371, 11.313708
        %v756 = vmul.f32 %v372, 11.313708
        %v757 = vmul.f32 %v373, 11.313708
        %v758 = vmul.f32 %v374, 11.313708
        %v759 = vmul.f32 %v375, 11.313708
        %v760 = vmul.f32 %v376, 11.313708
        %v761 = vmul.f32 %v377, 11.313708
        %v762 = vmul.f32 %v378, 11.313708
        %v763 = vmul.f32 %v379, 11.313708
        %v764 = vmul.f32 %v380, 11.313708
        %v765 = vmul.f32 %v381, 11.313708
        %v766 = vmul.f32 %v382, 11.313708
        %v767 = vmul.f32 %v383, 11.313708
        %v768 = vmul.f32 %v384, 11.313708
        %v769 = vmul.f32 %v385, 11.313708
        %v770 = vmul.f32 %v386, 11.313708
        %v771 = vmul.f32 %v387, 11.313708
        %v772 = vmul.f32 %v388, 11.313708
        %v773 = vmul.f32 %v389, 11.313708
        %v774 = vmul.f32 %v390, 11.313708
        %v775 = vmul.f32 %v391, 11.313708
        %v776 = vmul.f32 %v392, 11.313708
        %v777 = vmul.f32 %v393, 11.313708
        %v778 = vmul.f32 %v394, 11.313708
        %v779 = vmul.f32 %v395, 11.313708
        %v780 = vmul.f32 %v396, 11.313708
        %v781 = vmul.f32 %v397, 11.313708
        %v782 = vmul.f32 %v398, 11.313708
        %v783 = vmul.f32 %v399, 11.313708
        %v784 = vmul.f32 %v400, 11.313708
        %v785 = vmul.f32 %v401, 11.313708
        %v786 = vmul.f32 %v402, 11.313708
        %v787 = vmul.f32 %v403, 11.313708
        %v788 = vpack.c.bf16 %v661, %v660
        %v789 = vpack.c.bf16 %v663, %v662
        %v790 = vpack.c.bf16 %v665, %v664
        %v791 = vpack.c.bf16 %v667, %v666
        %v792 = vpack.c.bf16 %v669, %v668
        %v793 = vpack.c.bf16 %v671, %v670
        %v794 = vpack.c.bf16 %v673, %v672
        %v795 = vpack.c.bf16 %v675, %v674
        %v796 = vpack.c.bf16 %v677, %v676
        %v797 = vpack.c.bf16 %v679, %v678
        %v798 = vpack.c.bf16 %v681, %v680
        %v799 = vpack.c.bf16 %v683, %v682
        %v800 = vpack.c.bf16 %v685, %v684
        %v801 = vpack.c.bf16 %v687, %v686
        %v802 = vpack.c.bf16 %v689, %v688
        %v803 = vpack.c.bf16 %v691, %v690
        %v804 = vpack.c.bf16 %v693, %v692
        %v805 = vpack.c.bf16 %v695, %v694
        %v806 = vpack.c.bf16 %v697, %v696
        %v807 = vpack.c.bf16 %v699, %v698
        %v808 = vpack.c.bf16 %v701, %v700
        %v809 = vpack.c.bf16 %v703, %v702
        %v810 = vpack.c.bf16 %v705, %v704
        %v811 = vpack.c.bf16 %v707, %v706
        %v812 = vpack.c.bf16 %v709, %v708
        %v813 = vpack.c.bf16 %v711, %v710
        %v814 = vpack.c.bf16 %v713, %v712
        %v815 = vpack.c.bf16 %v715, %v714
        %v816 = vpack.c.bf16 %v717, %v716
        %v817 = vpack.c.bf16 %v719, %v718
        %v818 = vpack.c.bf16 %v721, %v720
        %v819 = vpack.c.bf16 %v723, %v722
        %v820 = vpack.c.bf16 %v725, %v724
        %v821 = vpack.c.bf16 %v727, %v726
        %v822 = vpack.c.bf16 %v729, %v728
        %v823 = vpack.c.bf16 %v731, %v730
        %v824 = vpack.c.bf16 %v733, %v732
        %v825 = vpack.c.bf16 %v735, %v734
        %v826 = vpack.c.bf16 %v737, %v736
        %v827 = vpack.c.bf16 %v739, %v738
        %v828 = vpack.c.bf16 %v741, %v740
        %v829 = vpack.c.bf16 %v743, %v742
        %v830 = vpack.c.bf16 %v745, %v744
        %v831 = vpack.c.bf16 %v747, %v746
        %v832 = vpack.c.bf16 %v749, %v748
        %v833 = vpack.c.bf16 %v751, %v750
        %v834 = vpack.c.bf16 %v753, %v752
        %v835 = vpack.c.bf16 %v755, %v754
        %v836 = vpack.c.bf16 %v757, %v756
        %v837 = vpack.c.bf16 %v759, %v758
        %v838 = vpack.c.bf16 %v761, %v760
        %v839 = vpack.c.bf16 %v763, %v762
        %v840 = vpack.c.bf16 %v765, %v764
        %v841 = vpack.c.bf16 %v767, %v766
        %v842 = vpack.c.bf16 %v769, %v768
        %v843 = vpack.c.bf16 %v771, %v770
        %v844 = vpack.c.bf16 %v773, %v772
        %v845 = vpack.c.bf16 %v775, %v774
        %v846 = vpack.c.bf16 %v777, %v776
        %v847 = vpack.c.bf16 %v779, %v778
        %v848 = vpack.c.bf16 %v781, %v780
        %v849 = vpack.c.bf16 %v783, %v782
        %v850 = vpack.c.bf16 %v785, %v784
        %v851 = vpack.c.bf16 %v787, %v786
        %v852 = vpack.c.bf16 %v405, %v404
        %v853 = vpack.c.bf16 %v407, %v406
        %v854 = vpack.c.bf16 %v409, %v408
        %v855 = vpack.c.bf16 %v411, %v410
        %v856 = vpack.c.bf16 %v413, %v412
        %v857 = vpack.c.bf16 %v415, %v414
        %v858 = vpack.c.bf16 %v417, %v416
        %v859 = vpack.c.bf16 %v419, %v418
        %v860 = vpack.c.bf16 %v421, %v420
        %v861 = vpack.c.bf16 %v423, %v422
        %v862 = vpack.c.bf16 %v425, %v424
        %v863 = vpack.c.bf16 %v427, %v426
        %v864 = vpack.c.bf16 %v429, %v428
        %v865 = vpack.c.bf16 %v431, %v430
        %v866 = vpack.c.bf16 %v433, %v432
        %v867 = vpack.c.bf16 %v435, %v434
        %v868 = vpack.c.bf16 %v437, %v436
        %v869 = vpack.c.bf16 %v439, %v438
        %v870 = vpack.c.bf16 %v441, %v440
        %v871 = vpack.c.bf16 %v443, %v442
        %v872 = vpack.c.bf16 %v445, %v444
        %v873 = vpack.c.bf16 %v447, %v446
        %v874 = vpack.c.bf16 %v449, %v448
        %v875 = vpack.c.bf16 %v451, %v450
        %v876 = vpack.c.bf16 %v453, %v452
        %v877 = vpack.c.bf16 %v455, %v454
        %v878 = vpack.c.bf16 %v457, %v456
        %v879 = vpack.c.bf16 %v459, %v458
        %v880 = vpack.c.bf16 %v461, %v460
        %v881 = vpack.c.bf16 %v463, %v462
        %v882 = vpack.c.bf16 %v465, %v464
        %v883 = vpack.c.bf16 %v467, %v466
        %v884 = vpack.c.bf16 %v469, %v468
        %v885 = vpack.c.bf16 %v471, %v470
        %v886 = vpack.c.bf16 %v473, %v472
        %v887 = vpack.c.bf16 %v475, %v474
        %v888 = vpack.c.bf16 %v477, %v476
        %v889 = vpack.c.bf16 %v479, %v478
        %v890 = vpack.c.bf16 %v481, %v480
        %v891 = vpack.c.bf16 %v483, %v482
        %v892 = vpack.c.bf16 %v485, %v484
        %v893 = vpack.c.bf16 %v487, %v486
        %v894 = vpack.c.bf16 %v489, %v488
        %v895 = vpack.c.bf16 %v491, %v490
        %v896 = vpack.c.bf16 %v493, %v492
        %v897 = vpack.c.bf16 %v495, %v494
        %v898 = vpack.c.bf16 %v497, %v496
        %v899 = vpack.c.bf16 %v499, %v498
        %v900 = vpack.c.bf16 %v501, %v500
        %v901 = vpack.c.bf16 %v503, %v502
        %v902 = vpack.c.bf16 %v505, %v504
        %v903 = vpack.c.bf16 %v507, %v506
        %v904 = vpack.c.bf16 %v509, %v508
        %v905 = vpack.c.bf16 %v511, %v510
        %v906 = vpack.c.bf16 %v513, %v512
        %v907 = vpack.c.bf16 %v515, %v514
        %v908 = vpack.c.bf16 %v517, %v516
        %v909 = vpack.c.bf16 %v519, %v518
        %v910 = vpack.c.bf16 %v521, %v520
        %v911 = vpack.c.bf16 %v523, %v522
        %v912 = vpack.c.bf16 %v525, %v524
        %v913 = vpack.c.bf16 %v527, %v526
        %v914 = vpack.c.bf16 %v529, %v528
        %v915 = vpack.c.bf16 %v531, %v530
        %916 = vmatprep.subr.bf16.mxu0 0
        %917 = vmatpush1.bf16.xpose.msra.mxu0 %v852
        %918 = vmatprep.subr.bf16.mxu0 0
        %919 = vmatpush1.bf16.xpose.msra.mxu0 %v853
        %920 = vmatprep.subr.bf16.mxu0 0
        %921 = vmatpush1.bf16.xpose.msra.mxu0 %v854
        %922 = vmatprep.subr.bf16.mxu0 0
        %923 = vmatpush1.bf16.xpose.msra.mxu0 %v855
        %924 = vmatprep.subr.bf16.mxu0 0
        %925 = vmatpush1.bf16.xpose.msra.mxu0 %v856
        %926 = vmatprep.subr.bf16.mxu0 0
        %927 = vmatpush1.bf16.xpose.msra.mxu0 %v857
        %928 = vmatprep.subr.bf16.mxu0 0
        %929 = vmatpush1.bf16.xpose.msra.mxu0 %v858
        %930 = vmatprep.subr.bf16.mxu0 0
        %931 = vmatpush1.bf16.xpose.msra.mxu0 %v859
        %932 = vmatprep.subr.bf16.mxu0 0
        %933 = vmatpush1.bf16.xpose.msra.mxu0 0
        %934 = vmatprep.subr.bf16.mxu0 0
        %935 = vmatpush1.bf16.xpose.msra.mxu0 0
        %936 = vmatprep.subr.bf16.mxu0 0
        %937 = vmatpush1.bf16.xpose.msra.mxu0 0
        %938 = vmatprep.subr.bf16.mxu0 0
        %939 = vmatpush1.bf16.xpose.msra.mxu0 0
        %940 = vmatprep.subr.bf16.mxu0 0
        %941 = vmatpush1.bf16.xpose.msra.mxu0 0
        %942 = vmatprep.subr.bf16.mxu0 0
        %943 = vmatpush1.bf16.xpose.msra.mxu0 0
        %944 = vmatprep.subr.bf16.mxu0 0
        %945 = vmatpush1.bf16.xpose.msra.mxu0 0
        %946 = vmatprep.subr.bf16.mxu0 0
        %947 = vmatpush1.bf16.xpose.msra.mxu0 0
        %948 = vmatprep.mubr.bf16.mxu0 0
        %949 = vmatmul.mubr.bf16.gmra.mrb[0].mxu0 %v788
        %v950 = vpop.f32.mrb[0].mxu0
        %v951 = vadd.f32 0.0, %v950
        %v952 = vpop.f32.mrb[0].mxu0
        %v953 = vpop.f32.mrb[0].mxu0
        %v954 = vadd.f32 0.0, %v953
        %v955 = vpop.f32.mrb[0].mxu0
        %956 = vmatprep.mubr.bf16.mxu0 0
        %957 = vmatmul.mubr.bf16.gmra.mrb[0].mxu0 %v789
        %v958 = vpop.f32.mrb[0].mxu0
        %v959 = vadd.f32 0.0, %v958
        %v960 = vpop.f32.mrb[0].mxu0
        %v961 = vpop.f32.mrb[0].mxu0
        %v962 = vadd.f32 0.0, %v961
        %v963 = vpop.f32.mrb[0].mxu0
        %964 = vmatprep.mubr.bf16.mxu0 0
        %965 = vmatmul.mubr.bf16.gmra.mrb[0].mxu0 %v790
        %v966 = vpop.f32.mrb[0].mxu0
        %v967 = vadd.f32 0.0, %v966
        %v968 = vpop.f32.mrb[0].mxu0
        %v969 = vpop.f32.mrb[0].mxu0
        %v970 = vadd.f32 0.0, %v969
        %v971 = vpop.f32.mrb[0].mxu0
        %972 = vmatprep.mubr.bf16.mxu0 0
        %973 = vmatmul.mubr.bf16.gmra.mrb[0].mxu0 %v791
        %v974 = vpop.f32.mrb[0].mxu0
        %v975 = vadd.f32 0.0, %v974
        %v976 = vpop.f32.mrb[0].mxu0
        %v977 = vpop.f32.mrb[0].mxu0
        %v978 = vadd.f32 0.0, %v977
        %v979 = vpop.f32.mrb[0].mxu0
        %980 = vmatprep.mubr.bf16.mxu0 0
        %981 = vmatmul.mubr.bf16.gmra.mrb[0].mxu0 %v792
        %v982 = vpop.f32.mrb[0].mxu0
        %v983 = vadd.f32 0.0, %v982
        %v984 = vpop.f32.mrb[0].mxu0
        %v985 = vpop.f32.mrb[0].mxu0
        %v986 = vadd.f32 0.0, %v985
        %v987 = vpop.f32.mrb[0].mxu0
        %988 = vmatprep.mubr.bf16.mxu0 0
        %989 = vmatmul.mubr.bf16.gmra.mrb[0].mxu0 %v793
        %v990 = vpop.f32.mrb[0].mxu0
        %v991 = vadd.f32 0.0, %v990
        %v992 = vpop.f32.mrb[0].mxu0
        %v993 = vpop.f32.mrb[0].mxu0
        %v994 = vadd.f32 0.0, %v993
        %v995 = vpop.f32.mrb[0].mxu0
        %996 = vmatprep.mubr.bf16.mxu0 0
        %997 = vmatmul.mubr.bf16.gmra.mrb[0].mxu0 %v794
        %v998 = vpop.f32.mrb[0].mxu0
        %v999 = vadd.f32 0.0, %v998
        %v1000 = vpop.f32.mrb[0].mxu0
        %v1001 = vpop.f32.mrb[0].mxu0
        %v1002 = vadd.f32 0.0, %v1001
        %v1003 = vpop.f32.mrb[0].mxu0
        %1004 = vmatprep.mubr.bf16.mxu0 0
        %1005 = vmatmul.mubr.bf16.gmra.mrb[0].mxu0 %v795
        %v1006 = vpop.f32.mrb[0].mxu0
        %v1007 = vadd.f32 0.0, %v1006
        %v1008 = vpop.f32.mrb[0].mxu0
        %v1009 = vpop.f32.mrb[0].mxu0
        %v1010 = vadd.f32 0.0, %v1009
        %v1011 = vpop.f32.mrb[0].mxu0
        %1012 = vdwg.mxu0
        %1013 = vmatprep.subr.bf16.mxu0 0
        %1014 = vmatpush1.bf16.xpose.msra.mxu0 %v860
        %1015 = vmatprep.subr.bf16.mxu0 0
        %1016 = vmatpush1.bf16.xpose.msra.mxu0 %v861
        %1017 = vmatprep.subr.bf16.mxu0 0
        %1018 = vmatpush1.bf16.xpose.msra.mxu0 %v862
        %1019 = vmatprep.subr.bf16.mxu0 0
        %1020 = vmatpush1.bf16.xpose.msra.mxu0 %v863
        %1021 = vmatprep.subr.bf16.mxu0 0
        %1022 = vmatpush1.bf16.xpose.msra.mxu0 %v864
        %1023 = vmatprep.subr.bf16.mxu0 0
        %1024 = vmatpush1.bf16.xpose.msra.mxu0 %v865
        %1025 = vmatprep.subr.bf16.mxu0 0
        %1026 = vmatpush1.bf16.xpose.msra.mxu0 %v866
        %1027 = vmatprep.subr.bf16.mxu0 0
        %1028 = vmatpush1.bf16.xpose.msra.mxu0 %v867
        %1029 = vmatprep.subr.bf16.mxu0 0
        %1030 = vmatpush1.bf16.xpose.msra.mxu0 0
        %1031 = vmatprep.subr.bf16.mxu0 0
        %1032 = vmatpush1.bf16.xpose.msra.mxu0 0
        %1033 = vmatprep.subr.bf16.mxu0 0
        %1034 = vmatpush1.bf16.xpose.msra.mxu0 0
        %1035 = vmatprep.subr.bf16.mxu0 0
        %1036 = vmatpush1.bf16.xpose.msra.mxu0 0
        %1037 = vmatprep.subr.bf16.mxu0 0
        %1038 = vmatpush1.bf16.xpose.msra.mxu0 0
        %1039 = vmatprep.subr.bf16.mxu0 0
        %1040 = vmatpush1.bf16.xpose.msra.mxu0 0
        %1041 = vmatprep.subr.bf16.mxu0 0
        %1042 = vmatpush1.bf16.xpose.msra.mxu0 0
        %1043 = vmatprep.subr.bf16.mxu0 0
        %1044 = vmatpush1.bf16.xpose.msra.mxu0 0
        %1045 = vmatprep.mubr.bf16.mxu0 0
        %1046 = vmatmul.mubr.bf16.gmra.mrb[0].mxu0 %v796
        %v1047 = vpop.f32.mrb[0].mxu0
        %v1048 = vadd.f32 0.0, %v1047
        %v1049 = vpop.f32.mrb[0].mxu0
        %v1050 = vpop.f32.mrb[0].mxu0
        %v1051 = vadd.f32 0.0, %v1050
        %v1052 = vpop.f32.mrb[0].mxu0
        %1053 = vmatprep.mubr.bf16.mxu0 0
        %1054 = vmatmul.mubr.bf16.gmra.mrb[0].mxu0 %v797
        %v1055 = vpop.f32.mrb[0].mxu0
        %v1056 = vadd.f32 0.0, %v1055
        %v1057 = vpop.f32.mrb[0].mxu0
        %v1058 = vpop.f32.mrb[0].mxu0
        %v1059 = vadd.f32 0.0, %v1058
        %v1060 = vpop.f32.mrb[0].mxu0
        %1061 = vmatprep.mubr.bf16.mxu0 0
        %1062 = vmatmul.mubr.bf16.gmra.mrb[0].mxu0 %v798
        %v1063 = vpop.f32.mrb[0].mxu0
        %v1064 = vadd.f32 0.0, %v1063
        %v1065 = vpop.f32.mrb[0].mxu0
        %v1066 = vpop.f32.mrb[0].mxu0
        %v1067 = vadd.f32 0.0, %v1066
        %v1068 = vpop.f32.mrb[0].mxu0
        %1069 = vmatprep.mubr.bf16.mxu0 0
        %1070 = vmatmul.mubr.bf16.gmra.mrb[0].mxu0 %v799
        %v1071 = vpop.f32.mrb[0].mxu0
        %v1072 = vadd.f32 0.0, %v1071
        %v1073 = vpop.f32.mrb[0].mxu0
        %v1074 = vpop.f32.mrb[0].mxu0
        %v1075 = vadd.f32 0.0, %v1074
        %v1076 = vpop.f32.mrb[0].mxu0
        %1077 = vmatprep.mubr.bf16.mxu0 0
        %1078 = vmatmul.mubr.bf16.gmra.mrb[0].mxu0 %v800
        %v1079 = vpop.f32.mrb[0].mxu0
        %v1080 = vadd.f32 0.0, %v1079
        %v1081 = vpop.f32.mrb[0].mxu0
        %v1082 = vpop.f32.mrb[0].mxu0
        %v1083 = vadd.f32 0.0, %v1082
        %v1084 = vpop.f32.mrb[0].mxu0
        %1085 = vmatprep.mubr.bf16.mxu0 0
        %1086 = vmatmul.mubr.bf16.gmra.mrb[0].mxu0 %v801
        %v1087 = vpop.f32.mrb[0].mxu0
        %v1088 = vadd.f32 0.0, %v1087
        %v1089 = vpop.f32.mrb[0].mxu0
        %v1090 = vpop.f32.mrb[0].mxu0
        %v1091 = vadd.f32 0.0, %v1090
        %v1092 = vpop.f32.mrb[0].mxu0
        %1093 = vmatprep.mubr.bf16.mxu0 0
        %1094 = vmatmul.mubr.bf16.gmra.mrb[0].mxu0 %v802
        %v1095 = vpop.f32.mrb[0].mxu0
        %v1096 = vadd.f32 0.0, %v1095
        %v1097 = vpop.f32.mrb[0].mxu0
        %v1098 = vpop.f32.mrb[0].mxu0
        %v1099 = vadd.f32 0.0, %v1098
        %v1100 = vpop.f32.mrb[0].mxu0
        %1101 = vmatprep.mubr.bf16.mxu0 0
        %1102 = vmatmul.mubr.bf16.gmra.mrb[0].mxu0 %v803
        %v1103 = vpop.f32.mrb[0].mxu0
        %v1104 = vadd.f32 0.0, %v1103
        %v1105 = vpop.f32.mrb[0].mxu0
        %v1106 = vpop.f32.mrb[0].mxu0
        %v1107 = vadd.f32 0.0, %v1106
        %v1108 = vpop.f32.mrb[0].mxu0
        %1109 = vdwg.mxu0
        %1110 = vmatprep.subr.bf16.mxu0 0
        %1111 = vmatpush1.bf16.xpose.msra.mxu0 %v868
        %1112 = vmatprep.subr.bf16.mxu0 0
        %1113 = vmatpush1.bf16.xpose.msra.mxu0 %v869
        %1114 = vmatprep.subr.bf16.mxu0 0
        %1115 = vmatpush1.bf16.xpose.msra.mxu0 %v870
        %1116 = vmatprep.subr.bf16.mxu0 0
        %1117 = vmatpush1.bf16.xpose.msra.mxu0 %v871
        %1118 = vmatprep.subr.bf16.mxu0 0
        %1119 = vmatpush1.bf16.xpose.msra.mxu0 %v872
        %1120 = vmatprep.subr.bf16.mxu0 0
        %1121 = vmatpush1.bf16.xpose.msra.mxu0 %v873
        %1122 = vmatprep.subr.bf16.mxu0 0
        %1123 = vmatpush1.bf16.xpose.msra.mxu0 %v874
        %1124 = vmatprep.subr.bf16.mxu0 0
        %1125 = vmatpush1.bf16.xpose.msra.mxu0 %v875
        %1126 = vmatprep.subr.bf16.mxu0 0
        %1127 = vmatpush1.bf16.xpose.msra.mxu0 0
        %1128 = vmatprep.subr.bf16.mxu0 0
        %1129 = vmatpush1.bf16.xpose.msra.mxu0 0
        %1130 = vmatprep.subr.bf16.mxu0 0
        %1131 = vmatpush1.bf16.xpose.msra.mxu0 0
        %1132 = vmatprep.subr.bf16.mxu0 0
        %1133 = vmatpush1.bf16.xpose.msra.mxu0 0
        %1134 = vmatprep.subr.bf16.mxu0 0
        %1135 = vmatpush1.bf16.xpose.msra.mxu0 0
        %1136 = vmatprep.subr.bf16.mxu0 0
        %1137 = vmatpush1.bf16.xpose.msra.mxu0 0
        %1138 = vmatprep.subr.bf16.mxu0 0
        %1139 = vmatpush1.bf16.xpose.msra.mxu0 0
        %1140 = vmatprep.subr.bf16.mxu0 0
        %1141 = vmatpush1.bf16.xpose.msra.mxu0 0
        %1142 = vmatprep.mubr.bf16.mxu0 0
        %1143 = vmatmul.mubr.bf16.gmra.mrb[0].mxu0 %v804
        %v1144 = vpop.f32.mrb[0].mxu0
        %v1145 = vadd.f32 0.0, %v1144
        %v1146 = vpop.f32.mrb[0].mxu0
        %v1147 = vpop.f32.mrb[0].mxu0
        %v1148 = vadd.f32 0.0, %v1147
        %v1149 = vpop.f32.mrb[0].mxu0
        %1150 = vmatprep.mubr.bf16.mxu0 0
        %1151 = vmatmul.mubr.bf16.gmra.mrb[0].mxu0 %v805
        %v1152 = vpop.f32.mrb[0].mxu0
        %v1153 = vadd.f32 0.0, %v1152
        %v1154 = vpop.f32.mrb[0].mxu0
        %v1155 = vpop.f32.mrb[0].mxu0
        %v1156 = vadd.f32 0.0, %v1155
        %v1157 = vpop.f32.mrb[0].mxu0
        %1158 = vmatprep.mubr.bf16.mxu0 0
        %1159 = vmatmul.mubr.bf16.gmra.mrb[0].mxu0 %v806
        %v1160 = vpop.f32.mrb[0].mxu0
        %v1161 = vadd.f32 0.0, %v1160
        %v1162 = vpop.f32.mrb[0].mxu0
        %v1163 = vpop.f32.mrb[0].mxu0
        %v1164 = vadd.f32 0.0, %v1163
        %v1165 = vpop.f32.mrb[0].mxu0
        %1166 = vmatprep.mubr.bf16.mxu0 0
        %1167 = vmatmul.mubr.bf16.gmra.mrb[0].mxu0 %v807
        %v1168 = vpop.f32.mrb[0].mxu0
        %v1169 = vadd.f32 0.0, %v1168
        %v1170 = vpop.f32.mrb[0].mxu0
        %v1171 = vpop.f32.mrb[0].mxu0
        %v1172 = vadd.f32 0.0, %v1171
        %v1173 = vpop.f32.mrb[0].mxu0
        %1174 = vmatprep.mubr.bf16.mxu0 0
        %1175 = vmatmul.mubr.bf16.gmra.mrb[0].mxu0 %v808
        %v1176 = vpop.f32.mrb[0].mxu0
        %v1177 = vadd.f32 0.0, %v1176
        %v1178 = vpop.f32.mrb[0].mxu0
        %v1179 = vpop.f32.mrb[0].mxu0
        %v1180 = vadd.f32 0.0, %v1179
        %v1181 = vpop.f32.mrb[0].mxu0
        %1182 = vmatprep.mubr.bf16.mxu0 0
        %1183 = vmatmul.mubr.bf16.gmra.mrb[0].mxu0 %v809
        %v1184 = vpop.f32.mrb[0].mxu0
        %v1185 = vadd.f32 0.0, %v1184
        %v1186 = vpop.f32.mrb[0].mxu0
        %v1187 = vpop.f32.mrb[0].mxu0
        %v1188 = vadd.f32 0.0, %v1187
        %v1189 = vpop.f32.mrb[0].mxu0
        %1190 = vmatprep.mubr.bf16.mxu0 0
        %1191 = vmatmul.mubr.bf16.gmra.mrb[0].mxu0 %v810
        %v1192 = vpop.f32.mrb[0].mxu0
        %v1193 = vadd.f32 0.0, %v1192
        %v1194 = vpop.f32.mrb[0].mxu0
        %v1195 = vpop.f32.mrb[0].mxu0
        %v1196 = vadd.f32 0.0, %v1195
        %v1197 = vpop.f32.mrb[0].mxu0
        %1198 = vmatprep.mubr.bf16.mxu0 0
        %1199 = vmatmul.mubr.bf16.gmra.mrb[0].mxu0 %v811
        %v1200 = vpop.f32.mrb[0].mxu0
        %v1201 = vadd.f32 0.0, %v1200
        %v1202 = vpop.f32.mrb[0].mxu0
        %v1203 = vpop.f32.mrb[0].mxu0
        %v1204 = vadd.f32 0.0, %v1203
        %v1205 = vpop.f32.mrb[0].mxu0
        %1206 = vdwg.mxu0
        %1207 = vmatprep.subr.bf16.mxu0 0
        %1208 = vmatpush1.bf16.xpose.msra.mxu0 %v876
        %1209 = vmatprep.subr.bf16.mxu0 0
        %1210 = vmatpush1.bf16.xpose.msra.mxu0 %v877
        %1211 = vmatprep.subr.bf16.mxu0 0
        %1212 = vmatpush1.bf16.xpose.msra.mxu0 %v878
        %1213 = vmatprep.subr.bf16.mxu0 0
        %1214 = vmatpush1.bf16.xpose.msra.mxu0 %v879
        %1215 = vmatprep.subr.bf16.mxu0 0
        %1216 = vmatpush1.bf16.xpose.msra.mxu0 %v880
        %1217 = vmatprep.subr.bf16.mxu0 0
        %1218 = vmatpush1.bf16.xpose.msra.mxu0 %v881
        %1219 = vmatprep.subr.bf16.mxu0 0
        %1220 = vmatpush1.bf16.xpose.msra.mxu0 %v882
        %1221 = vmatprep.subr.bf16.mxu0 0
        %1222 = vmatpush1.bf16.xpose.msra.mxu0 %v883
        %1223 = vmatprep.subr.bf16.mxu0 0
        %1224 = vmatpush1.bf16.xpose.msra.mxu0 0
        %1225 = vmatprep.subr.bf16.mxu0 0
        %1226 = vmatpush1.bf16.xpose.msra.mxu0 0
        %1227 = vmatprep.subr.bf16.mxu0 0
        %1228 = vmatpush1.bf16.xpose.msra.mxu0 0
        %1229 = vmatprep.subr.bf16.mxu0 0
        %1230 = vmatpush1.bf16.xpose.msra.mxu0 0
        %1231 = vmatprep.subr.bf16.mxu0 0
        %1232 = vmatpush1.bf16.xpose.msra.mxu0 0
        %1233 = vmatprep.subr.bf16.mxu0 0
        %1234 = vmatpush1.bf16.xpose.msra.mxu0 0
        %1235 = vmatprep.subr.bf16.mxu0 0
        %1236 = vmatpush1.bf16.xpose.msra.mxu0 0
        %1237 = vmatprep.subr.bf16.mxu0 0
        %1238 = vmatpush1.bf16.xpose.msra.mxu0 0
        %1239 = vmatprep.mubr.bf16.mxu0 0
        %1240 = vmatmul.mubr.bf16.gmra.mrb[0].mxu0 %v812
        %v1241 = vpop.f32.mrb[0].mxu0
        %v1242 = vadd.f32 0.0, %v1241
        %v1243 = vpop.f32.mrb[0].mxu0
        %v1244 = vpop.f32.mrb[0].mxu0
        %v1245 = vadd.f32 0.0, %v1244
        %v1246 = vpop.f32.mrb[0].mxu0
        %1247 = vmatprep.mubr.bf16.mxu0 0
        %1248 = vmatmul.mubr.bf16.gmra.mrb[0].mxu0 %v813
        %v1249 = vpop.f32.mrb[0].mxu0
        %v1250 = vadd.f32 0.0, %v1249
        %v1251 = vpop.f32.mrb[0].mxu0
        %v1252 = vpop.f32.mrb[0].mxu0
        %v1253 = vadd.f32 0.0, %v1252
        %v1254 = vpop.f32.mrb[0].mxu0
        %1255 = vmatprep.mubr.bf16.mxu0 0
        %1256 = vmatmul.mubr.bf16.gmra.mrb[0].mxu0 %v814
        %v1257 = vpop.f32.mrb[0].mxu0
        %v1258 = vadd.f32 0.0, %v1257
        %v1259 = vpop.f32.mrb[0].mxu0
        %v1260 = vpop.f32.mrb[0].mxu0
        %v1261 = vadd.f32 0.0, %v1260
        %v1262 = vpop.f32.mrb[0].mxu0
        %1263 = vmatprep.mubr.bf16.mxu0 0
        %1264 = vmatmul.mubr.bf16.gmra.mrb[0].mxu0 %v815
        %v1265 = vpop.f32.mrb[0].mxu0
        %v1266 = vadd.f32 0.0, %v1265
        %v1267 = vpop.f32.mrb[0].mxu0
        %v1268 = vpop.f32.mrb[0].mxu0
        %v1269 = vadd.f32 0.0, %v1268
        %v1270 = vpop.f32.mrb[0].mxu0
        %1271 = vmatprep.mubr.bf16.mxu0 0
        %1272 = vmatmul.mubr.bf16.gmra.mrb[0].mxu0 %v816
        %v1273 = vpop.f32.mrb[0].mxu0
        %v1274 = vadd.f32 0.0, %v1273
        %v1275 = vpop.f32.mrb[0].mxu0
        %v1276 = vpop.f32.mrb[0].mxu0
        %v1277 = vadd.f32 0.0, %v1276
        %v1278 = vpop.f32.mrb[0].mxu0
        %1279 = vmatprep.mubr.bf16.mxu0 0
        %1280 = vmatmul.mubr.bf16.gmra.mrb[0].mxu0 %v817
        %v1281 = vpop.f32.mrb[0].mxu0
        %v1282 = vadd.f32 0.0, %v1281
        %v1283 = vpop.f32.mrb[0].mxu0
        %v1284 = vpop.f32.mrb[0].mxu0
        %v1285 = vadd.f32 0.0, %v1284
        %v1286 = vpop.f32.mrb[0].mxu0
        %1287 = vmatprep.mubr.bf16.mxu0 0
        %1288 = vmatmul.mubr.bf16.gmra.mrb[0].mxu0 %v818
        %v1289 = vpop.f32.mrb[0].mxu0
        %v1290 = vadd.f32 0.0, %v1289
        %v1291 = vpop.f32.mrb[0].mxu0
        %v1292 = vpop.f32.mrb[0].mxu0
        %v1293 = vadd.f32 0.0, %v1292
        %v1294 = vpop.f32.mrb[0].mxu0
        %1295 = vmatprep.mubr.bf16.mxu0 0
        %1296 = vmatmul.mubr.bf16.gmra.mrb[0].mxu0 %v819
        %v1297 = vpop.f32.mrb[0].mxu0
        %v1298 = vadd.f32 0.0, %v1297
        %v1299 = vpop.f32.mrb[0].mxu0
        %v1300 = vpop.f32.mrb[0].mxu0
        %v1301 = vadd.f32 0.0, %v1300
        %v1302 = vpop.f32.mrb[0].mxu0
        %1303 = vdwg.mxu0
        %1304 = vmatprep.subr.bf16.mxu0 0
        %1305 = vmatpush1.bf16.xpose.msra.mxu0 %v884
        %1306 = vmatprep.subr.bf16.mxu0 0
        %1307 = vmatpush1.bf16.xpose.msra.mxu0 %v885
        %1308 = vmatprep.subr.bf16.mxu0 0
        %1309 = vmatpush1.bf16.xpose.msra.mxu0 %v886
        %1310 = vmatprep.subr.bf16.mxu0 0
        %1311 = vmatpush1.bf16.xpose.msra.mxu0 %v887
        %1312 = vmatprep.subr.bf16.mxu0 0
        %1313 = vmatpush1.bf16.xpose.msra.mxu0 %v888
        %1314 = vmatprep.subr.bf16.mxu0 0
        %1315 = vmatpush1.bf16.xpose.msra.mxu0 %v889
        %1316 = vmatprep.subr.bf16.mxu0 0
        %1317 = vmatpush1.bf16.xpose.msra.mxu0 %v890
        %1318 = vmatprep.subr.bf16.mxu0 0
        %1319 = vmatpush1.bf16.xpose.msra.mxu0 %v891
        %1320 = vmatprep.subr.bf16.mxu0 0
        %1321 = vmatpush1.bf16.xpose.msra.mxu0 0
        %1322 = vmatprep.subr.bf16.mxu0 0
        %1323 = vmatpush1.bf16.xpose.msra.mxu0 0
        %1324 = vmatprep.subr.bf16.mxu0 0
        %1325 = vmatpush1.bf16.xpose.msra.mxu0 0
        %1326 = vmatprep.subr.bf16.mxu0 0
        %1327 = vmatpush1.bf16.xpose.msra.mxu0 0
        %1328 = vmatprep.subr.bf16.mxu0 0
        %1329 = vmatpush1.bf16.xpose.msra.mxu0 0
        %1330 = vmatprep.subr.bf16.mxu0 0
        %1331 = vmatpush1.bf16.xpose.msra.mxu0 0
        %1332 = vmatprep.subr.bf16.mxu0 0
        %1333 = vmatpush1.bf16.xpose.msra.mxu0 0
        %1334 = vmatprep.subr.bf16.mxu0 0
        %1335 = vmatpush1.bf16.xpose.msra.mxu0 0
        %1336 = vmatprep.mubr.bf16.mxu0 0
        %1337 = vmatmul.mubr.bf16.gmra.mrb[0].mxu0 %v820
        %v1338 = vpop.f32.mrb[0].mxu0
        %v1339 = vadd.f32 0.0, %v1338
        %v1340 = vpop.f32.mrb[0].mxu0
        %v1341 = vpop.f32.mrb[0].mxu0
        %v1342 = vadd.f32 0.0, %v1341
        %v1343 = vpop.f32.mrb[0].mxu0
        %1344 = vmatprep.mubr.bf16.mxu0 0
        %1345 = vmatmul.mubr.bf16.gmra.mrb[0].mxu0 %v821
        %v1346 = vpop.f32.mrb[0].mxu0
        %v1347 = vadd.f32 0.0, %v1346
        %v1348 = vpop.f32.mrb[0].mxu0
        %v1349 = vpop.f32.mrb[0].mxu0
        %v1350 = vadd.f32 0.0, %v1349
        %v1351 = vpop.f32.mrb[0].mxu0
        %1352 = vmatprep.mubr.bf16.mxu0 0
        %1353 = vmatmul.mubr.bf16.gmra.mrb[0].mxu0 %v822
        %v1354 = vpop.f32.mrb[0].mxu0
        %v1355 = vadd.f32 0.0, %v1354
        %v1356 = vpop.f32.mrb[0].mxu0
        %v1357 = vpop.f32.mrb[0].mxu0
        %v1358 = vadd.f32 0.0, %v1357
        %v1359 = vpop.f32.mrb[0].mxu0
        %1360 = vmatprep.mubr.bf16.mxu0 0
        %1361 = vmatmul.mubr.bf16.gmra.mrb[0].mxu0 %v823
        %v1362 = vpop.f32.mrb[0].mxu0
        %v1363 = vadd.f32 0.0, %v1362
        %v1364 = vpop.f32.mrb[0].mxu0
        %v1365 = vpop.f32.mrb[0].mxu0
        %v1366 = vadd.f32 0.0, %v1365
        %v1367 = vpop.f32.mrb[0].mxu0
        %1368 = vmatprep.mubr.bf16.mxu0 0
        %1369 = vmatmul.mubr.bf16.gmra.mrb[0].mxu0 %v824
        %v1370 = vpop.f32.mrb[0].mxu0
        %v1371 = vadd.f32 0.0, %v1370
        %v1372 = vpop.f32.mrb[0].mxu0
        %v1373 = vpop.f32.mrb[0].mxu0
        %v1374 = vadd.f32 0.0, %v1373
        %v1375 = vpop.f32.mrb[0].mxu0
        %1376 = vmatprep.mubr.bf16.mxu0 0
        %1377 = vmatmul.mubr.bf16.gmra.mrb[0].mxu0 %v825
        %v1378 = vpop.f32.mrb[0].mxu0
        %v1379 = vadd.f32 0.0, %v1378
        %v1380 = vpop.f32.mrb[0].mxu0
        %v1381 = vpop.f32.mrb[0].mxu0
        %v1382 = vadd.f32 0.0, %v1381
        %v1383 = vpop.f32.mrb[0].mxu0
        %1384 = vmatprep.mubr.bf16.mxu0 0
        %1385 = vmatmul.mubr.bf16.gmra.mrb[0].mxu0 %v826
        %v1386 = vpop.f32.mrb[0].mxu0
        %v1387 = vadd.f32 0.0, %v1386
        %v1388 = vpop.f32.mrb[0].mxu0
        %v1389 = vpop.f32.mrb[0].mxu0
        %v1390 = vadd.f32 0.0, %v1389
        %v1391 = vpop.f32.mrb[0].mxu0
        %1392 = vmatprep.mubr.bf16.mxu0 0
        %1393 = vmatmul.mubr.bf16.gmra.mrb[0].mxu0 %v827
        %v1394 = vpop.f32.mrb[0].mxu0
        %v1395 = vadd.f32 0.0, %v1394
        %v1396 = vpop.f32.mrb[0].mxu0
        %v1397 = vpop.f32.mrb[0].mxu0
        %v1398 = vadd.f32 0.0, %v1397
        %v1399 = vpop.f32.mrb[0].mxu0
        %1400 = vdwg.mxu0
        %1401 = vmatprep.subr.bf16.mxu0 0
        %1402 = vmatpush1.bf16.xpose.msra.mxu0 %v892
        %1403 = vmatprep.subr.bf16.mxu0 0
        %1404 = vmatpush1.bf16.xpose.msra.mxu0 %v893
        %1405 = vmatprep.subr.bf16.mxu0 0
        %1406 = vmatpush1.bf16.xpose.msra.mxu0 %v894
        %1407 = vmatprep.subr.bf16.mxu0 0
        %1408 = vmatpush1.bf16.xpose.msra.mxu0 %v895
        %1409 = vmatprep.subr.bf16.mxu0 0
        %1410 = vmatpush1.bf16.xpose.msra.mxu0 %v896
        %1411 = vmatprep.subr.bf16.mxu0 0
        %1412 = vmatpush1.bf16.xpose.msra.mxu0 %v897
        %1413 = vmatprep.subr.bf16.mxu0 0
        %1414 = vmatpush1.bf16.xpose.msra.mxu0 %v898
        %1415 = vmatprep.subr.bf16.mxu0 0
        %1416 = vmatpush1.bf16.xpose.msra.mxu0 %v899
        %1417 = vmatprep.subr.bf16.mxu0 0
        %1418 = vmatpush1.bf16.xpose.msra.mxu0 0
        %1419 = vmatprep.subr.bf16.mxu0 0
        %1420 = vmatpush1.bf16.xpose.msra.mxu0 0
        %1421 = vmatprep.subr.bf16.mxu0 0
        %1422 = vmatpush1.bf16.xpose.msra.mxu0 0
        %1423 = vmatprep.subr.bf16.mxu0 0
        %1424 = vmatpush1.bf16.xpose.msra.mxu0 0
        %1425 = vmatprep.subr.bf16.mxu0 0
        %1426 = vmatpush1.bf16.xpose.msra.mxu0 0
        %1427 = vmatprep.subr.bf16.mxu0 0
        %1428 = vmatpush1.bf16.xpose.msra.mxu0 0
        %1429 = vmatprep.subr.bf16.mxu0 0
        %1430 = vmatpush1.bf16.xpose.msra.mxu0 0
        %1431 = vmatprep.subr.bf16.mxu0 0
        %1432 = vmatpush1.bf16.xpose.msra.mxu0 0
        %1433 = vmatprep.mubr.bf16.mxu0 0
        %1434 = vmatmul.mubr.bf16.gmra.mrb[0].mxu0 %v828
        %v1435 = vpop.f32.mrb[0].mxu0
        %v1436 = vadd.f32 0.0, %v1435
        %v1437 = vpop.f32.mrb[0].mxu0
        %v1438 = vpop.f32.mrb[0].mxu0
        %v1439 = vadd.f32 0.0, %v1438
        %v1440 = vpop.f32.mrb[0].mxu0
        %1441 = vmatprep.mubr.bf16.mxu0 0
        %1442 = vmatmul.mubr.bf16.gmra.mrb[0].mxu0 %v829
        %v1443 = vpop.f32.mrb[0].mxu0
        %v1444 = vadd.f32 0.0, %v1443
        %v1445 = vpop.f32.mrb[0].mxu0
        %v1446 = vpop.f32.mrb[0].mxu0
        %v1447 = vadd.f32 0.0, %v1446
        %v1448 = vpop.f32.mrb[0].mxu0
        %1449 = vmatprep.mubr.bf16.mxu0 0
        %1450 = vmatmul.mubr.bf16.gmra.mrb[0].mxu0 %v830
        %v1451 = vpop.f32.mrb[0].mxu0
        %v1452 = vadd.f32 0.0, %v1451
        %v1453 = vpop.f32.mrb[0].mxu0
        %v1454 = vpop.f32.mrb[0].mxu0
        %v1455 = vadd.f32 0.0, %v1454
        %v1456 = vpop.f32.mrb[0].mxu0
        %1457 = vmatprep.mubr.bf16.mxu0 0
        %1458 = vmatmul.mubr.bf16.gmra.mrb[0].mxu0 %v831
        %v1459 = vpop.f32.mrb[0].mxu0
        %v1460 = vadd.f32 0.0, %v1459
        %v1461 = vpop.f32.mrb[0].mxu0
        %v1462 = vpop.f32.mrb[0].mxu0
        %v1463 = vadd.f32 0.0, %v1462
        %v1464 = vpop.f32.mrb[0].mxu0
        %1465 = vmatprep.mubr.bf16.mxu0 0
        %1466 = vmatmul.mubr.bf16.gmra.mrb[0].mxu0 %v832
        %v1467 = vpop.f32.mrb[0].mxu0
        %v1468 = vadd.f32 0.0, %v1467
        %v1469 = vpop.f32.mrb[0].mxu0
        %v1470 = vpop.f32.mrb[0].mxu0
        %v1471 = vadd.f32 0.0, %v1470
        %v1472 = vpop.f32.mrb[0].mxu0
        %1473 = vmatprep.mubr.bf16.mxu0 0
        %1474 = vmatmul.mubr.bf16.gmra.mrb[0].mxu0 %v833
        %v1475 = vpop.f32.mrb[0].mxu0
        %v1476 = vadd.f32 0.0, %v1475
        %v1477 = vpop.f32.mrb[0].mxu0
        %v1478 = vpop.f32.mrb[0].mxu0
        %v1479 = vadd.f32 0.0, %v1478
        %v1480 = vpop.f32.mrb[0].mxu0
        %1481 = vmatprep.mubr.bf16.mxu0 0
        %1482 = vmatmul.mubr.bf16.gmra.mrb[0].mxu0 %v834
        %v1483 = vpop.f32.mrb[0].mxu0
        %v1484 = vadd.f32 0.0, %v1483
        %v1485 = vpop.f32.mrb[0].mxu0
        %v1486 = vpop.f32.mrb[0].mxu0
        %v1487 = vadd.f32 0.0, %v1486
        %v1488 = vpop.f32.mrb[0].mxu0
        %1489 = vmatprep.mubr.bf16.mxu0 0
        %1490 = vmatmul.mubr.bf16.gmra.mrb[0].mxu0 %v835
        %v1491 = vpop.f32.mrb[0].mxu0
        %v1492 = vadd.f32 0.0, %v1491
        %v1493 = vpop.f32.mrb[0].mxu0
        %v1494 = vpop.f32.mrb[0].mxu0
        %v1495 = vadd.f32 0.0, %v1494
        %v1496 = vpop.f32.mrb[0].mxu0
        %1497 = vdwg.mxu0
        %1498 = vmatprep.subr.bf16.mxu0 0
        %1499 = vmatpush1.bf16.xpose.msra.mxu0 %v900
        %1500 = vmatprep.subr.bf16.mxu0 0
        %1501 = vmatpush1.bf16.xpose.msra.mxu0 %v901
        %1502 = vmatprep.subr.bf16.mxu0 0
        %1503 = vmatpush1.bf16.xpose.msra.mxu0 %v902
        %1504 = vmatprep.subr.bf16.mxu0 0
        %1505 = vmatpush1.bf16.xpose.msra.mxu0 %v903
        %1506 = vmatprep.subr.bf16.mxu0 0
        %1507 = vmatpush1.bf16.xpose.msra.mxu0 %v904
        %1508 = vmatprep.subr.bf16.mxu0 0
        %1509 = vmatpush1.bf16.xpose.msra.mxu0 %v905
        %1510 = vmatprep.subr.bf16.mxu0 0
        %1511 = vmatpush1.bf16.xpose.msra.mxu0 %v906
        %1512 = vmatprep.subr.bf16.mxu0 0
        %1513 = vmatpush1.bf16.xpose.msra.mxu0 %v907
        %1514 = vmatprep.subr.bf16.mxu0 0
        %1515 = vmatpush1.bf16.xpose.msra.mxu0 0
        %1516 = vmatprep.subr.bf16.mxu0 0
        %1517 = vmatpush1.bf16.xpose.msra.mxu0 0
        %1518 = vmatprep.subr.bf16.mxu0 0
        %1519 = vmatpush1.bf16.xpose.msra.mxu0 0
        %1520 = vmatprep.subr.bf16.mxu0 0
        %1521 = vmatpush1.bf16.xpose.msra.mxu0 0
        %1522 = vmatprep.subr.bf16.mxu0 0
        %1523 = vmatpush1.bf16.xpose.msra.mxu0 0
        %1524 = vmatprep.subr.bf16.mxu0 0
        %1525 = vmatpush1.bf16.xpose.msra.mxu0 0
        %1526 = vmatprep.subr.bf16.mxu0 0
        %1527 = vmatpush1.bf16.xpose.msra.mxu0 0
        %1528 = vmatprep.subr.bf16.mxu0 0
        %1529 = vmatpush1.bf16.xpose.msra.mxu0 0
        %1530 = vmatprep.mubr.bf16.mxu0 0
        %1531 = vmatmul.mubr.bf16.gmra.mrb[0].mxu0 %v836
        %v1532 = vpop.f32.mrb[0].mxu0
        %v1533 = vadd.f32 0.0, %v1532
        %v1534 = vpop.f32.mrb[0].mxu0
        %v1535 = vpop.f32.mrb[0].mxu0
        %v1536 = vadd.f32 0.0, %v1535
        %v1537 = vpop.f32.mrb[0].mxu0
        %1538 = vmatprep.mubr.bf16.mxu0 0
        %1539 = vmatmul.mubr.bf16.gmra.mrb[0].mxu0 %v837
        %v1540 = vpop.f32.mrb[0].mxu0
        %v1541 = vadd.f32 0.0, %v1540
        %v1542 = vpop.f32.mrb[0].mxu0
        %v1543 = vpop.f32.mrb[0].mxu0
        %v1544 = vadd.f32 0.0, %v1543
        %v1545 = vpop.f32.mrb[0].mxu0
        %1546 = vmatprep.mubr.bf16.mxu0 0
        %1547 = vmatmul.mubr.bf16.gmra.mrb[0].mxu0 %v838
        %v1548 = vpop.f32.mrb[0].mxu0
        %v1549 = vadd.f32 0.0, %v1548
        %v1550 = vpop.f32.mrb[0].mxu0
        %v1551 = vpop.f32.mrb[0].mxu0
        %v1552 = vadd.f32 0.0, %v1551
        %v1553 = vpop.f32.mrb[0].mxu0
        %1554 = vmatprep.mubr.bf16.mxu0 0
        %1555 = vmatmul.mubr.bf16.gmra.mrb[0].mxu0 %v839
        %v1556 = vpop.f32.mrb[0].mxu0
        %v1557 = vadd.f32 0.0, %v1556
        %v1558 = vpop.f32.mrb[0].mxu0
        %v1559 = vpop.f32.mrb[0].mxu0
        %v1560 = vadd.f32 0.0, %v1559
        %v1561 = vpop.f32.mrb[0].mxu0
        %1562 = vmatprep.mubr.bf16.mxu0 0
        %1563 = vmatmul.mubr.bf16.gmra.mrb[0].mxu0 %v840
        %v1564 = vpop.f32.mrb[0].mxu0
        %v1565 = vadd.f32 0.0, %v1564
        %v1566 = vpop.f32.mrb[0].mxu0
        %v1567 = vpop.f32.mrb[0].mxu0
        %v1568 = vadd.f32 0.0, %v1567
        %v1569 = vpop.f32.mrb[0].mxu0
        %1570 = vmatprep.mubr.bf16.mxu0 0
        %1571 = vmatmul.mubr.bf16.gmra.mrb[0].mxu0 %v841
        %v1572 = vpop.f32.mrb[0].mxu0
        %v1573 = vadd.f32 0.0, %v1572
        %v1574 = vpop.f32.mrb[0].mxu0
        %v1575 = vpop.f32.mrb[0].mxu0
        %v1576 = vadd.f32 0.0, %v1575
        %v1577 = vpop.f32.mrb[0].mxu0
        %1578 = vmatprep.mubr.bf16.mxu0 0
        %1579 = vmatmul.mubr.bf16.gmra.mrb[0].mxu0 %v842
        %v1580 = vpop.f32.mrb[0].mxu0
        %v1581 = vadd.f32 0.0, %v1580
        %v1582 = vpop.f32.mrb[0].mxu0
        %v1583 = vpop.f32.mrb[0].mxu0
        %v1584 = vadd.f32 0.0, %v1583
        %v1585 = vpop.f32.mrb[0].mxu0
        %1586 = vmatprep.mubr.bf16.mxu0 0
        %1587 = vmatmul.mubr.bf16.gmra.mrb[0].mxu0 %v843
        %v1588 = vpop.f32.mrb[0].mxu0
        %v1589 = vadd.f32 0.0, %v1588
        %v1590 = vpop.f32.mrb[0].mxu0
        %v1591 = vpop.f32.mrb[0].mxu0
        %v1592 = vadd.f32 0.0, %v1591
        %v1593 = vpop.f32.mrb[0].mxu0
        %1594 = vdwg.mxu0
        %1595 = vmatprep.subr.bf16.mxu0 0
        %1596 = vmatpush1.bf16.xpose.msra.mxu0 %v908
        %1597 = vmatprep.subr.bf16.mxu0 0
        %1598 = vmatpush1.bf16.xpose.msra.mxu0 %v909
        %1599 = vmatprep.subr.bf16.mxu0 0
        %1600 = vmatpush1.bf16.xpose.msra.mxu0 %v910
        %1601 = vmatprep.subr.bf16.mxu0 0
        %1602 = vmatpush1.bf16.xpose.msra.mxu0 %v911
        %1603 = vmatprep.subr.bf16.mxu0 0
        %1604 = vmatpush1.bf16.xpose.msra.mxu0 %v912
        %1605 = vmatprep.subr.bf16.mxu0 0
        %1606 = vmatpush1.bf16.xpose.msra.mxu0 %v913
        %1607 = vmatprep.subr.bf16.mxu0 0
        %1608 = vmatpush1.bf16.xpose.msra.mxu0 %v914
        %1609 = vmatprep.subr.bf16.mxu0 0
        %1610 = vmatpush1.bf16.xpose.msra.mxu0 %v915
        %1611 = vmatprep.subr.bf16.mxu0 0
        %1612 = vmatpush1.bf16.xpose.msra.mxu0 0
        %1613 = vmatprep.subr.bf16.mxu0 0
        %1614 = vmatpush1.bf16.xpose.msra.mxu0 0
        %1615 = vmatprep.subr.bf16.mxu0 0
        %1616 = vmatpush1.bf16.xpose.msra.mxu0 0
        %1617 = vmatprep.subr.bf16.mxu0 0
        %1618 = vmatpush1.bf16.xpose.msra.mxu0 0
        %1619 = vmatprep.subr.bf16.mxu0 0
        %1620 = vmatpush1.bf16.xpose.msra.mxu0 0
        %1621 = vmatprep.subr.bf16.mxu0 0
        %1622 = vmatpush1.bf16.xpose.msra.mxu0 0
        %1623 = vmatprep.subr.bf16.mxu0 0
        %1624 = vmatpush1.bf16.xpose.msra.mxu0 0
        %1625 = vmatprep.subr.bf16.mxu0 0
        %1626 = vmatpush1.bf16.xpose.msra.mxu0 0
        %1627 = vmatprep.mubr.bf16.mxu0 0
        %1628 = vmatmul.mubr.bf16.gmra.mrb[0].mxu0 %v844
        %v1629 = vpop.f32.mrb[0].mxu0
        %v1630 = vadd.f32 0.0, %v1629
        %v1631 = vpop.f32.mrb[0].mxu0
        %v1632 = vpop.f32.mrb[0].mxu0
        %v1633 = vadd.f32 0.0, %v1632
        %v1634 = vpop.f32.mrb[0].mxu0
        %1635 = vmatprep.mubr.bf16.mxu0 0
        %1636 = vmatmul.mubr.bf16.gmra.mrb[0].mxu0 %v845
        %v1637 = vpop.f32.mrb[0].mxu0
        %v1638 = vadd.f32 0.0, %v1637
        %v1639 = vpop.f32.mrb[0].mxu0
        %v1640 = vpop.f32.mrb[0].mxu0
        %v1641 = vadd.f32 0.0, %v1640
        %v1642 = vpop.f32.mrb[0].mxu0
        %1643 = vmatprep.mubr.bf16.mxu0 0
        %1644 = vmatmul.mubr.bf16.gmra.mrb[0].mxu0 %v846
        %v1645 = vpop.f32.mrb[0].mxu0
        %v1646 = vadd.f32 0.0, %v1645
        %v1647 = vpop.f32.mrb[0].mxu0
        %v1648 = vpop.f32.mrb[0].mxu0
        %v1649 = vadd.f32 0.0, %v1648
        %v1650 = vpop.f32.mrb[0].mxu0
        %1651 = vmatprep.mubr.bf16.mxu0 0
        %1652 = vmatmul.mubr.bf16.gmra.mrb[0].mxu0 %v847
        %v1653 = vpop.f32.mrb[0].mxu0
        %v1654 = vadd.f32 0.0, %v1653
        %v1655 = vpop.f32.mrb[0].mxu0
        %v1656 = vpop.f32.mrb[0].mxu0
        %v1657 = vadd.f32 0.0, %v1656
        %v1658 = vpop.f32.mrb[0].mxu0
        %1659 = vmatprep.mubr.bf16.mxu0 0
        %1660 = vmatmul.mubr.bf16.gmra.mrb[0].mxu0 %v848
        %v1661 = vpop.f32.mrb[0].mxu0
        %v1662 = vadd.f32 0.0, %v1661
        %v1663 = vpop.f32.mrb[0].mxu0
        %v1664 = vpop.f32.mrb[0].mxu0
        %v1665 = vadd.f32 0.0, %v1664
        %v1666 = vpop.f32.mrb[0].mxu0
        %1667 = vmatprep.mubr.bf16.mxu0 0
        %1668 = vmatmul.mubr.bf16.gmra.mrb[0].mxu0 %v849
        %v1669 = vpop.f32.mrb[0].mxu0
        %v1670 = vadd.f32 0.0, %v1669
        %v1671 = vpop.f32.mrb[0].mxu0
        %v1672 = vpop.f32.mrb[0].mxu0
        %v1673 = vadd.f32 0.0, %v1672
        %v1674 = vpop.f32.mrb[0].mxu0
        %1675 = vmatprep.mubr.bf16.mxu0 0
        %1676 = vmatmul.mubr.bf16.gmra.mrb[0].mxu0 %v850
        %v1677 = vpop.f32.mrb[0].mxu0
        %v1678 = vadd.f32 0.0, %v1677
        %v1679 = vpop.f32.mrb[0].mxu0
        %v1680 = vpop.f32.mrb[0].mxu0
        %v1681 = vadd.f32 0.0, %v1680
        %v1682 = vpop.f32.mrb[0].mxu0
        %1683 = vmatprep.mubr.bf16.mxu0 0
        %1684 = vmatmul.mubr.bf16.gmra.mrb[0].mxu0 %v851
        %v1685 = vpop.f32.mrb[0].mxu0
        %v1686 = vadd.f32 0.0, %v1685
        %v1687 = vpop.f32.mrb[0].mxu0
        %v1688 = vpop.f32.mrb[0].mxu0
        %v1689 = vadd.f32 0.0, %v1688
        %v1690 = vpop.f32.mrb[0].mxu0
        %1691 = vdwg.mxu0
        %1692 = vmax.xlane.f32.xlu0 %v951
        %v1693 = vpop.xlane.xlu0 %1692
        %1694 = vmax.xlane.f32.xlu0 %v954
        %v1695 = vpop.xlane.xlu0 %1694
        %1696 = vmax.xlane.f32.xlu0 %v959
        %v1697 = vpop.xlane.xlu0 %1696
        %1698 = vmax.xlane.f32.xlu0 %v962
        %v1699 = vpop.xlane.xlu0 %1698
        %1700 = vmax.xlane.f32.xlu0 %v967
        %v1701 = vpop.xlane.xlu0 %1700
        %1702 = vmax.xlane.f32.xlu0 %v970
        %v1703 = vpop.xlane.xlu0 %1702
        %1704 = vmax.xlane.f32.xlu0 %v975
        %v1705 = vpop.xlane.xlu0 %1704
        %1706 = vmax.xlane.f32.xlu0 %v978
        %v1707 = vpop.xlane.xlu0 %1706
        %1708 = vmax.xlane.f32.xlu0 %v983
        %v1709 = vpop.xlane.xlu0 %1708
        %1710 = vmax.xlane.f32.xlu0 %v986
        %v1711 = vpop.xlane.xlu0 %1710
        %1712 = vmax.xlane.f32.xlu0 %v991
        %v1713 = vpop.xlane.xlu0 %1712
        %1714 = vmax.xlane.f32.xlu0 %v994
        %v1715 = vpop.xlane.xlu0 %1714
        %1716 = vmax.xlane.f32.xlu0 %v999
        %v1717 = vpop.xlane.xlu0 %1716
        %1718 = vmax.xlane.f32.xlu0 %v1002
        %v1719 = vpop.xlane.xlu0 %1718
        %1720 = vmax.xlane.f32.xlu0 %v1007
        %v1721 = vpop.xlane.xlu0 %1720
        %1722 = vmax.xlane.f32.xlu0 %v1010
        %v1723 = vpop.xlane.xlu0 %1722
        %1724 = vmax.xlane.f32.xlu0 %v1048
        %v1725 = vpop.xlane.xlu0 %1724
        %1726 = vmax.xlane.f32.xlu0 %v1051
        %v1727 = vpop.xlane.xlu0 %1726
        %1728 = vmax.xlane.f32.xlu0 %v1056
        %v1729 = vpop.xlane.xlu0 %1728
        %1730 = vmax.xlane.f32.xlu0 %v1059
        %v1731 = vpop.xlane.xlu0 %1730
        %1732 = vmax.xlane.f32.xlu0 %v1064
        %v1733 = vpop.xlane.xlu0 %1732
        %1734 = vmax.xlane.f32.xlu0 %v1067
        %v1735 = vpop.xlane.xlu0 %1734
        %1736 = vmax.xlane.f32.xlu0 %v1072
        %v1737 = vpop.xlane.xlu0 %1736
        %1738 = vmax.xlane.f32.xlu0 %v1075
        %v1739 = vpop.xlane.xlu0 %1738
        %1740 = vmax.xlane.f32.xlu0 %v1080
        %v1741 = vpop.xlane.xlu0 %1740
        %1742 = vmax.xlane.f32.xlu0 %v1083
        %v1743 = vpop.xlane.xlu0 %1742
        %1744 = vmax.xlane.f32.xlu0 %v1088
        %v1745 = vpop.xlane.xlu0 %1744
        %1746 = vmax.xlane.f32.xlu0 %v1091
        %v1747 = vpop.xlane.xlu0 %1746
        %1748 = vmax.xlane.f32.xlu0 %v1096
        %v1749 = vpop.xlane.xlu0 %1748
        %1750 = vmax.xlane.f32.xlu0 %v1099
        %v1751 = vpop.xlane.xlu0 %1750
        %1752 = vmax.xlane.f32.xlu0 %v1104
        %v1753 = vpop.xlane.xlu0 %1752
        %1754 = vmax.xlane.f32.xlu0 %v1107
        %v1755 = vpop.xlane.xlu0 %1754
        %1756 = vmax.xlane.f32.xlu0 %v1145
        %v1757 = vpop.xlane.xlu0 %1756
        %1758 = vmax.xlane.f32.xlu0 %v1148
        %v1759 = vpop.xlane.xlu0 %1758
        %1760 = vmax.xlane.f32.xlu0 %v1153
        %v1761 = vpop.xlane.xlu0 %1760
        %1762 = vmax.xlane.f32.xlu0 %v1156
        %v1763 = vpop.xlane.xlu0 %1762
        %1764 = vmax.xlane.f32.xlu0 %v1161
        %v1765 = vpop.xlane.xlu0 %1764
        %1766 = vmax.xlane.f32.xlu0 %v1164
        %v1767 = vpop.xlane.xlu0 %1766
        %1768 = vmax.xlane.f32.xlu0 %v1169
        %v1769 = vpop.xlane.xlu0 %1768
        %1770 = vmax.xlane.f32.xlu0 %v1172
        %v1771 = vpop.xlane.xlu0 %1770
        %1772 = vmax.xlane.f32.xlu0 %v1177
        %v1773 = vpop.xlane.xlu0 %1772
        %1774 = vmax.xlane.f32.xlu0 %v1180
        %v1775 = vpop.xlane.xlu0 %1774
        %1776 = vmax.xlane.f32.xlu0 %v1185
        %v1777 = vpop.xlane.xlu0 %1776
        %1778 = vmax.xlane.f32.xlu0 %v1188
        %v1779 = vpop.xlane.xlu0 %1778
        %1780 = vmax.xlane.f32.xlu0 %v1193
        %v1781 = vpop.xlane.xlu0 %1780
        %1782 = vmax.xlane.f32.xlu0 %v1196
        %v1783 = vpop.xlane.xlu0 %1782
        %1784 = vmax.xlane.f32.xlu0 %v1201
        %v1785 = vpop.xlane.xlu0 %1784
        %1786 = vmax.xlane.f32.xlu0 %v1204
        %v1787 = vpop.xlane.xlu0 %1786
        %1788 = vmax.xlane.f32.xlu0 %v1242
        %v1789 = vpop.xlane.xlu0 %1788
        %1790 = vmax.xlane.f32.xlu0 %v1245
        %v1791 = vpop.xlane.xlu0 %1790
        %1792 = vmax.xlane.f32.xlu0 %v1250
        %v1793 = vpop.xlane.xlu0 %1792
        %1794 = vmax.xlane.f32.xlu0 %v1253
        %v1795 = vpop.xlane.xlu0 %1794
        %1796 = vmax.xlane.f32.xlu0 %v1258
        %v1797 = vpop.xlane.xlu0 %1796
        %1798 = vmax.xlane.f32.xlu0 %v1261
        %v1799 = vpop.xlane.xlu0 %1798
        %1800 = vmax.xlane.f32.xlu0 %v1266
        %v1801 = vpop.xlane.xlu0 %1800
        %1802 = vmax.xlane.f32.xlu0 %v1269
        %v1803 = vpop.xlane.xlu0 %1802
        %1804 = vmax.xlane.f32.xlu0 %v1274
        %v1805 = vpop.xlane.xlu0 %1804
        %1806 = vmax.xlane.f32.xlu0 %v1277
        %v1807 = vpop.xlane.xlu0 %1806
        %1808 = vmax.xlane.f32.xlu0 %v1282
        %v1809 = vpop.xlane.xlu0 %1808
        %1810 = vmax.xlane.f32.xlu0 %v1285
        %v1811 = vpop.xlane.xlu0 %1810
        %1812 = vmax.xlane.f32.xlu0 %v1290
        %v1813 = vpop.xlane.xlu0 %1812
        %1814 = vmax.xlane.f32.xlu0 %v1293
        %v1815 = vpop.xlane.xlu0 %1814
        %1816 = vmax.xlane.f32.xlu0 %v1298
        %v1817 = vpop.xlane.xlu0 %1816
        %1818 = vmax.xlane.f32.xlu0 %v1301
        %v1819 = vpop.xlane.xlu0 %1818
        %1820 = vmax.xlane.f32.xlu0 %v1339
        %v1821 = vpop.xlane.xlu0 %1820
        %1822 = vmax.xlane.f32.xlu0 %v1342
        %v1823 = vpop.xlane.xlu0 %1822
        %1824 = vmax.xlane.f32.xlu0 %v1347
        %v1825 = vpop.xlane.xlu0 %1824
        %1826 = vmax.xlane.f32.xlu0 %v1350
        %v1827 = vpop.xlane.xlu0 %1826
        %1828 = vmax.xlane.f32.xlu0 %v1355
        %v1829 = vpop.xlane.xlu0 %1828
        %1830 = vmax.xlane.f32.xlu0 %v1358
        %v1831 = vpop.xlane.xlu0 %1830
        %1832 = vmax.xlane.f32.xlu0 %v1363
        %v1833 = vpop.xlane.xlu0 %1832
        %1834 = vmax.xlane.f32.xlu0 %v1366
        %v1835 = vpop.xlane.xlu0 %1834
        %1836 = vmax.xlane.f32.xlu0 %v1371
        %v1837 = vpop.xlane.xlu0 %1836
        %1838 = vmax.xlane.f32.xlu0 %v1374
        %v1839 = vpop.xlane.xlu0 %1838
        %1840 = vmax.xlane.f32.xlu0 %v1379
        %v1841 = vpop.xlane.xlu0 %1840
        %1842 = vmax.xlane.f32.xlu0 %v1382
        %v1843 = vpop.xlane.xlu0 %1842
        %1844 = vmax.xlane.f32.xlu0 %v1387
        %v1845 = vpop.xlane.xlu0 %1844
        %1846 = vmax.xlane.f32.xlu0 %v1390
        %v1847 = vpop.xlane.xlu0 %1846
        %1848 = vmax.xlane.f32.xlu0 %v1395
        %v1849 = vpop.xlane.xlu0 %1848
        %1850 = vmax.xlane.f32.xlu0 %v1398
        %v1851 = vpop.xlane.xlu0 %1850
        %1852 = vmax.xlane.f32.xlu0 %v1436
        %v1853 = vpop.xlane.xlu0 %1852
        %1854 = vmax.xlane.f32.xlu0 %v1439
        %v1855 = vpop.xlane.xlu0 %1854
        %1856 = vmax.xlane.f32.xlu0 %v1444
        %v1857 = vpop.xlane.xlu0 %1856
        %1858 = vmax.xlane.f32.xlu0 %v1447
        %v1859 = vpop.xlane.xlu0 %1858
        %1860 = vmax.xlane.f32.xlu0 %v1452
        %v1861 = vpop.xlane.xlu0 %1860
        %1862 = vmax.xlane.f32.xlu0 %v1455
        %v1863 = vpop.xlane.xlu0 %1862
        %1864 = vmax.xlane.f32.xlu0 %v1460
        %v1865 = vpop.xlane.xlu0 %1864
        %1866 = vmax.xlane.f32.xlu0 %v1463
        %v1867 = vpop.xlane.xlu0 %1866
        %1868 = vmax.xlane.f32.xlu0 %v1468
        %v1869 = vpop.xlane.xlu0 %1868
        %1870 = vmax.xlane.f32.xlu0 %v1471
        %v1871 = vpop.xlane.xlu0 %1870
        %1872 = vmax.xlane.f32.xlu0 %v1476
        %v1873 = vpop.xlane.xlu0 %1872
        %1874 = vmax.xlane.f32.xlu0 %v1479
        %v1875 = vpop.xlane.xlu0 %1874
        %1876 = vmax.xlane.f32.xlu0 %v1484
        %v1877 = vpop.xlane.xlu0 %1876
        %1878 = vmax.xlane.f32.xlu0 %v1487
        %v1879 = vpop.xlane.xlu0 %1878
        %1880 = vmax.xlane.f32.xlu0 %v1492
        %v1881 = vpop.xlane.xlu0 %1880
        %1882 = vmax.xlane.f32.xlu0 %v1495
        %v1883 = vpop.xlane.xlu0 %1882
        %1884 = vmax.xlane.f32.xlu0 %v1533
        %v1885 = vpop.xlane.xlu0 %1884
        %1886 = vmax.xlane.f32.xlu0 %v1536
        %v1887 = vpop.xlane.xlu0 %1886
        %1888 = vmax.xlane.f32.xlu0 %v1541
        %v1889 = vpop.xlane.xlu0 %1888
        %1890 = vmax.xlane.f32.xlu0 %v1544
        %v1891 = vpop.xlane.xlu0 %1890
        %1892 = vmax.xlane.f32.xlu0 %v1549
        %v1893 = vpop.xlane.xlu0 %1892
        %1894 = vmax.xlane.f32.xlu0 %v1552
        %v1895 = vpop.xlane.xlu0 %1894
        %1896 = vmax.xlane.f32.xlu0 %v1557
        %v1897 = vpop.xlane.xlu0 %1896
        %1898 = vmax.xlane.f32.xlu0 %v1560
        %v1899 = vpop.xlane.xlu0 %1898
        %1900 = vmax.xlane.f32.xlu0 %v1565
        %v1901 = vpop.xlane.xlu0 %1900
        %1902 = vmax.xlane.f32.xlu0 %v1568
        %v1903 = vpop.xlane.xlu0 %1902
        %1904 = vmax.xlane.f32.xlu0 %v1573
        %v1905 = vpop.xlane.xlu0 %1904
        %1906 = vmax.xlane.f32.xlu0 %v1576
        %v1907 = vpop.xlane.xlu0 %1906
        %1908 = vmax.xlane.f32.xlu0 %v1581
        %v1909 = vpop.xlane.xlu0 %1908
        %1910 = vmax.xlane.f32.xlu0 %v1584
        %v1911 = vpop.xlane.xlu0 %1910
        %1912 = vmax.xlane.f32.xlu0 %v1589
        %v1913 = vpop.xlane.xlu0 %1912
        %1914 = vmax.xlane.f32.xlu0 %v1592
        %v1915 = vpop.xlane.xlu0 %1914
        %1916 = vmax.xlane.f32.xlu0 %v1630
        %v1917 = vpop.xlane.xlu0 %1916
        %1918 = vmax.xlane.f32.xlu0 %v1633
        %v1919 = vpop.xlane.xlu0 %1918
        %1920 = vmax.xlane.f32.xlu0 %v1638
        %v1921 = vpop.xlane.xlu0 %1920
        %1922 = vmax.xlane.f32.xlu0 %v1641
        %v1923 = vpop.xlane.xlu0 %1922
        %1924 = vmax.xlane.f32.xlu0 %v1646
        %v1925 = vpop.xlane.xlu0 %1924
        %1926 = vmax.xlane.f32.xlu0 %v1649
        %v1927 = vpop.xlane.xlu0 %1926
        %1928 = vmax.xlane.f32.xlu0 %v1654
        %v1929 = vpop.xlane.xlu0 %1928
        %1930 = vmax.xlane.f32.xlu0 %v1657
        %v1931 = vpop.xlane.xlu0 %1930
        %1932 = vmax.xlane.f32.xlu0 %v1662
        %v1933 = vpop.xlane.xlu0 %1932
        %1934 = vmax.xlane.f32.xlu0 %v1665
        %v1935 = vpop.xlane.xlu0 %1934
        %1936 = vmax.xlane.f32.xlu0 %v1670
        %v1937 = vpop.xlane.xlu0 %1936
        %1938 = vmax.xlane.f32.xlu0 %v1673
        %v1939 = vpop.xlane.xlu0 %1938
        %1940 = vmax.xlane.f32.xlu0 %v1678
        %v1941 = vpop.xlane.xlu0 %1940
        %1942 = vmax.xlane.f32.xlu0 %v1681
        %v1943 = vpop.xlane.xlu0 %1942
        %1944 = vmax.xlane.f32.xlu0 %v1686
        %v1945 = vpop.xlane.xlu0 %1944
        %1946 = vmax.xlane.f32.xlu0 %v1689
        %v1947 = vpop.xlane.xlu0 %1946
        %v1948 = vsub.f32 %v951, %v1693
        %v1949 = vsub.f32 %v954, %v1695
        %v1950 = vsub.f32 %v959, %v1697
        %v1951 = vsub.f32 %v962, %v1699
        %v1952 = vsub.f32 %v967, %v1701
        %v1953 = vsub.f32 %v970, %v1703
        %v1954 = vsub.f32 %v975, %v1705
        %v1955 = vsub.f32 %v978, %v1707
        %v1956 = vsub.f32 %v983, %v1709
        %v1957 = vsub.f32 %v986, %v1711
        %v1958 = vsub.f32 %v991, %v1713
        %v1959 = vsub.f32 %v994, %v1715
        %v1960 = vsub.f32 %v999, %v1717
        %v1961 = vsub.f32 %v1002, %v1719
        %v1962 = vsub.f32 %v1007, %v1721
        %v1963 = vsub.f32 %v1010, %v1723
        %v1964 = vsub.f32 %v1048, %v1725
        %v1965 = vsub.f32 %v1051, %v1727
        %v1966 = vsub.f32 %v1056, %v1729
        %v1967 = vsub.f32 %v1059, %v1731
        %v1968 = vsub.f32 %v1064, %v1733
        %v1969 = vsub.f32 %v1067, %v1735
        %v1970 = vsub.f32 %v1072, %v1737
        %v1971 = vsub.f32 %v1075, %v1739
        %v1972 = vsub.f32 %v1080, %v1741
        %v1973 = vsub.f32 %v1083, %v1743
        %v1974 = vsub.f32 %v1088, %v1745
        %v1975 = vsub.f32 %v1091, %v1747
        %v1976 = vsub.f32 %v1096, %v1749
        %v1977 = vsub.f32 %v1099, %v1751
        %v1978 = vsub.f32 %v1104, %v1753
        %v1979 = vsub.f32 %v1107, %v1755
        %v1980 = vsub.f32 %v1145, %v1757
        %v1981 = vsub.f32 %v1148, %v1759
        %v1982 = vsub.f32 %v1153, %v1761
        %v1983 = vsub.f32 %v1156, %v1763
        %v1984 = vsub.f32 %v1161, %v1765
        %v1985 = vsub.f32 %v1164, %v1767
        %v1986 = vsub.f32 %v1169, %v1769
        %v1987 = vsub.f32 %v1172, %v1771
        %v1988 = vsub.f32 %v1177, %v1773
        %v1989 = vsub.f32 %v1180, %v1775
        %v1990 = vsub.f32 %v1185, %v1777
        %v1991 = vsub.f32 %v1188, %v1779
        %v1992 = vsub.f32 %v1193, %v1781
        %v1993 = vsub.f32 %v1196, %v1783
        %v1994 = vsub.f32 %v1201, %v1785
        %v1995 = vsub.f32 %v1204, %v1787
        %v1996 = vsub.f32 %v1242, %v1789
        %v1997 = vsub.f32 %v1245, %v1791
        %v1998 = vsub.f32 %v1250, %v1793
        %v1999 = vsub.f32 %v1253, %v1795
        %v2000 = vsub.f32 %v1258, %v1797
        %v2001 = vsub.f32 %v1261, %v1799
        %v2002 = vsub.f32 %v1266, %v1801
        %v2003 = vsub.f32 %v1269, %v1803
        %v2004 = vsub.f32 %v1274, %v1805
        %v2005 = vsub.f32 %v1277, %v1807
        %v2006 = vsub.f32 %v1282, %v1809
        %v2007 = vsub.f32 %v1285, %v1811
        %v2008 = vsub.f32 %v1290, %v1813
        %v2009 = vsub.f32 %v1293, %v1815
        %v2010 = vsub.f32 %v1298, %v1817
        %v2011 = vsub.f32 %v1301, %v1819
        %v2012 = vsub.f32 %v1339, %v1821
        %v2013 = vsub.f32 %v1342, %v1823
        %v2014 = vsub.f32 %v1347, %v1825
        %v2015 = vsub.f32 %v1350, %v1827
        %v2016 = vsub.f32 %v1355, %v1829
        %v2017 = vsub.f32 %v1358, %v1831
        %v2018 = vsub.f32 %v1363, %v1833
        %v2019 = vsub.f32 %v1366, %v1835
        %v2020 = vsub.f32 %v1371, %v1837
        %v2021 = vsub.f32 %v1374, %v1839
        %v2022 = vsub.f32 %v1379, %v1841
        %v2023 = vsub.f32 %v1382, %v1843
        %v2024 = vsub.f32 %v1387, %v1845
        %v2025 = vsub.f32 %v1390, %v1847
        %v2026 = vsub.f32 %v1395, %v1849
        %v2027 = vsub.f32 %v1398, %v1851
        %v2028 = vsub.f32 %v1436, %v1853
        %v2029 = vsub.f32 %v1439, %v1855
        %v2030 = vsub.f32 %v1444, %v1857
        %v2031 = vsub.f32 %v1447, %v1859
        %v2032 = vsub.f32 %v1452, %v1861
        %v2033 = vsub.f32 %v1455, %v1863
        %v2034 = vsub.f32 %v1460, %v1865
        %v2035 = vsub.f32 %v1463, %v1867
        %v2036 = vsub.f32 %v1468, %v1869
        %v2037 = vsub.f32 %v1471, %v1871
        %v2038 = vsub.f32 %v1476, %v1873
        %v2039 = vsub.f32 %v1479, %v1875
        %v2040 = vsub.f32 %v1484, %v1877
        %v2041 = vsub.f32 %v1487, %v1879
        %v2042 = vsub.f32 %v1492, %v1881
        %v2043 = vsub.f32 %v1495, %v1883
        %v2044 = vsub.f32 %v1533, %v1885
        %v2045 = vsub.f32 %v1536, %v1887
        %v2046 = vsub.f32 %v1541, %v1889
        %v2047 = vsub.f32 %v1544, %v1891
        %v2048 = vsub.f32 %v1549, %v1893
        %v2049 = vsub.f32 %v1552, %v1895
        %v2050 = vsub.f32 %v1557, %v1897
        %v2051 = vsub.f32 %v1560, %v1899
        %v2052 = vsub.f32 %v1565, %v1901
        %v2053 = vsub.f32 %v1568, %v1903
        %v2054 = vsub.f32 %v1573, %v1905
        %v2055 = vsub.f32 %v1576, %v1907
        %v2056 = vsub.f32 %v1581, %v1909
        %v2057 = vsub.f32 %v1584, %v1911
        %v2058 = vsub.f32 %v1589, %v1913
        %v2059 = vsub.f32 %v1592, %v1915
        %v2060 = vsub.f32 %v1630, %v1917
        %v2061 = vsub.f32 %v1633, %v1919
        %v2062 = vsub.f32 %v1638, %v1921
        %v2063 = vsub.f32 %v1641, %v1923
        %v2064 = vsub.f32 %v1646, %v1925
        %v2065 = vsub.f32 %v1649, %v1927
        %v2066 = vsub.f32 %v1654, %v1929
        %v2067 = vsub.f32 %v1657, %v1931
        %v2068 = vsub.f32 %v1662, %v1933
        %v2069 = vsub.f32 %v1665, %v1935
        %v2070 = vsub.f32 %v1670, %v1937
        %v2071 = vsub.f32 %v1673, %v1939
        %v2072 = vsub.f32 %v1678, %v1941
        %v2073 = vsub.f32 %v1681, %v1943
        %v2074 = vsub.f32 %v1686, %v1945
        %v2075 = vsub.f32 %v1689, %v1947
        %v2076 = vmul.f32 %v1948, 1.442695
        %v2077 = vpow.pop %v2076
        %v2078 = vmul.f32 %v1949, 1.442695
        %v2079 = vpow.pop %v2078
        %v2080 = vmul.f32 %v1950, 1.442695
        %v2081 = vpow.pop %v2080
        %v2082 = vmul.f32 %v1951, 1.442695
        %v2083 = vpow.pop %v2082
        %v2084 = vmul.f32 %v1952, 1.442695
        %v2085 = vpow.pop %v2084
        %v2086 = vmul.f32 %v1953, 1.442695
        %v2087 = vpow.pop %v2086
        %v2088 = vmul.f32 %v1954, 1.442695
        %v2089 = vpow.pop %v2088
        %v2090 = vmul.f32 %v1955, 1.442695
        %v2091 = vpow.pop %v2090
        %v2092 = vmul.f32 %v1956, 1.442695
        %v2093 = vpow.pop %v2092
        %v2094 = vmul.f32 %v1957, 1.442695
        %v2095 = vpow.pop %v2094
        %v2096 = vmul.f32 %v1958, 1.442695
        %v2097 = vpow.pop %v2096
        %v2098 = vmul.f32 %v1959, 1.442695
        %v2099 = vpow.pop %v2098
        %v2100 = vmul.f32 %v1960, 1.442695
        %v2101 = vpow.pop %v2100
        %v2102 = vmul.f32 %v1961, 1.442695
        %v2103 = vpow.pop %v2102
        %v2104 = vmul.f32 %v1962, 1.442695
        %v2105 = vpow.pop %v2104
        %v2106 = vmul.f32 %v1963, 1.442695
        %v2107 = vpow.pop %v2106
        %v2108 = vmul.f32 %v1964, 1.442695
        %v2109 = vpow.pop %v2108
        %v2110 = vmul.f32 %v1965, 1.442695
        %v2111 = vpow.pop %v2110
        %v2112 = vmul.f32 %v1966, 1.442695
        %v2113 = vpow.pop %v2112
        %v2114 = vmul.f32 %v1967, 1.442695
        %v2115 = vpow.pop %v2114
        %v2116 = vmul.f32 %v1968, 1.442695
        %v2117 = vpow.pop %v2116
        %v2118 = vmul.f32 %v1969, 1.442695
        %v2119 = vpow.pop %v2118
        %v2120 = vmul.f32 %v1970, 1.442695
        %v2121 = vpow.pop %v2120
        %v2122 = vmul.f32 %v1971, 1.442695
        %v2123 = vpow.pop %v2122
        %v2124 = vmul.f32 %v1972, 1.442695
        %v2125 = vpow.pop %v2124
        %v2126 = vmul.f32 %v1973, 1.442695
        %v2127 = vpow.pop %v2126
        %v2128 = vmul.f32 %v1974, 1.442695
        %v2129 = vpow.pop %v2128
        %v2130 = vmul.f32 %v1975, 1.442695
        %v2131 = vpow.pop %v2130
        %v2132 = vmul.f32 %v1976, 1.442695
        %v2133 = vpow.pop %v2132
        %v2134 = vmul.f32 %v1977, 1.442695
        %v2135 = vpow.pop %v2134
        %v2136 = vmul.f32 %v1978, 1.442695
        %v2137 = vpow.pop %v2136
        %v2138 = vmul.f32 %v1979, 1.442695
        %v2139 = vpow.pop %v2138
        %v2140 = vmul.f32 %v1980, 1.442695
        %v2141 = vpow.pop %v2140
        %v2142 = vmul.f32 %v1981, 1.442695
        %v2143 = vpow.pop %v2142
        %v2144 = vmul.f32 %v1982, 1.442695
        %v2145 = vpow.pop %v2144
        %v2146 = vmul.f32 %v1983, 1.442695
        %v2147 = vpow.pop %v2146
        %v2148 = vmul.f32 %v1984, 1.442695
        %v2149 = vpow.pop %v2148
        %v2150 = vmul.f32 %v1985, 1.442695
        %v2151 = vpow.pop %v2150
        %v2152 = vmul.f32 %v1986, 1.442695
        %v2153 = vpow.pop %v2152
        %v2154 = vmul.f32 %v1987, 1.442695
        %v2155 = vpow.pop %v2154
        %v2156 = vmul.f32 %v1988, 1.442695
        %v2157 = vpow.pop %v2156
        %v2158 = vmul.f32 %v1989, 1.442695
        %v2159 = vpow.pop %v2158
        %v2160 = vmul.f32 %v1990, 1.442695
        %v2161 = vpow.pop %v2160
        %v2162 = vmul.f32 %v1991, 1.442695
        %v2163 = vpow.pop %v2162
        %v2164 = vmul.f32 %v1992, 1.442695
        %v2165 = vpow.pop %v2164
        %v2166 = vmul.f32 %v1993, 1.442695
        %v2167 = vpow.pop %v2166
        %v2168 = vmul.f32 %v1994, 1.442695
        %v2169 = vpow.pop %v2168
        %v2170 = vmul.f32 %v1995, 1.442695
        %v2171 = vpow.pop %v2170
        %v2172 = vmul.f32 %v1996, 1.442695
        %v2173 = vpow.pop %v2172
        %v2174 = vmul.f32 %v1997, 1.442695
        %v2175 = vpow.pop %v2174
        %v2176 = vmul.f32 %v1998, 1.442695
        %v2177 = vpow.pop %v2176
        %v2178 = vmul.f32 %v1999, 1.442695
        %v2179 = vpow.pop %v2178
        %v2180 = vmul.f32 %v2000, 1.442695
        %v2181 = vpow.pop %v2180
        %v2182 = vmul.f32 %v2001, 1.442695
        %v2183 = vpow.pop %v2182
        %v2184 = vmul.f32 %v2002, 1.442695
        %v2185 = vpow.pop %v2184
        %v2186 = vmul.f32 %v2003, 1.442695
        %v2187 = vpow.pop %v2186
        %v2188 = vmul.f32 %v2004, 1.442695
        %v2189 = vpow.pop %v2188
        %v2190 = vmul.f32 %v2005, 1.442695
        %v2191 = vpow.pop %v2190
        %v2192 = vmul.f32 %v2006, 1.442695
        %v2193 = vpow.pop %v2192
        %v2194 = vmul.f32 %v2007, 1.442695
        %v2195 = vpow.pop %v2194
        %v2196 = vmul.f32 %v2008, 1.442695
        %v2197 = vpow.pop %v2196
        %v2198 = vmul.f32 %v2009, 1.442695
        %v2199 = vpow.pop %v2198
        %v2200 = vmul.f32 %v2010, 1.442695
        %v2201 = vpow.pop %v2200
        %v2202 = vmul.f32 %v2011, 1.442695
        %v2203 = vpow.pop %v2202
        %v2204 = vmul.f32 %v2012, 1.442695
        %v2205 = vpow.pop %v2204
        %v2206 = vmul.f32 %v2013, 1.442695
        %v2207 = vpow.pop %v2206
        %v2208 = vmul.f32 %v2014, 1.442695
        %v2209 = vpow.pop %v2208
        %v2210 = vmul.f32 %v2015, 1.442695
        %v2211 = vpow.pop %v2210
        %v2212 = vmul.f32 %v2016, 1.442695
        %v2213 = vpow.pop %v2212
        %v2214 = vmul.f32 %v2017, 1.442695
        %v2215 = vpow.pop %v2214
        %v2216 = vmul.f32 %v2018, 1.442695
        %v2217 = vpow.pop %v2216
        %v2218 = vmul.f32 %v2019, 1.442695
        %v2219 = vpow.pop %v2218
        %v2220 = vmul.f32 %v2020, 1.442695
        %v2221 = vpow.pop %v2220
        %v2222 = vmul.f32 %v2021, 1.442695
        %v2223 = vpow.pop %v2222
        %v2224 = vmul.f32 %v2022, 1.442695
        %v2225 = vpow.pop %v2224
        %v2226 = vmul.f32 %v2023, 1.442695
        %v2227 = vpow.pop %v2226
        %v2228 = vmul.f32 %v2024, 1.442695
        %v2229 = vpow.pop %v2228
        %v2230 = vmul.f32 %v2025, 1.442695
        %v2231 = vpow.pop %v2230
        %v2232 = vmul.f32 %v2026, 1.442695
        %v2233 = vpow.pop %v2232
        %v2234 = vmul.f32 %v2027, 1.442695
        %v2235 = vpow.pop %v2234
        %v2236 = vmul.f32 %v2028, 1.442695
        %v2237 = vpow.pop %v2236
        %v2238 = vmul.f32 %v2029, 1.442695
        %v2239 = vpow.pop %v2238
        %v2240 = vmul.f32 %v2030, 1.442695
        %v2241 = vpow.pop %v2240
        %v2242 = vmul.f32 %v2031, 1.442695
        %v2243 = vpow.pop %v2242
        %v2244 = vmul.f32 %v2032, 1.442695
        %v2245 = vpow.pop %v2244
        %v2246 = vmul.f32 %v2033, 1.442695
        %v2247 = vpow.pop %v2246
        %v2248 = vmul.f32 %v2034, 1.442695
        %v2249 = vpow.pop %v2248
        %v2250 = vmul.f32 %v2035, 1.442695
        %v2251 = vpow.pop %v2250
        %v2252 = vmul.f32 %v2036, 1.442695
        %v2253 = vpow.pop %v2252
        %v2254 = vmul.f32 %v2037, 1.442695
        %v2255 = vpow.pop %v2254
        %v2256 = vmul.f32 %v2038, 1.442695
        %v2257 = vpow.pop %v2256
        %v2258 = vmul.f32 %v2039, 1.442695
        %v2259 = vpow.pop %v2258
        %v2260 = vmul.f32 %v2040, 1.442695
        %v2261 = vpow.pop %v2260
        %v2262 = vmul.f32 %v2041, 1.442695
        %v2263 = vpow.pop %v2262
        %v2264 = vmul.f32 %v2042, 1.442695
        %v2265 = vpow.pop %v2264
        %v2266 = vmul.f32 %v2043, 1.442695
        %v2267 = vpow.pop %v2266
        %v2268 = vmul.f32 %v2044, 1.442695
        %v2269 = vpow.pop %v2268
        %v2270 = vmul.f32 %v2045, 1.442695
        %v2271 = vpow.pop %v2270
        %v2272 = vmul.f32 %v2046, 1.442695
        %v2273 = vpow.pop %v2272
        %v2274 = vmul.f32 %v2047, 1.442695
        %v2275 = vpow.pop %v2274
        %v2276 = vmul.f32 %v2048, 1.442695
        %v2277 = vpow.pop %v2276
        %v2278 = vmul.f32 %v2049, 1.442695
        %v2279 = vpow.pop %v2278
        %v2280 = vmul.f32 %v2050, 1.442695
        %v2281 = vpow.pop %v2280
        %v2282 = vmul.f32 %v2051, 1.442695
        %v2283 = vpow.pop %v2282
        %v2284 = vmul.f32 %v2052, 1.442695
        %v2285 = vpow.pop %v2284
        %v2286 = vmul.f32 %v2053, 1.442695
        %v2287 = vpow.pop %v2286
        %v2288 = vmul.f32 %v2054, 1.442695
        %v2289 = vpow.pop %v2288
        %v2290 = vmul.f32 %v2055, 1.442695
        %v2291 = vpow.pop %v2290
        %v2292 = vmul.f32 %v2056, 1.442695
        %v2293 = vpow.pop %v2292
        %v2294 = vmul.f32 %v2057, 1.442695
        %v2295 = vpow.pop %v2294
        %v2296 = vmul.f32 %v2058, 1.442695
        %v2297 = vpow.pop %v2296
        %v2298 = vmul.f32 %v2059, 1.442695
        %v2299 = vpow.pop %v2298
        %v2300 = vmul.f32 %v2060, 1.442695
        %v2301 = vpow.pop %v2300
        %v2302 = vmul.f32 %v2061, 1.442695
        %v2303 = vpow.pop %v2302
        %v2304 = vmul.f32 %v2062, 1.442695
        %v2305 = vpow.pop %v2304
        %v2306 = vmul.f32 %v2063, 1.442695
        %v2307 = vpow.pop %v2306
        %v2308 = vmul.f32 %v2064, 1.442695
        %v2309 = vpow.pop %v2308
        %v2310 = vmul.f32 %v2065, 1.442695
        %v2311 = vpow.pop %v2310
        %v2312 = vmul.f32 %v2066, 1.442695
        %v2313 = vpow.pop %v2312
        %v2314 = vmul.f32 %v2067, 1.442695
        %v2315 = vpow.pop %v2314
        %v2316 = vmul.f32 %v2068, 1.442695
        %v2317 = vpow.pop %v2316
        %v2318 = vmul.f32 %v2069, 1.442695
        %v2319 = vpow.pop %v2318
        %v2320 = vmul.f32 %v2070, 1.442695
        %v2321 = vpow.pop %v2320
        %v2322 = vmul.f32 %v2071, 1.442695
        %v2323 = vpow.pop %v2322
        %v2324 = vmul.f32 %v2072, 1.442695
        %v2325 = vpow.pop %v2324
        %v2326 = vmul.f32 %v2073, 1.442695
        %v2327 = vpow.pop %v2326
        %v2328 = vmul.f32 %v2074, 1.442695
        %v2329 = vpow.pop %v2328
        %v2330 = vmul.f32 %v2075, 1.442695
        %v2331 = vpow.pop %v2330
        %2332 = vadd.xlane.f32.xlu0 %v2077
        %v2333 = vpop.xlane.xlu0 %2332
        %2334 = vadd.xlane.f32.xlu0 %v2079
        %v2335 = vpop.xlane.xlu0 %2334
        %2336 = vadd.xlane.f32.xlu0 %v2081
        %v2337 = vpop.xlane.xlu0 %2336
        %2338 = vadd.xlane.f32.xlu0 %v2083
        %v2339 = vpop.xlane.xlu0 %2338
        %2340 = vadd.xlane.f32.xlu0 %v2085
        %v2341 = vpop.xlane.xlu0 %2340
        %2342 = vadd.xlane.f32.xlu0 %v2087
        %v2343 = vpop.xlane.xlu0 %2342
        %2344 = vadd.xlane.f32.xlu0 %v2089
        %v2345 = vpop.xlane.xlu0 %2344
        %2346 = vadd.xlane.f32.xlu0 %v2091
        %v2347 = vpop.xlane.xlu0 %2346
        %2348 = vadd.xlane.f32.xlu0 %v2093
        %v2349 = vpop.xlane.xlu0 %2348
        %2350 = vadd.xlane.f32.xlu0 %v2095
        %v2351 = vpop.xlane.xlu0 %2350
        %2352 = vadd.xlane.f32.xlu0 %v2097
        %v2353 = vpop.xlane.xlu0 %2352
        %2354 = vadd.xlane.f32.xlu0 %v2099
        %v2355 = vpop.xlane.xlu0 %2354
        %2356 = vadd.xlane.f32.xlu0 %v2101
        %v2357 = vpop.xlane.xlu0 %2356
        %2358 = vadd.xlane.f32.xlu0 %v2103
        %v2359 = vpop.xlane.xlu0 %2358
        %2360 = vadd.xlane.f32.xlu0 %v2105
        %v2361 = vpop.xlane.xlu0 %2360
        %2362 = vadd.xlane.f32.xlu0 %v2107
        %v2363 = vpop.xlane.xlu0 %2362
        %2364 = vadd.xlane.f32.xlu0 %v2109
        %v2365 = vpop.xlane.xlu0 %2364
        %2366 = vadd.xlane.f32.xlu0 %v2111
        %v2367 = vpop.xlane.xlu0 %2366
        %2368 = vadd.xlane.f32.xlu0 %v2113
        %v2369 = vpop.xlane.xlu0 %2368
        %2370 = vadd.xlane.f32.xlu0 %v2115
        %v2371 = vpop.xlane.xlu0 %2370
        %2372 = vadd.xlane.f32.xlu0 %v2117
        %v2373 = vpop.xlane.xlu0 %2372
        %2374 = vadd.xlane.f32.xlu0 %v2119
        %v2375 = vpop.xlane.xlu0 %2374
        %2376 = vadd.xlane.f32.xlu0 %v2121
        %v2377 = vpop.xlane.xlu0 %2376
        %2378 = vadd.xlane.f32.xlu0 %v2123
        %v2379 = vpop.xlane.xlu0 %2378
        %2380 = vadd.xlane.f32.xlu0 %v2125
        %v2381 = vpop.xlane.xlu0 %2380
        %2382 = vadd.xlane.f32.xlu0 %v2127
        %v2383 = vpop.xlane.xlu0 %2382
        %2384 = vadd.xlane.f32.xlu0 %v2129
        %v2385 = vpop.xlane.xlu0 %2384
        %2386 = vadd.xlane.f32.xlu0 %v2131
        %v2387 = vpop.xlane.xlu0 %2386
        %2388 = vadd.xlane.f32.xlu0 %v2133
        %v2389 = vpop.xlane.xlu0 %2388
        %2390 = vadd.xlane.f32.xlu0 %v2135
        %v2391 = vpop.xlane.xlu0 %2390
        %2392 = vadd.xlane.f32.xlu0 %v2137
        %v2393 = vpop.xlane.xlu0 %2392
        %2394 = vadd.xlane.f32.xlu0 %v2139
        %v2395 = vpop.xlane.xlu0 %2394
        %2396 = vadd.xlane.f32.xlu0 %v2141
        %v2397 = vpop.xlane.xlu0 %2396
        %2398 = vadd.xlane.f32.xlu0 %v2143
        %v2399 = vpop.xlane.xlu0 %2398
        %2400 = vadd.xlane.f32.xlu0 %v2145
        %v2401 = vpop.xlane.xlu0 %2400
        %2402 = vadd.xlane.f32.xlu0 %v2147
        %v2403 = vpop.xlane.xlu0 %2402
        %2404 = vadd.xlane.f32.xlu0 %v2149
        %v2405 = vpop.xlane.xlu0 %2404
        %2406 = vadd.xlane.f32.xlu0 %v2151
        %v2407 = vpop.xlane.xlu0 %2406
        %2408 = vadd.xlane.f32.xlu0 %v2153
        %v2409 = vpop.xlane.xlu0 %2408
        %2410 = vadd.xlane.f32.xlu0 %v2155
        %v2411 = vpop.xlane.xlu0 %2410
        %2412 = vadd.xlane.f32.xlu0 %v2157
        %v2413 = vpop.xlane.xlu0 %2412
        %2414 = vadd.xlane.f32.xlu0 %v2159
        %v2415 = vpop.xlane.xlu0 %2414
        %2416 = vadd.xlane.f32.xlu0 %v2161
        %v2417 = vpop.xlane.xlu0 %2416
        %2418 = vadd.xlane.f32.xlu0 %v2163
        %v2419 = vpop.xlane.xlu0 %2418
        %2420 = vadd.xlane.f32.xlu0 %v2165
        %v2421 = vpop.xlane.xlu0 %2420
        %2422 = vadd.xlane.f32.xlu0 %v2167
        %v2423 = vpop.xlane.xlu0 %2422
        %2424 = vadd.xlane.f32.xlu0 %v2169
        %v2425 = vpop.xlane.xlu0 %2424
        %2426 = vadd.xlane.f32.xlu0 %v2171
        %v2427 = vpop.xlane.xlu0 %2426
        %2428 = vadd.xlane.f32.xlu0 %v2173
        %v2429 = vpop.xlane.xlu0 %2428
        %2430 = vadd.xlane.f32.xlu0 %v2175
        %v2431 = vpop.xlane.xlu0 %2430
        %2432 = vadd.xlane.f32.xlu0 %v2177
        %v2433 = vpop.xlane.xlu0 %2432
        %2434 = vadd.xlane.f32.xlu0 %v2179
        %v2435 = vpop.xlane.xlu0 %2434
        %2436 = vadd.xlane.f32.xlu0 %v2181
        %v2437 = vpop.xlane.xlu0 %2436
        %2438 = vadd.xlane.f32.xlu0 %v2183
        %v2439 = vpop.xlane.xlu0 %2438
        %2440 = vadd.xlane.f32.xlu0 %v2185
        %v2441 = vpop.xlane.xlu0 %2440
        %2442 = vadd.xlane.f32.xlu0 %v2187
        %v2443 = vpop.xlane.xlu0 %2442
        %2444 = vadd.xlane.f32.xlu0 %v2189
        %v2445 = vpop.xlane.xlu0 %2444
        %2446 = vadd.xlane.f32.xlu0 %v2191
        %v2447 = vpop.xlane.xlu0 %2446
        %2448 = vadd.xlane.f32.xlu0 %v2193
        %v2449 = vpop.xlane.xlu0 %2448
        %2450 = vadd.xlane.f32.xlu0 %v2195
        %v2451 = vpop.xlane.xlu0 %2450
        %2452 = vadd.xlane.f32.xlu0 %v2197
        %v2453 = vpop.xlane.xlu0 %2452
        %2454 = vadd.xlane.f32.xlu0 %v2199
        %v2455 = vpop.xlane.xlu0 %2454
        %2456 = vadd.xlane.f32.xlu0 %v2201
        %v2457 = vpop.xlane.xlu0 %2456
        %2458 = vadd.xlane.f32.xlu0 %v2203
        %v2459 = vpop.xlane.xlu0 %2458
        %2460 = vadd.xlane.f32.xlu0 %v2205
        %v2461 = vpop.xlane.xlu0 %2460
        %2462 = vadd.xlane.f32.xlu0 %v2207
        %v2463 = vpop.xlane.xlu0 %2462
        %2464 = vadd.xlane.f32.xlu0 %v2209
        %v2465 = vpop.xlane.xlu0 %2464
        %2466 = vadd.xlane.f32.xlu0 %v2211
        %v2467 = vpop.xlane.xlu0 %2466
        %2468 = vadd.xlane.f32.xlu0 %v2213
        %v2469 = vpop.xlane.xlu0 %2468
        %2470 = vadd.xlane.f32.xlu0 %v2215
        %v2471 = vpop.xlane.xlu0 %2470
        %2472 = vadd.xlane.f32.xlu0 %v2217
        %v2473 = vpop.xlane.xlu0 %2472
        %2474 = vadd.xlane.f32.xlu0 %v2219
        %v2475 = vpop.xlane.xlu0 %2474
        %2476 = vadd.xlane.f32.xlu0 %v2221
        %v2477 = vpop.xlane.xlu0 %2476
        %2478 = vadd.xlane.f32.xlu0 %v2223
        %v2479 = vpop.xlane.xlu0 %2478
        %2480 = vadd.xlane.f32.xlu0 %v2225
        %v2481 = vpop.xlane.xlu0 %2480
        %2482 = vadd.xlane.f32.xlu0 %v2227
        %v2483 = vpop.xlane.xlu0 %2482
        %2484 = vadd.xlane.f32.xlu0 %v2229
        %v2485 = vpop.xlane.xlu0 %2484
        %2486 = vadd.xlane.f32.xlu0 %v2231
        %v2487 = vpop.xlane.xlu0 %2486
        %2488 = vadd.xlane.f32.xlu0 %v2233
        %v2489 = vpop.xlane.xlu0 %2488
        %2490 = vadd.xlane.f32.xlu0 %v2235
        %v2491 = vpop.xlane.xlu0 %2490
        %2492 = vadd.xlane.f32.xlu0 %v2237
        %v2493 = vpop.xlane.xlu0 %2492
        %2494 = vadd.xlane.f32.xlu0 %v2239
        %v2495 = vpop.xlane.xlu0 %2494
        %2496 = vadd.xlane.f32.xlu0 %v2241
        %v2497 = vpop.xlane.xlu0 %2496
        %2498 = vadd.xlane.f32.xlu0 %v2243
        %v2499 = vpop.xlane.xlu0 %2498
        %2500 = vadd.xlane.f32.xlu0 %v2245
        %v2501 = vpop.xlane.xlu0 %2500
        %2502 = vadd.xlane.f32.xlu0 %v2247
        %v2503 = vpop.xlane.xlu0 %2502
        %2504 = vadd.xlane.f32.xlu0 %v2249
        %v2505 = vpop.xlane.xlu0 %2504
        %2506 = vadd.xlane.f32.xlu0 %v2251
        %v2507 = vpop.xlane.xlu0 %2506
        %2508 = vadd.xlane.f32.xlu0 %v2253
        %v2509 = vpop.xlane.xlu0 %2508
        %2510 = vadd.xlane.f32.xlu0 %v2255
        %v2511 = vpop.xlane.xlu0 %2510
        %2512 = vadd.xlane.f32.xlu0 %v2257
        %v2513 = vpop.xlane.xlu0 %2512
        %2514 = vadd.xlane.f32.xlu0 %v2259
        %v2515 = vpop.xlane.xlu0 %2514
        %2516 = vadd.xlane.f32.xlu0 %v2261
        %v2517 = vpop.xlane.xlu0 %2516
        %2518 = vadd.xlane.f32.xlu0 %v2263
        %v2519 = vpop.xlane.xlu0 %2518
        %2520 = vadd.xlane.f32.xlu0 %v2265
        %v2521 = vpop.xlane.xlu0 %2520
        %2522 = vadd.xlane.f32.xlu0 %v2267
        %v2523 = vpop.xlane.xlu0 %2522
        %2524 = vadd.xlane.f32.xlu0 %v2269
        %v2525 = vpop.xlane.xlu0 %2524
        %2526 = vadd.xlane.f32.xlu0 %v2271
        %v2527 = vpop.xlane.xlu0 %2526
        %2528 = vadd.xlane.f32.xlu0 %v2273
        %v2529 = vpop.xlane.xlu0 %2528
        %2530 = vadd.xlane.f32.xlu0 %v2275
        %v2531 = vpop.xlane.xlu0 %2530
        %2532 = vadd.xlane.f32.xlu0 %v2277
        %v2533 = vpop.xlane.xlu0 %2532
        %2534 = vadd.xlane.f32.xlu0 %v2279
        %v2535 = vpop.xlane.xlu0 %2534
        %2536 = vadd.xlane.f32.xlu0 %v2281
        %v2537 = vpop.xlane.xlu0 %2536
        %2538 = vadd.xlane.f32.xlu0 %v2283
        %v2539 = vpop.xlane.xlu0 %2538
        %2540 = vadd.xlane.f32.xlu0 %v2285
        %v2541 = vpop.xlane.xlu0 %2540
        %2542 = vadd.xlane.f32.xlu0 %v2287
        %v2543 = vpop.xlane.xlu0 %2542
        %2544 = vadd.xlane.f32.xlu0 %v2289
        %v2545 = vpop.xlane.xlu0 %2544
        %2546 = vadd.xlane.f32.xlu0 %v2291
        %v2547 = vpop.xlane.xlu0 %2546
        %2548 = vadd.xlane.f32.xlu0 %v2293
        %v2549 = vpop.xlane.xlu0 %2548
        %2550 = vadd.xlane.f32.xlu0 %v2295
        %v2551 = vpop.xlane.xlu0 %2550
        %2552 = vadd.xlane.f32.xlu0 %v2297
        %v2553 = vpop.xlane.xlu0 %2552
        %2554 = vadd.xlane.f32.xlu0 %v2299
        %v2555 = vpop.xlane.xlu0 %2554
        %2556 = vadd.xlane.f32.xlu0 %v2301
        %v2557 = vpop.xlane.xlu0 %2556
        %2558 = vadd.xlane.f32.xlu0 %v2303
        %v2559 = vpop.xlane.xlu0 %2558
        %2560 = vadd.xlane.f32.xlu0 %v2305
        %v2561 = vpop.xlane.xlu0 %2560
        %2562 = vadd.xlane.f32.xlu0 %v2307
        %v2563 = vpop.xlane.xlu0 %2562
        %2564 = vadd.xlane.f32.xlu0 %v2309
        %v2565 = vpop.xlane.xlu0 %2564
        %2566 = vadd.xlane.f32.xlu0 %v2311
        %v2567 = vpop.xlane.xlu0 %2566
        %2568 = vadd.xlane.f32.xlu0 %v2313
        %v2569 = vpop.xlane.xlu0 %2568
        %2570 = vadd.xlane.f32.xlu0 %v2315
        %v2571 = vpop.xlane.xlu0 %2570
        %2572 = vadd.xlane.f32.xlu0 %v2317
        %v2573 = vpop.xlane.xlu0 %2572
        %2574 = vadd.xlane.f32.xlu0 %v2319
        %v2575 = vpop.xlane.xlu0 %2574
        %2576 = vadd.xlane.f32.xlu0 %v2321
        %v2577 = vpop.xlane.xlu0 %2576
        %2578 = vadd.xlane.f32.xlu0 %v2323
        %v2579 = vpop.xlane.xlu0 %2578
        %2580 = vadd.xlane.f32.xlu0 %v2325
        %v2581 = vpop.xlane.xlu0 %2580
        %2582 = vadd.xlane.f32.xlu0 %v2327
        %v2583 = vpop.xlane.xlu0 %2582
        %2584 = vadd.xlane.f32.xlu0 %v2329
        %v2585 = vpop.xlane.xlu0 %2584
        %2586 = vadd.xlane.f32.xlu0 %v2331
        %v2587 = vpop.xlane.xlu0 %2586
        %v2588 = vlaneseq
        %v2589 = vshrl.u32 %v2588, 7
        %v2590 = vadd.s32 %v2589, 8
        %v2591 = vadd.s32 %v2589, 16
        %v2592 = vadd.s32 %v2589, 24
        %v2593 = vadd.s32 %v2589, 32
        %v2594 = vadd.s32 %v2589, 40
        %v2595 = vadd.s32 %v2589, 48
        %v2596 = vadd.s32 %v2589, 56
        %v2597 = vadd.s32 %v2589, 64
        %v2598 = vadd.s32 %v2589, 72
        %v2599 = vadd.s32 %v2589, 80
        %v2600 = vadd.s32 %v2589, 88
        %v2601 = vadd.s32 %v2589, 96
        %v2602 = vadd.s32 %v2589, 104
        %v2603 = vadd.s32 %v2589, 112
        %v2604 = vadd.s32 %v2589, 120
        %v2605 = vlaneseq
        %v2606 = vand.u32 %v2605, 127
        %s2607 = smul.u32 %s25, 8
        %v2608 = vstv %s2607
        %v2609 = vadd.s32 %v2608, 1
        %v2610 = vadd.s32 %v2608, 2
        %v2611 = vadd.s32 %v2608, 3
        %v2612 = vadd.s32 %v2608, 4
        %v2613 = vadd.s32 %v2608, 5
        %v2614 = vadd.s32 %v2608, 6
        %v2615 = vadd.s32 %v2608, 7
        %v2616 = vmul.u32 %v2608, 128
        %v2617 = vmul.u32 %v2609, 128
        %v2618 = vmul.u32 %v2610, 128
        %v2619 = vmul.u32 %v2611, 128
        %v2620 = vmul.u32 %v2612, 128
        %v2621 = vmul.u32 %v2613, 128
        %v2622 = vmul.u32 %v2614, 128
        %v2623 = vmul.u32 %v2615, 128
        %v2624 = vadd.s32 %v2616, %v2589
        %v2625 = vadd.s32 %v2616, %v2590
        %v2626 = vadd.s32 %v2616, %v2591
        %v2627 = vadd.s32 %v2616, %v2592
        %v2628 = vadd.s32 %v2616, %v2593
        %v2629 = vadd.s32 %v2616, %v2594
        %v2630 = vadd.s32 %v2616, %v2595
        %v2631 = vadd.s32 %v2616, %v2596
        %v2632 = vadd.s32 %v2616, %v2597
        %v2633 = vadd.s32 %v2616, %v2598
        %v2634 = vadd.s32 %v2616, %v2599
        %v2635 = vadd.s32 %v2616, %v2600
        %v2636 = vadd.s32 %v2616, %v2601
        %v2637 = vadd.s32 %v2616, %v2602
        %v2638 = vadd.s32 %v2616, %v2603
        %v2639 = vadd.s32 %v2616, %v2604
        %v2640 = vadd.s32 %v2617, %v2589
        %v2641 = vadd.s32 %v2617, %v2590
        %v2642 = vadd.s32 %v2617, %v2591
        %v2643 = vadd.s32 %v2617, %v2592
        %v2644 = vadd.s32 %v2617, %v2593
        %v2645 = vadd.s32 %v2617, %v2594
        %v2646 = vadd.s32 %v2617, %v2595
        %v2647 = vadd.s32 %v2617, %v2596
        %v2648 = vadd.s32 %v2617, %v2597
        %v2649 = vadd.s32 %v2617, %v2598
        %v2650 = vadd.s32 %v2617, %v2599
        %v2651 = vadd.s32 %v2617, %v2600
        %v2652 = vadd.s32 %v2617, %v2601
        %v2653 = vadd.s32 %v2617, %v2602
        %v2654 = vadd.s32 %v2617, %v2603
        %v2655 = vadd.s32 %v2617, %v2604
        %v2656 = vadd.s32 %v2618, %v2589
        %v2657 = vadd.s32 %v2618, %v2590
        %v2658 = vadd.s32 %v2618, %v2591
        %v2659 = vadd.s32 %v2618, %v2592
        %v2660 = vadd.s32 %v2618, %v2593
        %v2661 = vadd.s32 %v2618, %v2594
        %v2662 = vadd.s32 %v2618, %v2595
        %v2663 = vadd.s32 %v2618, %v2596
        %v2664 = vadd.s32 %v2618, %v2597
        %v2665 = vadd.s32 %v2618, %v2598
        %v2666 = vadd.s32 %v2618, %v2599
        %v2667 = vadd.s32 %v2618, %v2600
        %v2668 = vadd.s32 %v2618, %v2601
        %v2669 = vadd.s32 %v2618, %v2602
        %v2670 = vadd.s32 %v2618, %v2603
        %v2671 = vadd.s32 %v2618, %v2604
        %v2672 = vadd.s32 %v2619, %v2589
        %v2673 = vadd.s32 %v2619, %v2590
        %v2674 = vadd.s32 %v2619, %v2591
        %v2675 = vadd.s32 %v2619, %v2592
        %v2676 = vadd.s32 %v2619, %v2593
        %v2677 = vadd.s32 %v2619, %v2594
        %v2678 = vadd.s32 %v2619, %v2595
        %v2679 = vadd.s32 %v2619, %v2596
        %v2680 = vadd.s32 %v2619, %v2597
        %v2681 = vadd.s32 %v2619, %v2598
        %v2682 = vadd.s32 %v2619, %v2599
        %v2683 = vadd.s32 %v2619, %v2600
        %v2684 = vadd.s32 %v2619, %v2601
        %v2685 = vadd.s32 %v2619, %v2602
        %v2686 = vadd.s32 %v2619, %v2603
        %v2687 = vadd.s32 %v2619, %v2604
        %v2688 = vadd.s32 %v2620, %v2589
        %v2689 = vadd.s32 %v2620, %v2590
        %v2690 = vadd.s32 %v2620, %v2591
        %v2691 = vadd.s32 %v2620, %v2592
        %v2692 = vadd.s32 %v2620, %v2593
        %v2693 = vadd.s32 %v2620, %v2594
        %v2694 = vadd.s32 %v2620, %v2595
        %v2695 = vadd.s32 %v2620, %v2596
        %v2696 = vadd.s32 %v2620, %v2597
        %v2697 = vadd.s32 %v2620, %v2598
        %v2698 = vadd.s32 %v2620, %v2599
        %v2699 = vadd.s32 %v2620, %v2600
        %v2700 = vadd.s32 %v2620, %v2601
        %v2701 = vadd.s32 %v2620, %v2602
        %v2702 = vadd.s32 %v2620, %v2603
        %v2703 = vadd.s32 %v2620, %v2604
        %v2704 = vadd.s32 %v2621, %v2589
        %v2705 = vadd.s32 %v2621, %v2590
        %v2706 = vadd.s32 %v2621, %v2591
        %v2707 = vadd.s32 %v2621, %v2592
        %v2708 = vadd.s32 %v2621, %v2593
        %v2709 = vadd.s32 %v2621, %v2594
        %v2710 = vadd.s32 %v2621, %v2595
        %v2711 = vadd.s32 %v2621, %v2596
        %v2712 = vadd.s32 %v2621, %v2597
        %v2713 = vadd.s32 %v2621, %v2598
        %v2714 = vadd.s32 %v2621, %v2599
        %v2715 = vadd.s32 %v2621, %v2600
        %v2716 = vadd.s32 %v2621, %v2601
        %v2717 = vadd.s32 %v2621, %v2602
        %v2718 = vadd.s32 %v2621, %v2603
        %v2719 = vadd.s32 %v2621, %v2604
        %v2720 = vadd.s32 %v2622, %v2589
        %v2721 = vadd.s32 %v2622, %v2590
        %v2722 = vadd.s32 %v2622, %v2591
        %v2723 = vadd.s32 %v2622, %v2592
        %v2724 = vadd.s32 %v2622, %v2593
        %v2725 = vadd.s32 %v2622, %v2594
        %v2726 = vadd.s32 %v2622, %v2595
        %v2727 = vadd.s32 %v2622, %v2596
        %v2728 = vadd.s32 %v2622, %v2597
        %v2729 = vadd.s32 %v2622, %v2598
        %v2730 = vadd.s32 %v2622, %v2599
        %v2731 = vadd.s32 %v2622, %v2600
        %v2732 = vadd.s32 %v2622, %v2601
        %v2733 = vadd.s32 %v2622, %v2602
        %v2734 = vadd.s32 %v2622, %v2603
        %v2735 = vadd.s32 %v2622, %v2604
        %v2736 = vadd.s32 %v2623, %v2589
        %v2737 = vadd.s32 %v2623, %v2590
        %v2738 = vadd.s32 %v2623, %v2591
        %v2739 = vadd.s32 %v2623, %v2592
        %v2740 = vadd.s32 %v2623, %v2593
        %v2741 = vadd.s32 %v2623, %v2594
        %v2742 = vadd.s32 %v2623, %v2595
        %v2743 = vadd.s32 %v2623, %v2596
        %v2744 = vadd.s32 %v2623, %v2597
        %v2745 = vadd.s32 %v2623, %v2598
        %v2746 = vadd.s32 %v2623, %v2599
        %v2747 = vadd.s32 %v2623, %v2600
        %v2748 = vadd.s32 %v2623, %v2601
        %v2749 = vadd.s32 %v2623, %v2602
        %v2750 = vadd.s32 %v2623, %v2603
        %v2751 = vadd.s32 %v2623, %v2604
        %v2752 = vmul.u32 %v2624, 128
        %v2753 = vmul.u32 %v2625, 128
        %v2754 = vmul.u32 %v2626, 128
        %v2755 = vmul.u32 %v2627, 128
        %v2756 = vmul.u32 %v2628, 128
        %v2757 = vmul.u32 %v2629, 128
        %v2758 = vmul.u32 %v2630, 128
        %v2759 = vmul.u32 %v2631, 128
        %v2760 = vmul.u32 %v2632, 128
        %v2761 = vmul.u32 %v2633, 128
        %v2762 = vmul.u32 %v2634, 128
        %v2763 = vmul.u32 %v2635, 128
        %v2764 = vmul.u32 %v2636, 128
        %v2765 = vmul.u32 %v2637, 128
        %v2766 = vmul.u32 %v2638, 128
        %v2767 = vmul.u32 %v2639, 128
        %v2768 = vmul.u32 %v2640, 128
        %v2769 = vmul.u32 %v2641, 128
        %v2770 = vmul.u32 %v2642, 128
        %v2771 = vmul.u32 %v2643, 128
        %v2772 = vmul.u32 %v2644, 128
        %v2773 = vmul.u32 %v2645, 128
        %v2774 = vmul.u32 %v2646, 128
        %v2775 = vmul.u32 %v2647, 128
        %v2776 = vmul.u32 %v2648, 128
        %v2777 = vmul.u32 %v2649, 128
        %v2778 = vmul.u32 %v2650, 128
        %v2779 = vmul.u32 %v2651, 128
        %v2780 = vmul.u32 %v2652, 128
        %v2781 = vmul.u32 %v2653, 128
        %v2782 = vmul.u32 %v2654, 128
        %v2783 = vmul.u32 %v2655, 128
        %v2784 = vmul.u32 %v2656, 128
        %v2785 = vmul.u32 %v2657, 128
        %v2786 = vmul.u32 %v2658, 128
        %v2787 = vmul.u32 %v2659, 128
        %v2788 = vmul.u32 %v2660, 128
        %v2789 = vmul.u32 %v2661, 128
        %v2790 = vmul.u32 %v2662, 128
        %v2791 = vmul.u32 %v2663, 128
        %v2792 = vmul.u32 %v2664, 128
        %v2793 = vmul.u32 %v2665, 128
        %v2794 = vmul.u32 %v2666, 128
        %v2795 = vmul.u32 %v2667, 128
        %v2796 = vmul.u32 %v2668, 128
        %v2797 = vmul.u32 %v2669, 128
        %v2798 = vmul.u32 %v2670, 128
        %v2799 = vmul.u32 %v2671, 128
        %v2800 = vmul.u32 %v2672, 128
        %v2801 = vmul.u32 %v2673, 128
        %v2802 = vmul.u32 %v2674, 128
        %v2803 = vmul.u32 %v2675, 128
        %v2804 = vmul.u32 %v2676, 128
        %v2805 = vmul.u32 %v2677, 128
        %v2806 = vmul.u32 %v2678, 128
        %v2807 = vmul.u32 %v2679, 128
        %v2808 = vmul.u32 %v2680, 128
        %v2809 = vmul.u32 %v2681, 128
        %v2810 = vmul.u32 %v2682, 128
        %v2811 = vmul.u32 %v2683, 128
        %v2812 = vmul.u32 %v2684, 128
        %v2813 = vmul.u32 %v2685, 128
        %v2814 = vmul.u32 %v2686, 128
        %v2815 = vmul.u32 %v2687, 128
        %v2816 = vmul.u32 %v2688, 128
        %v2817 = vmul.u32 %v2689, 128
        %v2818 = vmul.u32 %v2690, 128
        %v2819 = vmul.u32 %v2691, 128
        %v2820 = vmul.u32 %v2692, 128
        %v2821 = vmul.u32 %v2693, 128
        %v2822 = vmul.u32 %v2694, 128
        %v2823 = vmul.u32 %v2695, 128
        %v2824 = vmul.u32 %v2696, 128
        %v2825 = vmul.u32 %v2697, 128
        %v2826 = vmul.u32 %v2698, 128
        %v2827 = vmul.u32 %v2699, 128
        %v2828 = vmul.u32 %v2700, 128
        %v2829 = vmul.u32 %v2701, 128
        %v2830 = vmul.u32 %v2702, 128
        %v2831 = vmul.u32 %v2703, 128
        %v2832 = vmul.u32 %v2704, 128
        %v2833 = vmul.u32 %v2705, 128
        %v2834 = vmul.u32 %v2706, 128
        %v2835 = vmul.u32 %v2707, 128
        %v2836 = vmul.u32 %v2708, 128
        %v2837 = vmul.u32 %v2709, 128
        %v2838 = vmul.u32 %v2710, 128
        %v2839 = vmul.u32 %v2711, 128
        %v2840 = vmul.u32 %v2712, 128
        %v2841 = vmul.u32 %v2713, 128
        %v2842 = vmul.u32 %v2714, 128
        %v2843 = vmul.u32 %v2715, 128
        %v2844 = vmul.u32 %v2716, 128
        %v2845 = vmul.u32 %v2717, 128
        %v2846 = vmul.u32 %v2718, 128
        %v2847 = vmul.u32 %v2719, 128
        %v2848 = vmul.u32 %v2720, 128
        %v2849 = vmul.u32 %v2721, 128
        %v2850 = vmul.u32 %v2722, 128
        %v2851 = vmul.u32 %v2723, 128
        %v2852 = vmul.u32 %v2724, 128
        %v2853 = vmul.u32 %v2725, 128
        %v2854 = vmul.u32 %v2726, 128
        %v2855 = vmul.u32 %v2727, 128
        %v2856 = vmul.u32 %v2728, 128
        %v2857 = vmul.u32 %v2729, 128
        %v2858 = vmul.u32 %v2730, 128
        %v2859 = vmul.u32 %v2731, 128
        %v2860 = vmul.u32 %v2732, 128
        %v2861 = vmul.u32 %v2733, 128
        %v2862 = vmul.u32 %v2734, 128
        %v2863 = vmul.u32 %v2735, 128
        %v2864 = vmul.u32 %v2736, 128
        %v2865 = vmul.u32 %v2737, 128
        %v2866 = vmul.u32 %v2738, 128
        %v2867 = vmul.u32 %v2739, 128
        %v2868 = vmul.u32 %v2740, 128
        %v2869 = vmul.u32 %v2741, 128
        %v2870 = vmul.u32 %v2742, 128
        %v2871 = vmul.u32 %v2743, 128
        %v2872 = vmul.u32 %v2744, 128
        %v2873 = vmul.u32 %v2745, 128
        %v2874 = vmul.u32 %v2746, 128
        %v2875 = vmul.u32 %v2747, 128
        %v2876 = vmul.u32 %v2748, 128
        %v2877 = vmul.u32 %v2749, 128
        %v2878 = vmul.u32 %v2750, 128
        %v2879 = vmul.u32 %v2751, 128
        %v2880 = vadd.s32 %v2752, %v2606
        %v2881 = vadd.s32 %v2753, %v2606
        %v2882 = vadd.s32 %v2754, %v2606
        %v2883 = vadd.s32 %v2755, %v2606
        %v2884 = vadd.s32 %v2756, %v2606
        %v2885 = vadd.s32 %v2757, %v2606
        %v2886 = vadd.s32 %v2758, %v2606
        %v2887 = vadd.s32 %v2759, %v2606
        %v2888 = vadd.s32 %v2760, %v2606
        %v2889 = vadd.s32 %v2761, %v2606
        %v2890 = vadd.s32 %v2762, %v2606
        %v2891 = vadd.s32 %v2763, %v2606
        %v2892 = vadd.s32 %v2764, %v2606
        %v2893 = vadd.s32 %v2765, %v2606
        %v2894 = vadd.s32 %v2766, %v2606
        %v2895 = vadd.s32 %v2767, %v2606
        %v2896 = vadd.s32 %v2768, %v2606
        %v2897 = vadd.s32 %v2769, %v2606
        %v2898 = vadd.s32 %v2770, %v2606
        %v2899 = vadd.s32 %v2771, %v2606
        %v2900 = vadd.s32 %v2772, %v2606
        %v2901 = vadd.s32 %v2773, %v2606
        %v2902 = vadd.s32 %v2774, %v2606
        %v2903 = vadd.s32 %v2775, %v2606
        %v2904 = vadd.s32 %v2776, %v2606
        %v2905 = vadd.s32 %v2777, %v2606
        %v2906 = vadd.s32 %v2778, %v2606
        %v2907 = vadd.s32 %v2779, %v2606
        %v2908 = vadd.s32 %v2780, %v2606
        %v2909 = vadd.s32 %v2781, %v2606
        %v2910 = vadd.s32 %v2782, %v2606
        %v2911 = vadd.s32 %v2783, %v2606
        %v2912 = vadd.s32 %v2784, %v2606
        %v2913 = vadd.s32 %v2785, %v2606
        %v2914 = vadd.s32 %v2786, %v2606
        %v2915 = vadd.s32 %v2787, %v2606
        %v2916 = vadd.s32 %v2788, %v2606
        %v2917 = vadd.s32 %v2789, %v2606
        %v2918 = vadd.s32 %v2790, %v2606
        %v2919 = vadd.s32 %v2791, %v2606
        %v2920 = vadd.s32 %v2792, %v2606
        %v2921 = vadd.s32 %v2793, %v2606
        %v2922 = vadd.s32 %v2794, %v2606
        %v2923 = vadd.s32 %v2795, %v2606
        %v2924 = vadd.s32 %v2796, %v2606
        %v2925 = vadd.s32 %v2797, %v2606
        %v2926 = vadd.s32 %v2798, %v2606
        %v2927 = vadd.s32 %v2799, %v2606
        %v2928 = vadd.s32 %v2800, %v2606
        %v2929 = vadd.s32 %v2801, %v2606
        %v2930 = vadd.s32 %v2802, %v2606
        %v2931 = vadd.s32 %v2803, %v2606
        %v2932 = vadd.s32 %v2804, %v2606
        %v2933 = vadd.s32 %v2805, %v2606
        %v2934 = vadd.s32 %v2806, %v2606
        %v2935 = vadd.s32 %v2807, %v2606
        %v2936 = vadd.s32 %v2808, %v2606
        %v2937 = vadd.s32 %v2809, %v2606
        %v2938 = vadd.s32 %v2810, %v2606
        %v2939 = vadd.s32 %v2811, %v2606
        %v2940 = vadd.s32 %v2812, %v2606
        %v2941 = vadd.s32 %v2813, %v2606
        %v2942 = vadd.s32 %v2814, %v2606
        %v2943 = vadd.s32 %v2815, %v2606
        %v2944 = vadd.s32 %v2816, %v2606
        %v2945 = vadd.s32 %v2817, %v2606
        %v2946 = vadd.s32 %v2818, %v2606
        %v2947 = vadd.s32 %v2819, %v2606
        %v2948 = vadd.s32 %v2820, %v2606
        %v2949 = vadd.s32 %v2821, %v2606
        %v2950 = vadd.s32 %v2822, %v2606
        %v2951 = vadd.s32 %v2823, %v2606
        %v2952 = vadd.s32 %v2824, %v2606
        %v2953 = vadd.s32 %v2825, %v2606
        %v2954 = vadd.s32 %v2826, %v2606
        %v2955 = vadd.s32 %v2827, %v2606
        %v2956 = vadd.s32 %v2828, %v2606
        %v2957 = vadd.s32 %v2829, %v2606
        %v2958 = vadd.s32 %v2830, %v2606
        %v2959 = vadd.s32 %v2831, %v2606
        %v2960 = vadd.s32 %v2832, %v2606
        %v2961 = vadd.s32 %v2833, %v2606
        %v2962 = vadd.s32 %v2834, %v2606
        %v2963 = vadd.s32 %v2835, %v2606
        %v2964 = vadd.s32 %v2836, %v2606
        %v2965 = vadd.s32 %v2837, %v2606
        %v2966 = vadd.s32 %v2838, %v2606
        %v2967 = vadd.s32 %v2839, %v2606
        %v2968 = vadd.s32 %v2840, %v2606
        %v2969 = vadd.s32 %v2841, %v2606
        %v2970 = vadd.s32 %v2842, %v2606
        %v2971 = vadd.s32 %v2843, %v2606
        %v2972 = vadd.s32 %v2844, %v2606
        %v2973 = vadd.s32 %v2845, %v2606
        %v2974 = vadd.s32 %v2846, %v2606
        %v2975 = vadd.s32 %v2847, %v2606
        %v2976 = vadd.s32 %v2848, %v2606
        %v2977 = vadd.s32 %v2849, %v2606
        %v2978 = vadd.s32 %v2850, %v2606
        %v2979 = vadd.s32 %v2851, %v2606
        %v2980 = vadd.s32 %v2852, %v2606
        %v2981 = vadd.s32 %v2853, %v2606
        %v2982 = vadd.s32 %v2854, %v2606
        %v2983 = vadd.s32 %v2855, %v2606
        %v2984 = vadd.s32 %v2856, %v2606
        %v2985 = vadd.s32 %v2857, %v2606
        %v2986 = vadd.s32 %v2858, %v2606
        %v2987 = vadd.s32 %v2859, %v2606
        %v2988 = vadd.s32 %v2860, %v2606
        %v2989 = vadd.s32 %v2861, %v2606
        %v2990 = vadd.s32 %v2862, %v2606
        %v2991 = vadd.s32 %v2863, %v2606
        %v2992 = vadd.s32 %v2864, %v2606
        %v2993 = vadd.s32 %v2865, %v2606
        %v2994 = vadd.s32 %v2866, %v2606
        %v2995 = vadd.s32 %v2867, %v2606
        %v2996 = vadd.s32 %v2868, %v2606
        %v2997 = vadd.s32 %v2869, %v2606
        %v2998 = vadd.s32 %v2870, %v2606
        %v2999 = vadd.s32 %v2871, %v2606
        %v3000 = vadd.s32 %v2872, %v2606
        %v3001 = vadd.s32 %v2873, %v2606
        %v3002 = vadd.s32 %v2874, %v2606
        %v3003 = vadd.s32 %v2875, %v2606
        %v3004 = vadd.s32 %v2876, %v2606
        %v3005 = vadd.s32 %v2877, %v2606
        %v3006 = vadd.s32 %v2878, %v2606
        %v3007 = vadd.s32 %v2879, %v2606
        %s3008 = sld [smem:[#allocation3]]
        %s3009 = sadd.s32 %s3008, 2654435769
        %s3010 = sshrl.u32 %s3009, 16
        %s3011 = sxor.u32 %s3009, %s3010
        %s3012 = smul.u32 %s3011, 2146121005
        %s3013 = sshrl.u32 %s3012, 15
        %s3014 = sxor.u32 %s3012, %s3013
        %s3015 = smul.u32 %s3014, 2221713035
        %s3016 = sshrl.u32 %s3015, 16
        %s3017 = sxor.u32 %s3015, %s3016
        %v3018 = vstv %s3017
        %v3019 = vxor.u32 %v2880, %v3018
        %v3020 = vxor.u32 %v2881, %v3018
        %v3021 = vxor.u32 %v2882, %v3018
        %v3022 = vxor.u32 %v2883, %v3018
        %v3023 = vxor.u32 %v2884, %v3018
        %v3024 = vxor.u32 %v2885, %v3018
        %v3025 = vxor.u32 %v2886, %v3018
        %v3026 = vxor.u32 %v2887, %v3018
        %v3027 = vxor.u32 %v2888, %v3018
        %v3028 = vxor.u32 %v2889, %v3018
        %v3029 = vxor.u32 %v2890, %v3018
        %v3030 = vxor.u32 %v2891, %v3018
        %v3031 = vxor.u32 %v2892, %v3018
        %v3032 = vxor.u32 %v2893, %v3018
        %v3033 = vxor.u32 %v2894, %v3018
        %v3034 = vxor.u32 %v2895, %v3018
        %v3035 = vxor.u32 %v2896, %v3018
        %v3036 = vxor.u32 %v2897, %v3018
        %v3037 = vxor.u32 %v2898, %v3018
        %v3038 = vxor.u32 %v2899, %v3018
        %v3039 = vxor.u32 %v2900, %v3018
        %v3040 = vxor.u32 %v2901, %v3018
        %v3041 = vxor.u32 %v2902, %v3018
        %v3042 = vxor.u32 %v2903, %v3018
        %v3043 = vxor.u32 %v2904, %v3018
        %v3044 = vxor.u32 %v2905, %v3018
        %v3045 = vxor.u32 %v2906, %v3018
        %v3046 = vxor.u32 %v2907, %v3018
        %v3047 = vxor.u32 %v2908, %v3018
        %v3048 = vxor.u32 %v2909, %v3018
        %v3049 = vxor.u32 %v2910, %v3018
        %v3050 = vxor.u32 %v2911, %v3018
        %v3051 = vxor.u32 %v2912, %v3018
        %v3052 = vxor.u32 %v2913, %v3018
        %v3053 = vxor.u32 %v2914, %v3018
        %v3054 = vxor.u32 %v2915, %v3018
        %v3055 = vxor.u32 %v2916, %v3018
        %v3056 = vxor.u32 %v2917, %v3018
        %v3057 = vxor.u32 %v2918, %v3018
        %v3058 = vxor.u32 %v2919, %v3018
        %v3059 = vxor.u32 %v2920, %v3018
        %v3060 = vxor.u32 %v2921, %v3018
        %v3061 = vxor.u32 %v2922, %v3018
        %v3062 = vxor.u32 %v2923, %v3018
        %v3063 = vxor.u32 %v2924, %v3018
        %v3064 = vxor.u32 %v2925, %v3018
        %v3065 = vxor.u32 %v2926, %v3018
        %v3066 = vxor.u32 %v2927, %v3018
        %v3067 = vxor.u32 %v2928, %v3018
        %v3068 = vxor.u32 %v2929, %v3018
        %v3069 = vxor.u32 %v2930, %v3018
        %v3070 = vxor.u32 %v2931, %v3018
        %v3071 = vxor.u32 %v2932, %v3018
        %v3072 = vxor.u32 %v2933, %v3018
        %v3073 = vxor.u32 %v2934, %v3018
        %v3074 = vxor.u32 %v2935, %v3018
        %v3075 = vxor.u32 %v2936, %v3018
        %v3076 = vxor.u32 %v2937, %v3018
        %v3077 = vxor.u32 %v2938, %v3018
        %v3078 = vxor.u32 %v2939, %v3018
        %v3079 = vxor.u32 %v2940, %v3018
        %v3080 = vxor.u32 %v2941, %v3018
        %v3081 = vxor.u32 %v2942, %v3018
        %v3082 = vxor.u32 %v2943, %v3018
        %v3083 = vxor.u32 %v2944, %v3018
        %v3084 = vxor.u32 %v2945, %v3018
        %v3085 = vxor.u32 %v2946, %v3018
        %v3086 = vxor.u32 %v2947, %v3018
        %v3087 = vxor.u32 %v2948, %v3018
        %v3088 = vxor.u32 %v2949, %v3018
        %v3089 = vxor.u32 %v2950, %v3018
        %v3090 = vxor.u32 %v2951, %v3018
        %v3091 = vxor.u32 %v2952, %v3018
        %v3092 = vxor.u32 %v2953, %v3018
        %v3093 = vxor.u32 %v2954, %v3018
        %v3094 = vxor.u32 %v2955, %v3018
        %v3095 = vxor.u32 %v2956, %v3018
        %v3096 = vxor.u32 %v2957, %v3018
        %v3097 = vxor.u32 %v2958, %v3018
        %v3098 = vxor.u32 %v2959, %v3018
        %v3099 = vxor.u32 %v2960, %v3018
        %v3100 = vxor.u32 %v2961, %v3018
        %v3101 = vxor.u32 %v2962, %v3018
        %v3102 = vxor.u32 %v2963, %v3018
        %v3103 = vxor.u32 %v2964, %v3018
        %v3104 = vxor.u32 %v2965, %v3018
        %v3105 = vxor.u32 %v2966, %v3018
        %v3106 = vxor.u32 %v2967, %v3018
        %v3107 = vxor.u32 %v2968, %v3018
        %v3108 = vxor.u32 %v2969, %v3018
        %v3109 = vxor.u32 %v2970, %v3018
        %v3110 = vxor.u32 %v2971, %v3018
        %v3111 = vxor.u32 %v2972, %v3018
        %v3112 = vxor.u32 %v2973, %v3018
        %v3113 = vxor.u32 %v2974, %v3018
        %v3114 = vxor.u32 %v2975, %v3018
        %v3115 = vxor.u32 %v2976, %v3018
        %v3116 = vxor.u32 %v2977, %v3018
        %v3117 = vxor.u32 %v2978, %v3018
        %v3118 = vxor.u32 %v2979, %v3018
        %v3119 = vxor.u32 %v2980, %v3018
        %v3120 = vxor.u32 %v2981, %v3018
        %v3121 = vxor.u32 %v2982, %v3018
        %v3122 = vxor.u32 %v2983, %v3018
        %v3123 = vxor.u32 %v2984, %v3018
        %v3124 = vxor.u32 %v2985, %v3018
        %v3125 = vxor.u32 %v2986, %v3018
        %v3126 = vxor.u32 %v2987, %v3018
        %v3127 = vxor.u32 %v2988, %v3018
        %v3128 = vxor.u32 %v2989, %v3018
        %v3129 = vxor.u32 %v2990, %v3018
        %v3130 = vxor.u32 %v2991, %v3018
        %v3131 = vxor.u32 %v2992, %v3018
        %v3132 = vxor.u32 %v2993, %v3018
        %v3133 = vxor.u32 %v2994, %v3018
        %v3134 = vxor.u32 %v2995, %v3018
        %v3135 = vxor.u32 %v2996, %v3018
        %v3136 = vxor.u32 %v2997, %v3018
        %v3137 = vxor.u32 %v2998, %v3018
        %v3138 = vxor.u32 %v2999, %v3018
        %v3139 = vxor.u32 %v3000, %v3018
        %v3140 = vxor.u32 %v3001, %v3018
        %v3141 = vxor.u32 %v3002, %v3018
        %v3142 = vxor.u32 %v3003, %v3018
        %v3143 = vxor.u32 %v3004, %v3018
        %v3144 = vxor.u32 %v3005, %v3018
        %v3145 = vxor.u32 %v3006, %v3018
        %v3146 = vxor.u32 %v3007, %v3018
        %v3147 = vshrl.u32 %v3019, 16
        %v3148 = vshrl.u32 %v3020, 16
        %v3149 = vshrl.u32 %v3021, 16
        %v3150 = vshrl.u32 %v3022, 16
        %v3151 = vshrl.u32 %v3023, 16
        %v3152 = vshrl.u32 %v3024, 16
        %v3153 = vshrl.u32 %v3025, 16
        %v3154 = vshrl.u32 %v3026, 16
        %v3155 = vshrl.u32 %v3027, 16
        %v3156 = vshrl.u32 %v3028, 16
        %v3157 = vshrl.u32 %v3029, 16
        %v3158 = vshrl.u32 %v3030, 16
        %v3159 = vshrl.u32 %v3031, 16
        %v3160 = vshrl.u32 %v3032, 16
        %v3161 = vshrl.u32 %v3033, 16
        %v3162 = vshrl.u32 %v3034, 16
        %v3163 = vshrl.u32 %v3035, 16
        %v3164 = vshrl.u32 %v3036, 16
        %v3165 = vshrl.u32 %v3037, 16
        %v3166 = vshrl.u32 %v3038, 16
        %v3167 = vshrl.u32 %v3039, 16
        %v3168 = vshrl.u32 %v3040, 16
        %v3169 = vshrl.u32 %v3041, 16
        %v3170 = vshrl.u32 %v3042, 16
        %v3171 = vshrl.u32 %v3043, 16
        %v3172 = vshrl.u32 %v3044, 16
        %v3173 = vshrl.u32 %v3045, 16
        %v3174 = vshrl.u32 %v3046, 16
        %v3175 = vshrl.u32 %v3047, 16
        %v3176 = vshrl.u32 %v3048, 16
        %v3177 = vshrl.u32 %v3049, 16
        %v3178 = vshrl.u32 %v3050, 16
        %v3179 = vshrl.u32 %v3051, 16
        %v3180 = vshrl.u32 %v3052, 16
        %v3181 = vshrl.u32 %v3053, 16
        %v3182 = vshrl.u32 %v3054, 16
        %v3183 = vshrl.u32 %v3055, 16
        %v3184 = vshrl.u32 %v3056, 16
        %v3185 = vshrl.u32 %v3057, 16
        %v3186 = vshrl.u32 %v3058, 16
        %v3187 = vshrl.u32 %v3059, 16
        %v3188 = vshrl.u32 %v3060, 16
        %v3189 = vshrl.u32 %v3061, 16
        %v3190 = vshrl.u32 %v3062, 16
        %v3191 = vshrl.u32 %v3063, 16
        %v3192 = vshrl.u32 %v3064, 16
        %v3193 = vshrl.u32 %v3065, 16
        %v3194 = vshrl.u32 %v3066, 16
        %v3195 = vshrl.u32 %v3067, 16
        %v3196 = vshrl.u32 %v3068, 16
        %v3197 = vshrl.u32 %v3069, 16
        %v3198 = vshrl.u32 %v3070, 16
        %v3199 = vshrl.u32 %v3071, 16
        %v3200 = vshrl.u32 %v3072, 16
        %v3201 = vshrl.u32 %v3073, 16
        %v3202 = vshrl.u32 %v3074, 16
        %v3203 = vshrl.u32 %v3075, 16
        %v3204 = vshrl.u32 %v3076, 16
        %v3205 = vshrl.u32 %v3077, 16
        %v3206 = vshrl.u32 %v3078, 16
        %v3207 = vshrl.u32 %v3079, 16
        %v3208 = vshrl.u32 %v3080, 16
        %v3209 = vshrl.u32 %v3081, 16
        %v3210 = vshrl.u32 %v3082, 16
        %v3211 = vshrl.u32 %v3083, 16
        %v3212 = vshrl.u32 %v3084, 16
        %v3213 = vshrl.u32 %v3085, 16
        %v3214 = vshrl.u32 %v3086, 16
        %v3215 = vshrl.u32 %v3087, 16
        %v3216 = vshrl.u32 %v3088, 16
        %v3217 = vshrl.u32 %v3089, 16
        %v3218 = vshrl.u32 %v3090, 16
        %v3219 = vshrl.u32 %v3091, 16
        %v3220 = vshrl.u32 %v3092, 16
        %v3221 = vshrl.u32 %v3093, 16
        %v3222 = vshrl.u32 %v3094, 16
        %v3223 = vshrl.u32 %v3095, 16
        %v3224 = vshrl.u32 %v3096, 16
        %v3225 = vshrl.u32 %v3097, 16
        %v3226 = vshrl.u32 %v3098, 16
        %v3227 = vshrl.u32 %v3099, 16
        %v3228 = vshrl.u32 %v3100, 16
        %v3229 = vshrl.u32 %v3101, 16
        %v3230 = vshrl.u32 %v3102, 16
        %v3231 = vshrl.u32 %v3103, 16
        %v3232 = vshrl.u32 %v3104, 16
        %v3233 = vshrl.u32 %v3105, 16
        %v3234 = vshrl.u32 %v3106, 16
        %v3235 = vshrl.u32 %v3107, 16
        %v3236 = vshrl.u32 %v3108, 16
        %v3237 = vshrl.u32 %v3109, 16
        %v3238 = vshrl.u32 %v3110, 16
        %v3239 = vshrl.u32 %v3111, 16
        %v3240 = vshrl.u32 %v3112, 16
        %v3241 = vshrl.u32 %v3113, 16
        %v3242 = vshrl.u32 %v3114, 16
        %v3243 = vshrl.u32 %v3115, 16
        %v3244 = vshrl.u32 %v3116, 16
        %v3245 = vshrl.u32 %v3117, 16
        %v3246 = vshrl.u32 %v3118, 16
        %v3247 = vshrl.u32 %v3119, 16
        %v3248 = vshrl.u32 %v3120, 16
        %v3249 = vshrl.u32 %v3121, 16
        %v3250 = vshrl.u32 %v3122, 16
        %v3251 = vshrl.u32 %v3123, 16
        %v3252 = vshrl.u32 %v3124, 16
        %v3253 = vshrl.u32 %v3125, 16
        %v3254 = vshrl.u32 %v3126, 16
        %v3255 = vshrl.u32 %v3127, 16
        %v3256 = vshrl.u32 %v3128, 16
        %v3257 = vshrl.u32 %v3129, 16
        %v3258 = vshrl.u32 %v3130, 16
        %v3259 = vshrl.u32 %v3131, 16
        %v3260 = vshrl.u32 %v3132, 16
        %v3261 = vshrl.u32 %v3133, 16
        %v3262 = vshrl.u32 %v3134, 16
        %v3263 = vshrl.u32 %v3135, 16
        %v3264 = vshrl.u32 %v3136, 16
        %v3265 = vshrl.u32 %v3137, 16
        %v3266 = vshrl.u32 %v3138, 16
        %v3267 = vshrl.u32 %v3139, 16
        %v3268 = vshrl.u32 %v3140, 16
        %v3269 = vshrl.u32 %v3141, 16
        %v3270 = vshrl.u32 %v3142, 16
        %v3271 = vshrl.u32 %v3143, 16
        %v3272 = vshrl.u32 %v3144, 16
        %v3273 = vshrl.u32 %v3145, 16
        %v3274 = vshrl.u32 %v3146, 16
        %v3275 = vxor.u32 %v3019, %v3147
        %v3276 = vxor.u32 %v3020, %v3148
        %v3277 = vxor.u32 %v3021, %v3149
        %v3278 = vxor.u32 %v3022, %v3150
        %v3279 = vxor.u32 %v3023, %v3151
        %v3280 = vxor.u32 %v3024, %v3152
        %v3281 = vxor.u32 %v3025, %v3153
        %v3282 = vxor.u32 %v3026, %v3154
        %v3283 = vxor.u32 %v3027, %v3155
        %v3284 = vxor.u32 %v3028, %v3156
        %v3285 = vxor.u32 %v3029, %v3157
        %v3286 = vxor.u32 %v3030, %v3158
        %v3287 = vxor.u32 %v3031, %v3159
        %v3288 = vxor.u32 %v3032, %v3160
        %v3289 = vxor.u32 %v3033, %v3161
        %v3290 = vxor.u32 %v3034, %v3162
        %v3291 = vxor.u32 %v3035, %v3163
        %v3292 = vxor.u32 %v3036, %v3164
        %v3293 = vxor.u32 %v3037, %v3165
        %v3294 = vxor.u32 %v3038, %v3166
        %v3295 = vxor.u32 %v3039, %v3167
        %v3296 = vxor.u32 %v3040, %v3168
        %v3297 = vxor.u32 %v3041, %v3169
        %v3298 = vxor.u32 %v3042, %v3170
        %v3299 = vxor.u32 %v3043, %v3171
        %v3300 = vxor.u32 %v3044, %v3172
        %v3301 = vxor.u32 %v3045, %v3173
        %v3302 = vxor.u32 %v3046, %v3174
        %v3303 = vxor.u32 %v3047, %v3175
        %v3304 = vxor.u32 %v3048, %v3176
        %v3305 = vxor.u32 %v3049, %v3177
        %v3306 = vxor.u32 %v3050, %v3178
        %v3307 = vxor.u32 %v3051, %v3179
        %v3308 = vxor.u32 %v3052, %v3180
        %v3309 = vxor.u32 %v3053, %v3181
        %v3310 = vxor.u32 %v3054, %v3182
        %v3311 = vxor.u32 %v3055, %v3183
        %v3312 = vxor.u32 %v3056, %v3184
        %v3313 = vxor.u32 %v3057, %v3185
        %v3314 = vxor.u32 %v3058, %v3186
        %v3315 = vxor.u32 %v3059, %v3187
        %v3316 = vxor.u32 %v3060, %v3188
        %v3317 = vxor.u32 %v3061, %v3189
        %v3318 = vxor.u32 %v3062, %v3190
        %v3319 = vxor.u32 %v3063, %v3191
        %v3320 = vxor.u32 %v3064, %v3192
        %v3321 = vxor.u32 %v3065, %v3193
        %v3322 = vxor.u32 %v3066, %v3194
        %v3323 = vxor.u32 %v3067, %v3195
        %v3324 = vxor.u32 %v3068, %v3196
        %v3325 = vxor.u32 %v3069, %v3197
        %v3326 = vxor.u32 %v3070, %v3198
        %v3327 = vxor.u32 %v3071, %v3199
        %v3328 = vxor.u32 %v3072, %v3200
        %v3329 = vxor.u32 %v3073, %v3201
        %v3330 = vxor.u32 %v3074, %v3202
        %v3331 = vxor.u32 %v3075, %v3203
        %v3332 = vxor.u32 %v3076, %v3204
        %v3333 = vxor.u32 %v3077, %v3205
        %v3334 = vxor.u32 %v3078, %v3206
        %v3335 = vxor.u32 %v3079, %v3207
        %v3336 = vxor.u32 %v3080, %v3208
        %v3337 = vxor.u32 %v3081, %v3209
        %v3338 = vxor.u32 %v3082, %v3210
        %v3339 = vxor.u32 %v3083, %v3211
        %v3340 = vxor.u32 %v3084, %v3212
        %v3341 = vxor.u32 %v3085, %v3213
        %v3342 = vxor.u32 %v3086, %v3214
        %v3343 = vxor.u32 %v3087, %v3215
        %v3344 = vxor.u32 %v3088, %v3216
        %v3345 = vxor.u32 %v3089, %v3217
        %v3346 = vxor.u32 %v3090, %v3218
        %v3347 = vxor.u32 %v3091, %v3219
        %v3348 = vxor.u32 %v3092, %v3220
        %v3349 = vxor.u32 %v3093, %v3221
        %v3350 = vxor.u32 %v3094, %v3222
        %v3351 = vxor.u32 %v3095, %v3223
        %v3352 = vxor.u32 %v3096, %v3224
        %v3353 = vxor.u32 %v3097, %v3225
        %v3354 = vxor.u32 %v3098, %v3226
        %v3355 = vxor.u32 %v3099, %v3227
        %v3356 = vxor.u32 %v3100, %v3228
        %v3357 = vxor.u32 %v3101, %v3229
        %v3358 = vxor.u32 %v3102, %v3230
        %v3359 = vxor.u32 %v3103, %v3231
        %v3360 = vxor.u32 %v3104, %v3232
        %v3361 = vxor.u32 %v3105, %v3233
        %v3362 = vxor.u32 %v3106, %v3234
        %v3363 = vxor.u32 %v3107, %v3235
        %v3364 = vxor.u32 %v3108, %v3236
        %v3365 = vxor.u32 %v3109, %v3237
        %v3366 = vxor.u32 %v3110, %v3238
        %v3367 = vxor.u32 %v3111, %v3239
        %v3368 = vxor.u32 %v3112, %v3240
        %v3369 = vxor.u32 %v3113, %v3241
        %v3370 = vxor.u32 %v3114, %v3242
        %v3371 = vxor.u32 %v3115, %v3243
        %v3372 = vxor.u32 %v3116, %v3244
        %v3373 = vxor.u32 %v3117, %v3245
        %v3374 = vxor.u32 %v3118, %v3246
        %v3375 = vxor.u32 %v3119, %v3247
        %v3376 = vxor.u32 %v3120, %v3248
        %v3377 = vxor.u32 %v3121, %v3249
        %v3378 = vxor.u32 %v3122, %v3250
        %v3379 = vxor.u32 %v3123, %v3251
        %v3380 = vxor.u32 %v3124, %v3252
        %v3381 = vxor.u32 %v3125, %v3253
        %v3382 = vxor.u32 %v3126, %v3254
        %v3383 = vxor.u32 %v3127, %v3255
        %v3384 = vxor.u32 %v3128, %v3256
        %v3385 = vxor.u32 %v3129, %v3257
        %v3386 = vxor.u32 %v3130, %v3258
        %v3387 = vxor.u32 %v3131, %v3259
        %v3388 = vxor.u32 %v3132, %v3260
        %v3389 = vxor.u32 %v3133, %v3261
        %v3390 = vxor.u32 %v3134, %v3262
        %v3391 = vxor.u32 %v3135, %v3263
        %v3392 = vxor.u32 %v3136, %v3264
        %v3393 = vxor.u32 %v3137, %v3265
        %v3394 = vxor.u32 %v3138, %v3266
        %v3395 = vxor.u32 %v3139, %v3267
        %v3396 = vxor.u32 %v3140, %v3268
        %v3397 = vxor.u32 %v3141, %v3269
        %v3398 = vxor.u32 %v3142, %v3270
        %v3399 = vxor.u32 %v3143, %v3271
        %v3400 = vxor.u32 %v3144, %v3272
        %v3401 = vxor.u32 %v3145, %v3273
        %v3402 = vxor.u32 %v3146, %v3274
        %v3403 = vmul.u32 %v3275, 2146121005
        %v3404 = vmul.u32 %v3276, 2146121005
        %v3405 = vmul.u32 %v3277, 2146121005
        %v3406 = vmul.u32 %v3278, 2146121005
        %v3407 = vmul.u32 %v3279, 2146121005
        %v3408 = vmul.u32 %v3280, 2146121005
        %v3409 = vmul.u32 %v3281, 2146121005
        %v3410 = vmul.u32 %v3282, 2146121005
        %v3411 = vmul.u32 %v3283, 2146121005
        %v3412 = vmul.u32 %v3284, 2146121005
        %v3413 = vmul.u32 %v3285, 2146121005
        %v3414 = vmul.u32 %v3286, 2146121005
        %v3415 = vmul.u32 %v3287, 2146121005
        %v3416 = vmul.u32 %v3288, 2146121005
        %v3417 = vmul.u32 %v3289, 2146121005
        %v3418 = vmul.u32 %v3290, 2146121005
        %v3419 = vmul.u32 %v3291, 2146121005
        %v3420 = vmul.u32 %v3292, 2146121005
        %v3421 = vmul.u32 %v3293, 2146121005
        %v3422 = vmul.u32 %v3294, 2146121005
        %v3423 = vmul.u32 %v3295, 2146121005
        %v3424 = vmul.u32 %v3296, 2146121005
        %v3425 = vmul.u32 %v3297, 2146121005
        %v3426 = vmul.u32 %v3298, 2146121005
        %v3427 = vmul.u32 %v3299, 2146121005
        %v3428 = vmul.u32 %v3300, 2146121005
        %v3429 = vmul.u32 %v3301, 2146121005
        %v3430 = vmul.u32 %v3302, 2146121005
        %v3431 = vmul.u32 %v3303, 2146121005
        %v3432 = vmul.u32 %v3304, 2146121005
        %v3433 = vmul.u32 %v3305, 2146121005
        %v3434 = vmul.u32 %v3306, 2146121005
        %v3435 = vmul.u32 %v3307, 2146121005
        %v3436 = vmul.u32 %v3308, 2146121005
        %v3437 = vmul.u32 %v3309, 2146121005
        %v3438 = vmul.u32 %v3310, 2146121005
        %v3439 = vmul.u32 %v3311, 2146121005
        %v3440 = vmul.u32 %v3312, 2146121005
        %v3441 = vmul.u32 %v3313, 2146121005
        %v3442 = vmul.u32 %v3314, 2146121005
        %v3443 = vmul.u32 %v3315, 2146121005
        %v3444 = vmul.u32 %v3316, 2146121005
        %v3445 = vmul.u32 %v3317, 2146121005
        %v3446 = vmul.u32 %v3318, 2146121005
        %v3447 = vmul.u32 %v3319, 2146121005
        %v3448 = vmul.u32 %v3320, 2146121005
        %v3449 = vmul.u32 %v3321, 2146121005
        %v3450 = vmul.u32 %v3322, 2146121005
        %v3451 = vmul.u32 %v3323, 2146121005
        %v3452 = vmul.u32 %v3324, 2146121005
        %v3453 = vmul.u32 %v3325, 2146121005
        %v3454 = vmul.u32 %v3326, 2146121005
        %v3455 = vmul.u32 %v3327, 2146121005
        %v3456 = vmul.u32 %v3328, 2146121005
        %v3457 = vmul.u32 %v3329, 2146121005
        %v3458 = vmul.u32 %v3330, 2146121005
        %v3459 = vmul.u32 %v3331, 2146121005
        %v3460 = vmul.u32 %v3332, 2146121005
        %v3461 = vmul.u32 %v3333, 2146121005
        %v3462 = vmul.u32 %v3334, 2146121005
        %v3463 = vmul.u32 %v3335, 2146121005
        %v3464 = vmul.u32 %v3336, 2146121005
        %v3465 = vmul.u32 %v3337, 2146121005
        %v3466 = vmul.u32 %v3338, 2146121005
        %v3467 = vmul.u32 %v3339, 2146121005
        %v3468 = vmul.u32 %v3340, 2146121005
        %v3469 = vmul.u32 %v3341, 2146121005
        %v3470 = vmul.u32 %v3342, 2146121005
        %v3471 = vmul.u32 %v3343, 2146121005
        %v3472 = vmul.u32 %v3344, 2146121005
        %v3473 = vmul.u32 %v3345, 2146121005
        %v3474 = vmul.u32 %v3346, 2146121005
        %v3475 = vmul.u32 %v3347, 2146121005
        %v3476 = vmul.u32 %v3348, 2146121005
        %v3477 = vmul.u32 %v3349, 2146121005
        %v3478 = vmul.u32 %v3350, 2146121005
        %v3479 = vmul.u32 %v3351, 2146121005
        %v3480 = vmul.u32 %v3352, 2146121005
        %v3481 = vmul.u32 %v3353, 2146121005
        %v3482 = vmul.u32 %v3354, 2146121005
        %v3483 = vmul.u32 %v3355, 2146121005
        %v3484 = vmul.u32 %v3356, 2146121005
        %v3485 = vmul.u32 %v3357, 2146121005
        %v3486 = vmul.u32 %v3358, 2146121005
        %v3487 = vmul.u32 %v3359, 2146121005
        %v3488 = vmul.u32 %v3360, 2146121005
        %v3489 = vmul.u32 %v3361, 2146121005
        %v3490 = vmul.u32 %v3362, 2146121005
        %v3491 = vmul.u32 %v3363, 2146121005
        %v3492 = vmul.u32 %v3364, 2146121005
        %v3493 = vmul.u32 %v3365, 2146121005
        %v3494 = vmul.u32 %v3366, 2146121005
        %v3495 = vmul.u32 %v3367, 2146121005
        %v3496 = vmul.u32 %v3368, 2146121005
        %v3497 = vmul.u32 %v3369, 2146121005
        %v3498 = vmul.u32 %v3370, 2146121005
        %v3499 = vmul.u32 %v3371, 2146121005
        %v3500 = vmul.u32 %v3372, 2146121005
        %v3501 = vmul.u32 %v3373, 2146121005
        %v3502 = vmul.u32 %v3374, 2146121005
        %v3503 = vmul.u32 %v3375, 2146121005
        %v3504 = vmul.u32 %v3376, 2146121005
        %v3505 = vmul.u32 %v3377, 2146121005
        %v3506 = vmul.u32 %v3378, 2146121005
        %v3507 = vmul.u32 %v3379, 2146121005
        %v3508 = vmul.u32 %v3380, 2146121005
        %v3509 = vmul.u32 %v3381, 2146121005
        %v3510 = vmul.u32 %v3382, 2146121005
        %v3511 = vmul.u32 %v3383, 2146121005
        %v3512 = vmul.u32 %v3384, 2146121005
        %v3513 = vmul.u32 %v3385, 2146121005
        %v3514 = vmul.u32 %v3386, 2146121005
        %v3515 = vmul.u32 %v3387, 2146121005
        %v3516 = vmul.u32 %v3388, 2146121005
        %v3517 = vmul.u32 %v3389, 2146121005
        %v3518 = vmul.u32 %v3390, 2146121005
        %v3519 = vmul.u32 %v3391, 2146121005
        %v3520 = vmul.u32 %v3392, 2146121005
        %v3521 = vmul.u32 %v3393, 2146121005
        %v3522 = vmul.u32 %v3394, 2146121005
        %v3523 = vmul.u32 %v3395, 2146121005
        %v3524 = vmul.u32 %v3396, 2146121005
        %v3525 = vmul.u32 %v3397, 2146121005
        %v3526 = vmul.u32 %v3398, 2146121005
        %v3527 = vmul.u32 %v3399, 2146121005
        %v3528 = vmul.u32 %v3400, 2146121005
        %v3529 = vmul.u32 %v3401, 2146121005
        %v3530 = vmul.u32 %v3402, 2146121005
        %v3531 = vshrl.u32 %v3403, 15
        %v3532 = vshrl.u32 %v3404, 15
        %v3533 = vshrl.u32 %v3405, 15
        %v3534 = vshrl.u32 %v3406, 15
        %v3535 = vshrl.u32 %v3407, 15
        %v3536 = vshrl.u32 %v3408, 15
        %v3537 = vshrl.u32 %v3409, 15
        %v3538 = vshrl.u32 %v3410, 15
        %v3539 = vshrl.u32 %v3411, 15
        %v3540 = vshrl.u32 %v3412, 15
        %v3541 = vshrl.u32 %v3413, 15
        %v3542 = vshrl.u32 %v3414, 15
        %v3543 = vshrl.u32 %v3415, 15
        %v3544 = vshrl.u32 %v3416, 15
        %v3545 = vshrl.u32 %v3417, 15
        %v3546 = vshrl.u32 %v3418, 15
        %v3547 = vshrl.u32 %v3419, 15
        %v3548 = vshrl.u32 %v3420, 15
        %v3549 = vshrl.u32 %v3421, 15
        %v3550 = vshrl.u32 %v3422, 15
        %v3551 = vshrl.u32 %v3423, 15
        %v3552 = vshrl.u32 %v3424, 15
        %v3553 = vshrl.u32 %v3425, 15
        %v3554 = vshrl.u32 %v3426, 15
        %v3555 = vshrl.u32 %v3427, 15
        %v3556 = vshrl.u32 %v3428, 15
        %v3557 = vshrl.u32 %v3429, 15
        %v3558 = vshrl.u32 %v3430, 15
        %v3559 = vshrl.u32 %v3431, 15
        %v3560 = vshrl.u32 %v3432, 15
        %v3561 = vshrl.u32 %v3433, 15
        %v3562 = vshrl.u32 %v3434, 15
        %v3563 = vshrl.u32 %v3435, 15
        %v3564 = vshrl.u32 %v3436, 15
        %v3565 = vshrl.u32 %v3437, 15
        %v3566 = vshrl.u32 %v3438, 15
        %v3567 = vshrl.u32 %v3439, 15
        %v3568 = vshrl.u32 %v3440, 15
        %v3569 = vshrl.u32 %v3441, 15
        %v3570 = vshrl.u32 %v3442, 15
        %v3571 = vshrl.u32 %v3443, 15
        %v3572 = vshrl.u32 %v3444, 15
        %v3573 = vshrl.u32 %v3445, 15
        %v3574 = vshrl.u32 %v3446, 15
        %v3575 = vshrl.u32 %v3447, 15
        %v3576 = vshrl.u32 %v3448, 15
        %v3577 = vshrl.u32 %v3449, 15
        %v3578 = vshrl.u32 %v3450, 15
        %v3579 = vshrl.u32 %v3451, 15
        %v3580 = vshrl.u32 %v3452, 15
        %v3581 = vshrl.u32 %v3453, 15
        %v3582 = vshrl.u32 %v3454, 15
        %v3583 = vshrl.u32 %v3455, 15
        %v3584 = vshrl.u32 %v3456, 15
        %v3585 = vshrl.u32 %v3457, 15
        %v3586 = vshrl.u32 %v3458, 15
        %v3587 = vshrl.u32 %v3459, 15
        %v3588 = vshrl.u32 %v3460, 15
        %v3589 = vshrl.u32 %v3461, 15
        %v3590 = vshrl.u32 %v3462, 15
        %v3591 = vshrl.u32 %v3463, 15
        %v3592 = vshrl.u32 %v3464, 15
        %v3593 = vshrl.u32 %v3465, 15
        %v3594 = vshrl.u32 %v3466, 15
        %v3595 = vshrl.u32 %v3467, 15
        %v3596 = vshrl.u32 %v3468, 15
        %v3597 = vshrl.u32 %v3469, 15
        %v3598 = vshrl.u32 %v3470, 15
        %v3599 = vshrl.u32 %v3471, 15
        %v3600 = vshrl.u32 %v3472, 15
        %v3601 = vshrl.u32 %v3473, 15
        %v3602 = vshrl.u32 %v3474, 15
        %v3603 = vshrl.u32 %v3475, 15
        %v3604 = vshrl.u32 %v3476, 15
        %v3605 = vshrl.u32 %v3477, 15
        %v3606 = vshrl.u32 %v3478, 15
        %v3607 = vshrl.u32 %v3479, 15
        %v3608 = vshrl.u32 %v3480, 15
        %v3609 = vshrl.u32 %v3481, 15
        %v3610 = vshrl.u32 %v3482, 15
        %v3611 = vshrl.u32 %v3483, 15
        %v3612 = vshrl.u32 %v3484, 15
        %v3613 = vshrl.u32 %v3485, 15
        %v3614 = vshrl.u32 %v3486, 15
        %v3615 = vshrl.u32 %v3487, 15
        %v3616 = vshrl.u32 %v3488, 15
        %v3617 = vshrl.u32 %v3489, 15
        %v3618 = vshrl.u32 %v3490, 15
        %v3619 = vshrl.u32 %v3491, 15
        %v3620 = vshrl.u32 %v3492, 15
        %v3621 = vshrl.u32 %v3493, 15
        %v3622 = vshrl.u32 %v3494, 15
        %v3623 = vshrl.u32 %v3495, 15
        %v3624 = vshrl.u32 %v3496, 15
        %v3625 = vshrl.u32 %v3497, 15
        %v3626 = vshrl.u32 %v3498, 15
        %v3627 = vshrl.u32 %v3499, 15
        %v3628 = vshrl.u32 %v3500, 15
        %v3629 = vshrl.u32 %v3501, 15
        %v3630 = vshrl.u32 %v3502, 15
        %v3631 = vshrl.u32 %v3503, 15
        %v3632 = vshrl.u32 %v3504, 15
        %v3633 = vshrl.u32 %v3505, 15
        %v3634 = vshrl.u32 %v3506, 15
        %v3635 = vshrl.u32 %v3507, 15
        %v3636 = vshrl.u32 %v3508, 15
        %v3637 = vshrl.u32 %v3509, 15
        %v3638 = vshrl.u32 %v3510, 15
        %v3639 = vshrl.u32 %v3511, 15
        %v3640 = vshrl.u32 %v3512, 15
        %v3641 = vshrl.u32 %v3513, 15
        %v3642 = vshrl.u32 %v3514, 15
        %v3643 = vshrl.u32 %v3515, 15
        %v3644 = vshrl.u32 %v3516, 15
        %v3645 = vshrl.u32 %v3517, 15
        %v3646 = vshrl.u32 %v3518, 15
        %v3647 = vshrl.u32 %v3519, 15
        %v3648 = vshrl.u32 %v3520, 15
        %v3649 = vshrl.u32 %v3521, 15
        %v3650 = vshrl.u32 %v3522, 15
        %v3651 = vshrl.u32 %v3523, 15
        %v3652 = vshrl.u32 %v3524, 15
        %v3653 = vshrl.u32 %v3525, 15
        %v3654 = vshrl.u32 %v3526, 15
        %v3655 = vshrl.u32 %v3527, 15
        %v3656 = vshrl.u32 %v3528, 15
        %v3657 = vshrl.u32 %v3529, 15
        %v3658 = vshrl.u32 %v3530, 15
        %v3659 = vxor.u32 %v3403, %v3531
        %v3660 = vxor.u32 %v3404, %v3532
        %v3661 = vxor.u32 %v3405, %v3533
        %v3662 = vxor.u32 %v3406, %v3534
        %v3663 = vxor.u32 %v3407, %v3535
        %v3664 = vxor.u32 %v3408, %v3536
        %v3665 = vxor.u32 %v3409, %v3537
        %v3666 = vxor.u32 %v3410, %v3538
        %v3667 = vxor.u32 %v3411, %v3539
        %v3668 = vxor.u32 %v3412, %v3540
        %v3669 = vxor.u32 %v3413, %v3541
        %v3670 = vxor.u32 %v3414, %v3542
        %v3671 = vxor.u32 %v3415, %v3543
        %v3672 = vxor.u32 %v3416, %v3544
        %v3673 = vxor.u32 %v3417, %v3545
        %v3674 = vxor.u32 %v3418, %v3546
        %v3675 = vxor.u32 %v3419, %v3547
        %v3676 = vxor.u32 %v3420, %v3548
        %v3677 = vxor.u32 %v3421, %v3549
        %v3678 = vxor.u32 %v3422, %v3550
        %v3679 = vxor.u32 %v3423, %v3551
        %v3680 = vxor.u32 %v3424, %v3552
        %v3681 = vxor.u32 %v3425, %v3553
        %v3682 = vxor.u32 %v3426, %v3554
        %v3683 = vxor.u32 %v3427, %v3555
        %v3684 = vxor.u32 %v3428, %v3556
        %v3685 = vxor.u32 %v3429, %v3557
        %v3686 = vxor.u32 %v3430, %v3558
        %v3687 = vxor.u32 %v3431, %v3559
        %v3688 = vxor.u32 %v3432, %v3560
        %v3689 = vxor.u32 %v3433, %v3561
        %v3690 = vxor.u32 %v3434, %v3562
        %v3691 = vxor.u32 %v3435, %v3563
        %v3692 = vxor.u32 %v3436, %v3564
        %v3693 = vxor.u32 %v3437, %v3565
        %v3694 = vxor.u32 %v3438, %v3566
        %v3695 = vxor.u32 %v3439, %v3567
        %v3696 = vxor.u32 %v3440, %v3568
        %v3697 = vxor.u32 %v3441, %v3569
        %v3698 = vxor.u32 %v3442, %v3570
        %v3699 = vxor.u32 %v3443, %v3571
        %v3700 = vxor.u32 %v3444, %v3572
        %v3701 = vxor.u32 %v3445, %v3573
        %v3702 = vxor.u32 %v3446, %v3574
        %v3703 = vxor.u32 %v3447, %v3575
        %v3704 = vxor.u32 %v3448, %v3576
        %v3705 = vxor.u32 %v3449, %v3577
        %v3706 = vxor.u32 %v3450, %v3578
        %v3707 = vxor.u32 %v3451, %v3579
        %v3708 = vxor.u32 %v3452, %v3580
        %v3709 = vxor.u32 %v3453, %v3581
        %v3710 = vxor.u32 %v3454, %v3582
        %v3711 = vxor.u32 %v3455, %v3583
        %v3712 = vxor.u32 %v3456, %v3584
        %v3713 = vxor.u32 %v3457, %v3585
        %v3714 = vxor.u32 %v3458, %v3586
        %v3715 = vxor.u32 %v3459, %v3587
        %v3716 = vxor.u32 %v3460, %v3588
        %v3717 = vxor.u32 %v3461, %v3589
        %v3718 = vxor.u32 %v3462, %v3590
        %v3719 = vxor.u32 %v3463, %v3591
        %v3720 = vxor.u32 %v3464, %v3592
        %v3721 = vxor.u32 %v3465, %v3593
        %v3722 = vxor.u32 %v3466, %v3594
        %v3723 = vxor.u32 %v3467, %v3595
        %v3724 = vxor.u32 %v3468, %v3596
        %v3725 = vxor.u32 %v3469, %v3597
        %v3726 = vxor.u32 %v3470, %v3598
        %v3727 = vxor.u32 %v3471, %v3599
        %v3728 = vxor.u32 %v3472, %v3600
        %v3729 = vxor.u32 %v3473, %v3601
        %v3730 = vxor.u32 %v3474, %v3602
        %v3731 = vxor.u32 %v3475, %v3603
        %v3732 = vxor.u32 %v3476, %v3604
        %v3733 = vxor.u32 %v3477, %v3605
        %v3734 = vxor.u32 %v3478, %v3606
        %v3735 = vxor.u32 %v3479, %v3607
        %v3736 = vxor.u32 %v3480, %v3608
        %v3737 = vxor.u32 %v3481, %v3609
        %v3738 = vxor.u32 %v3482, %v3610
        %v3739 = vxor.u32 %v3483, %v3611
        %v3740 = vxor.u32 %v3484, %v3612
        %v3741 = vxor.u32 %v3485, %v3613
        %v3742 = vxor.u32 %v3486, %v3614
        %v3743 = vxor.u32 %v3487, %v3615
        %v3744 = vxor.u32 %v3488, %v3616
        %v3745 = vxor.u32 %v3489, %v3617
        %v3746 = vxor.u32 %v3490, %v3618
        %v3747 = vxor.u32 %v3491, %v3619
        %v3748 = vxor.u32 %v3492, %v3620
        %v3749 = vxor.u32 %v3493, %v3621
        %v3750 = vxor.u32 %v3494, %v3622
        %v3751 = vxor.u32 %v3495, %v3623
        %v3752 = vxor.u32 %v3496, %v3624
        %v3753 = vxor.u32 %v3497, %v3625
        %v3754 = vxor.u32 %v3498, %v3626
        %v3755 = vxor.u32 %v3499, %v3627
        %v3756 = vxor.u32 %v3500, %v3628
        %v3757 = vxor.u32 %v3501, %v3629
        %v3758 = vxor.u32 %v3502, %v3630
        %v3759 = vxor.u32 %v3503, %v3631
        %v3760 = vxor.u32 %v3504, %v3632
        %v3761 = vxor.u32 %v3505, %v3633
        %v3762 = vxor.u32 %v3506, %v3634
        %v3763 = vxor.u32 %v3507, %v3635
        %v3764 = vxor.u32 %v3508, %v3636
        %v3765 = vxor.u32 %v3509, %v3637
        %v3766 = vxor.u32 %v3510, %v3638
        %v3767 = vxor.u32 %v3511, %v3639
        %v3768 = vxor.u32 %v3512, %v3640
        %v3769 = vxor.u32 %v3513, %v3641
        %v3770 = vxor.u32 %v3514, %v3642
        %v3771 = vxor.u32 %v3515, %v3643
        %v3772 = vxor.u32 %v3516, %v3644
        %v3773 = vxor.u32 %v3517, %v3645
        %v3774 = vxor.u32 %v3518, %v3646
        %v3775 = vxor.u32 %v3519, %v3647
        %v3776 = vxor.u32 %v3520, %v3648
        %v3777 = vxor.u32 %v3521, %v3649
        %v3778 = vxor.u32 %v3522, %v3650
        %v3779 = vxor.u32 %v3523, %v3651
        %v3780 = vxor.u32 %v3524, %v3652
        %v3781 = vxor.u32 %v3525, %v3653
        %v3782 = vxor.u32 %v3526, %v3654
        %v3783 = vxor.u32 %v3527, %v3655
        %v3784 = vxor.u32 %v3528, %v3656
        %v3785 = vxor.u32 %v3529, %v3657
        %v3786 = vxor.u32 %v3530, %v3658
        %v3787 = vmul.u32 %v3659, 2221713035
        %v3788 = vmul.u32 %v3660, 2221713035
        %v3789 = vmul.u32 %v3661, 2221713035
        %v3790 = vmul.u32 %v3662, 2221713035
        %v3791 = vmul.u32 %v3663, 2221713035
        %v3792 = vmul.u32 %v3664, 2221713035
        %v3793 = vmul.u32 %v3665, 2221713035
        %v3794 = vmul.u32 %v3666, 2221713035
        %v3795 = vmul.u32 %v3667, 2221713035
        %v3796 = vmul.u32 %v3668, 2221713035
        %v3797 = vmul.u32 %v3669, 2221713035
        %v3798 = vmul.u32 %v3670, 2221713035
        %v3799 = vmul.u32 %v3671, 2221713035
        %v3800 = vmul.u32 %v3672, 2221713035
        %v3801 = vmul.u32 %v3673, 2221713035
        %v3802 = vmul.u32 %v3674, 2221713035
        %v3803 = vmul.u32 %v3675, 2221713035
        %v3804 = vmul.u32 %v3676, 2221713035
        %v3805 = vmul.u32 %v3677, 2221713035
        %v3806 = vmul.u32 %v3678, 2221713035
        %v3807 = vmul.u32 %v3679, 2221713035
        %v3808 = vmul.u32 %v3680, 2221713035
        %v3809 = vmul.u32 %v3681, 2221713035
        %v3810 = vmul.u32 %v3682, 2221713035
        %v3811 = vmul.u32 %v3683, 2221713035
        %v3812 = vmul.u32 %v3684, 2221713035
        %v3813 = vmul.u32 %v3685, 2221713035
        %v3814 = vmul.u32 %v3686, 2221713035
        %v3815 = vmul.u32 %v3687, 2221713035
        %v3816 = vmul.u32 %v3688, 2221713035
        %v3817 = vmul.u32 %v3689, 2221713035
        %v3818 = vmul.u32 %v3690, 2221713035
        %v3819 = vmul.u32 %v3691, 2221713035
        %v3820 = vmul.u32 %v3692, 2221713035
        %v3821 = vmul.u32 %v3693, 2221713035
        %v3822 = vmul.u32 %v3694, 2221713035
        %v3823 = vmul.u32 %v3695, 2221713035
        %v3824 = vmul.u32 %v3696, 2221713035
        %v3825 = vmul.u32 %v3697, 2221713035
        %v3826 = vmul.u32 %v3698, 2221713035
        %v3827 = vmul.u32 %v3699, 2221713035
        %v3828 = vmul.u32 %v3700, 2221713035
        %v3829 = vmul.u32 %v3701, 2221713035
        %v3830 = vmul.u32 %v3702, 2221713035
        %v3831 = vmul.u32 %v3703, 2221713035
        %v3832 = vmul.u32 %v3704, 2221713035
        %v3833 = vmul.u32 %v3705, 2221713035
        %v3834 = vmul.u32 %v3706, 2221713035
        %v3835 = vmul.u32 %v3707, 2221713035
        %v3836 = vmul.u32 %v3708, 2221713035
        %v3837 = vmul.u32 %v3709, 2221713035
        %v3838 = vmul.u32 %v3710, 2221713035
        %v3839 = vmul.u32 %v3711, 2221713035
        %v3840 = vmul.u32 %v3712, 2221713035
        %v3841 = vmul.u32 %v3713, 2221713035
        %v3842 = vmul.u32 %v3714, 2221713035
        %v3843 = vmul.u32 %v3715, 2221713035
        %v3844 = vmul.u32 %v3716, 2221713035
        %v3845 = vmul.u32 %v3717, 2221713035
        %v3846 = vmul.u32 %v3718, 2221713035
        %v3847 = vmul.u32 %v3719, 2221713035
        %v3848 = vmul.u32 %v3720, 2221713035
        %v3849 = vmul.u32 %v3721, 2221713035
        %v3850 = vmul.u32 %v3722, 2221713035
        %v3851 = vmul.u32 %v3723, 2221713035
        %v3852 = vmul.u32 %v3724, 2221713035
        %v3853 = vmul.u32 %v3725, 2221713035
        %v3854 = vmul.u32 %v3726, 2221713035
        %v3855 = vmul.u32 %v3727, 2221713035
        %v3856 = vmul.u32 %v3728, 2221713035
        %v3857 = vmul.u32 %v3729, 2221713035
        %v3858 = vmul.u32 %v3730, 2221713035
        %v3859 = vmul.u32 %v3731, 2221713035
        %v3860 = vmul.u32 %v3732, 2221713035
        %v3861 = vmul.u32 %v3733, 2221713035
        %v3862 = vmul.u32 %v3734, 2221713035
        %v3863 = vmul.u32 %v3735, 2221713035
        %v3864 = vmul.u32 %v3736, 2221713035
        %v3865 = vmul.u32 %v3737, 2221713035
        %v3866 = vmul.u32 %v3738, 2221713035
        %v3867 = vmul.u32 %v3739, 2221713035
        %v3868 = vmul.u32 %v3740, 2221713035
        %v3869 = vmul.u32 %v3741, 2221713035
        %v3870 = vmul.u32 %v3742, 2221713035
        %v3871 = vmul.u32 %v3743, 2221713035
        %v3872 = vmul.u32 %v3744, 2221713035
        %v3873 = vmul.u32 %v3745, 2221713035
        %v3874 = vmul.u32 %v3746, 2221713035
        %v3875 = vmul.u32 %v3747, 2221713035
        %v3876 = vmul.u32 %v3748, 2221713035
        %v3877 = vmul.u32 %v3749, 2221713035
        %v3878 = vmul.u32 %v3750, 2221713035
        %v3879 = vmul.u32 %v3751, 2221713035
        %v3880 = vmul.u32 %v3752, 2221713035
        %v3881 = vmul.u32 %v3753, 2221713035
        %v3882 = vmul.u32 %v3754, 2221713035
        %v3883 = vmul.u32 %v3755, 2221713035
        %v3884 = vmul.u32 %v3756, 2221713035
        %v3885 = vmul.u32 %v3757, 2221713035
        %v3886 = vmul.u32 %v3758, 2221713035
        %v3887 = vmul.u32 %v3759, 2221713035
        %v3888 = vmul.u32 %v3760, 2221713035
        %v3889 = vmul.u32 %v3761, 2221713035
        %v3890 = vmul.u32 %v3762, 2221713035
        %v3891 = vmul.u32 %v3763, 2221713035
        %v3892 = vmul.u32 %v3764, 2221713035
        %v3893 = vmul.u32 %v3765, 2221713035
        %v3894 = vmul.u32 %v3766, 2221713035
        %v3895 = vmul.u32 %v3767, 2221713035
        %v3896 = vmul.u32 %v3768, 2221713035
        %v3897 = vmul.u32 %v3769, 2221713035
        %v3898 = vmul.u32 %v3770, 2221713035
        %v3899 = vmul.u32 %v3771, 2221713035
        %v3900 = vmul.u32 %v3772, 2221713035
        %v3901 = vmul.u32 %v3773, 2221713035
        %v3902 = vmul.u32 %v3774, 2221713035
        %v3903 = vmul.u32 %v3775, 2221713035
        %v3904 = vmul.u32 %v3776, 2221713035
        %v3905 = vmul.u32 %v3777, 2221713035
        %v3906 = vmul.u32 %v3778, 2221713035
        %v3907 = vmul.u32 %v3779, 2221713035
        %v3908 = vmul.u32 %v3780, 2221713035
        %v3909 = vmul.u32 %v3781, 2221713035
        %v3910 = vmul.u32 %v3782, 2221713035
        %v3911 = vmul.u32 %v3783, 2221713035
        %v3912 = vmul.u32 %v3784, 2221713035
        %v3913 = vmul.u32 %v3785, 2221713035
        %v3914 = vmul.u32 %v3786, 2221713035
        %v3915 = vshrl.u32 %v3787, 16
        %v3916 = vshrl.u32 %v3788, 16
        %v3917 = vshrl.u32 %v3789, 16
        %v3918 = vshrl.u32 %v3790, 16
        %v3919 = vshrl.u32 %v3791, 16
        %v3920 = vshrl.u32 %v3792, 16
        %v3921 = vshrl.u32 %v3793, 16
        %v3922 = vshrl.u32 %v3794, 16
        %v3923 = vshrl.u32 %v3795, 16
        %v3924 = vshrl.u32 %v3796, 16
        %v3925 = vshrl.u32 %v3797, 16
        %v3926 = vshrl.u32 %v3798, 16
        %v3927 = vshrl.u32 %v3799, 16
        %v3928 = vshrl.u32 %v3800, 16
        %v3929 = vshrl.u32 %v3801, 16
        %v3930 = vshrl.u32 %v3802, 16
        %v3931 = vshrl.u32 %v3803, 16
        %v3932 = vshrl.u32 %v3804, 16
        %v3933 = vshrl.u32 %v3805, 16
        %v3934 = vshrl.u32 %v3806, 16
        %v3935 = vshrl.u32 %v3807, 16
        %v3936 = vshrl.u32 %v3808, 16
        %v3937 = vshrl.u32 %v3809, 16
        %v3938 = vshrl.u32 %v3810, 16
        %v3939 = vshrl.u32 %v3811, 16
        %v3940 = vshrl.u32 %v3812, 16
        %v3941 = vshrl.u32 %v3813, 16
        %v3942 = vshrl.u32 %v3814, 16
        %v3943 = vshrl.u32 %v3815, 16
        %v3944 = vshrl.u32 %v3816, 16
        %v3945 = vshrl.u32 %v3817, 16
        %v3946 = vshrl.u32 %v3818, 16
        %v3947 = vshrl.u32 %v3819, 16
        %v3948 = vshrl.u32 %v3820, 16
        %v3949 = vshrl.u32 %v3821, 16
        %v3950 = vshrl.u32 %v3822, 16
        %v3951 = vshrl.u32 %v3823, 16
        %v3952 = vshrl.u32 %v3824, 16
        %v3953 = vshrl.u32 %v3825, 16
        %v3954 = vshrl.u32 %v3826, 16
        %v3955 = vshrl.u32 %v3827, 16
        %v3956 = vshrl.u32 %v3828, 16
        %v3957 = vshrl.u32 %v3829, 16
        %v3958 = vshrl.u32 %v3830, 16
        %v3959 = vshrl.u32 %v3831, 16
        %v3960 = vshrl.u32 %v3832, 16
        %v3961 = vshrl.u32 %v3833, 16
        %v3962 = vshrl.u32 %v3834, 16
        %v3963 = vshrl.u32 %v3835, 16
        %v3964 = vshrl.u32 %v3836, 16
        %v3965 = vshrl.u32 %v3837, 16
        %v3966 = vshrl.u32 %v3838, 16
        %v3967 = vshrl.u32 %v3839, 16
        %v3968 = vshrl.u32 %v3840, 16
        %v3969 = vshrl.u32 %v3841, 16
        %v3970 = vshrl.u32 %v3842, 16
        %v3971 = vshrl.u32 %v3843, 16
        %v3972 = vshrl.u32 %v3844, 16
        %v3973 = vshrl.u32 %v3845, 16
        %v3974 = vshrl.u32 %v3846, 16
        %v3975 = vshrl.u32 %v3847, 16
        %v3976 = vshrl.u32 %v3848, 16
        %v3977 = vshrl.u32 %v3849, 16
        %v3978 = vshrl.u32 %v3850, 16
        %v3979 = vshrl.u32 %v3851, 16
        %v3980 = vshrl.u32 %v3852, 16
        %v3981 = vshrl.u32 %v3853, 16
        %v3982 = vshrl.u32 %v3854, 16
        %v3983 = vshrl.u32 %v3855, 16
        %v3984 = vshrl.u32 %v3856, 16
        %v3985 = vshrl.u32 %v3857, 16
        %v3986 = vshrl.u32 %v3858, 16
        %v3987 = vshrl.u32 %v3859, 16
        %v3988 = vshrl.u32 %v3860, 16
        %v3989 = vshrl.u32 %v3861, 16
        %v3990 = vshrl.u32 %v3862, 16
        %v3991 = vshrl.u32 %v3863, 16
        %v3992 = vshrl.u32 %v3864, 16
        %v3993 = vshrl.u32 %v3865, 16
        %v3994 = vshrl.u32 %v3866, 16
        %v3995 = vshrl.u32 %v3867, 16
        %v3996 = vshrl.u32 %v3868, 16
        %v3997 = vshrl.u32 %v3869, 16
        %v3998 = vshrl.u32 %v3870, 16
        %v3999 = vshrl.u32 %v3871, 16
        %v4000 = vshrl.u32 %v3872, 16
        %v4001 = vshrl.u32 %v3873, 16
        %v4002 = vshrl.u32 %v3874, 16
        %v4003 = vshrl.u32 %v3875, 16
        %v4004 = vshrl.u32 %v3876, 16
        %v4005 = vshrl.u32 %v3877, 16
        %v4006 = vshrl.u32 %v3878, 16
        %v4007 = vshrl.u32 %v3879, 16
        %v4008 = vshrl.u32 %v3880, 16
        %v4009 = vshrl.u32 %v3881, 16
        %v4010 = vshrl.u32 %v3882, 16
        %v4011 = vshrl.u32 %v3883, 16
        %v4012 = vshrl.u32 %v3884, 16
        %v4013 = vshrl.u32 %v3885, 16
        %v4014 = vshrl.u32 %v3886, 16
        %v4015 = vshrl.u32 %v3887, 16
        %v4016 = vshrl.u32 %v3888, 16
        %v4017 = vshrl.u32 %v3889, 16
        %v4018 = vshrl.u32 %v3890, 16
        %v4019 = vshrl.u32 %v3891, 16
        %v4020 = vshrl.u32 %v3892, 16
        %v4021 = vshrl.u32 %v3893, 16
        %v4022 = vshrl.u32 %v3894, 16
        %v4023 = vshrl.u32 %v3895, 16
        %v4024 = vshrl.u32 %v3896, 16
        %v4025 = vshrl.u32 %v3897, 16
        %v4026 = vshrl.u32 %v3898, 16
        %v4027 = vshrl.u32 %v3899, 16
        %v4028 = vshrl.u32 %v3900, 16
        %v4029 = vshrl.u32 %v3901, 16
        %v4030 = vshrl.u32 %v3902, 16
        %v4031 = vshrl.u32 %v3903, 16
        %v4032 = vshrl.u32 %v3904, 16
        %v4033 = vshrl.u32 %v3905, 16
        %v4034 = vshrl.u32 %v3906, 16
        %v4035 = vshrl.u32 %v3907, 16
        %v4036 = vshrl.u32 %v3908, 16
        %v4037 = vshrl.u32 %v3909, 16
        %v4038 = vshrl.u32 %v3910, 16
        %v4039 = vshrl.u32 %v3911, 16
        %v4040 = vshrl.u32 %v3912, 16
        %v4041 = vshrl.u32 %v3913, 16
        %v4042 = vshrl.u32 %v3914, 16
        %v4043 = vxor.u32 %v3787, %v3915
        %v4044 = vxor.u32 %v3788, %v3916
        %v4045 = vxor.u32 %v3789, %v3917
        %v4046 = vxor.u32 %v3790, %v3918
        %v4047 = vxor.u32 %v3791, %v3919
        %v4048 = vxor.u32 %v3792, %v3920
        %v4049 = vxor.u32 %v3793, %v3921
        %v4050 = vxor.u32 %v3794, %v3922
        %v4051 = vxor.u32 %v3795, %v3923
        %v4052 = vxor.u32 %v3796, %v3924
        %v4053 = vxor.u32 %v3797, %v3925
        %v4054 = vxor.u32 %v3798, %v3926
        %v4055 = vxor.u32 %v3799, %v3927
        %v4056 = vxor.u32 %v3800, %v3928
        %v4057 = vxor.u32 %v3801, %v3929
        %v4058 = vxor.u32 %v3802, %v3930
        %v4059 = vxor.u32 %v3803, %v3931
        %v4060 = vxor.u32 %v3804, %v3932
        %v4061 = vxor.u32 %v3805, %v3933
        %v4062 = vxor.u32 %v3806, %v3934
        %v4063 = vxor.u32 %v3807, %v3935
        %v4064 = vxor.u32 %v3808, %v3936
        %v4065 = vxor.u32 %v3809, %v3937
        %v4066 = vxor.u32 %v3810, %v3938
        %v4067 = vxor.u32 %v3811, %v3939
        %v4068 = vxor.u32 %v3812, %v3940
        %v4069 = vxor.u32 %v3813, %v3941
        %v4070 = vxor.u32 %v3814, %v3942
        %v4071 = vxor.u32 %v3815, %v3943
        %v4072 = vxor.u32 %v3816, %v3944
        %v4073 = vxor.u32 %v3817, %v3945
        %v4074 = vxor.u32 %v3818, %v3946
        %v4075 = vxor.u32 %v3819, %v3947
        %v4076 = vxor.u32 %v3820, %v3948
        %v4077 = vxor.u32 %v3821, %v3949
        %v4078 = vxor.u32 %v3822, %v3950
        %v4079 = vxor.u32 %v3823, %v3951
        %v4080 = vxor.u32 %v3824, %v3952
        %v4081 = vxor.u32 %v3825, %v3953
        %v4082 = vxor.u32 %v3826, %v3954
        %v4083 = vxor.u32 %v3827, %v3955
        %v4084 = vxor.u32 %v3828, %v3956
        %v4085 = vxor.u32 %v3829, %v3957
        %v4086 = vxor.u32 %v3830, %v3958
        %v4087 = vxor.u32 %v3831, %v3959
        %v4088 = vxor.u32 %v3832, %v3960
        %v4089 = vxor.u32 %v3833, %v3961
        %v4090 = vxor.u32 %v3834, %v3962
        %v4091 = vxor.u32 %v3835, %v3963
        %v4092 = vxor.u32 %v3836, %v3964
        %v4093 = vxor.u32 %v3837, %v3965
        %v4094 = vxor.u32 %v3838, %v3966
        %v4095 = vxor.u32 %v3839, %v3967
        %v4096 = vxor.u32 %v3840, %v3968
        %v4097 = vxor.u32 %v3841, %v3969
        %v4098 = vxor.u32 %v3842, %v3970
        %v4099 = vxor.u32 %v3843, %v3971
        %v4100 = vxor.u32 %v3844, %v3972
        %v4101 = vxor.u32 %v3845, %v3973
        %v4102 = vxor.u32 %v3846, %v3974
        %v4103 = vxor.u32 %v3847, %v3975
        %v4104 = vxor.u32 %v3848, %v3976
        %v4105 = vxor.u32 %v3849, %v3977
        %v4106 = vxor.u32 %v3850, %v3978
        %v4107 = vxor.u32 %v3851, %v3979
        %v4108 = vxor.u32 %v3852, %v3980
        %v4109 = vxor.u32 %v3853, %v3981
        %v4110 = vxor.u32 %v3854, %v3982
        %v4111 = vxor.u32 %v3855, %v3983
        %v4112 = vxor.u32 %v3856, %v3984
        %v4113 = vxor.u32 %v3857, %v3985
        %v4114 = vxor.u32 %v3858, %v3986
        %v4115 = vxor.u32 %v3859, %v3987
        %v4116 = vxor.u32 %v3860, %v3988
        %v4117 = vxor.u32 %v3861, %v3989
        %v4118 = vxor.u32 %v3862, %v3990
        %v4119 = vxor.u32 %v3863, %v3991
        %v4120 = vxor.u32 %v3864, %v3992
        %v4121 = vxor.u32 %v3865, %v3993
        %v4122 = vxor.u32 %v3866, %v3994
        %v4123 = vxor.u32 %v3867, %v3995
        %v4124 = vxor.u32 %v3868, %v3996
        %v4125 = vxor.u32 %v3869, %v3997
        %v4126 = vxor.u32 %v3870, %v3998
        %v4127 = vxor.u32 %v3871, %v3999
        %v4128 = vxor.u32 %v3872, %v4000
        %v4129 = vxor.u32 %v3873, %v4001
        %v4130 = vxor.u32 %v3874, %v4002
        %v4131 = vxor.u32 %v3875, %v4003
        %v4132 = vxor.u32 %v3876, %v4004
        %v4133 = vxor.u32 %v3877, %v4005
        %v4134 = vxor.u32 %v3878, %v4006
        %v4135 = vxor.u32 %v3879, %v4007
        %v4136 = vxor.u32 %v3880, %v4008
        %v4137 = vxor.u32 %v3881, %v4009
        %v4138 = vxor.u32 %v3882, %v4010
        %v4139 = vxor.u32 %v3883, %v4011
        %v4140 = vxor.u32 %v3884, %v4012
        %v4141 = vxor.u32 %v3885, %v4013
        %v4142 = vxor.u32 %v3886, %v4014
        %v4143 = vxor.u32 %v3887, %v4015
        %v4144 = vxor.u32 %v3888, %v4016
        %v4145 = vxor.u32 %v3889, %v4017
        %v4146 = vxor.u32 %v3890, %v4018
        %v4147 = vxor.u32 %v3891, %v4019
        %v4148 = vxor.u32 %v3892, %v4020
        %v4149 = vxor.u32 %v3893, %v4021
        %v4150 = vxor.u32 %v3894, %v4022
        %v4151 = vxor.u32 %v3895, %v4023
        %v4152 = vxor.u32 %v3896, %v4024
        %v4153 = vxor.u32 %v3897, %v4025
        %v4154 = vxor.u32 %v3898, %v4026
        %v4155 = vxor.u32 %v3899, %v4027
        %v4156 = vxor.u32 %v3900, %v4028
        %v4157 = vxor.u32 %v3901, %v4029
        %v4158 = vxor.u32 %v3902, %v4030
        %v4159 = vxor.u32 %v3903, %v4031
        %v4160 = vxor.u32 %v3904, %v4032
        %v4161 = vxor.u32 %v3905, %v4033
        %v4162 = vxor.u32 %v3906, %v4034
        %v4163 = vxor.u32 %v3907, %v4035
        %v4164 = vxor.u32 %v3908, %v4036
        %v4165 = vxor.u32 %v3909, %v4037
        %v4166 = vxor.u32 %v3910, %v4038
        %v4167 = vxor.u32 %v3911, %v4039
        %v4168 = vxor.u32 %v3912, %v4040
        %v4169 = vxor.u32 %v3913, %v4041
        %v4170 = vxor.u32 %v3914, %v4042
        %vm4171 = vcmp.ge.u32.totalorder %v4043, 0
        %vm4172 = vcmp.ge.u32.totalorder %v4044, 0
        %vm4173 = vcmp.ge.u32.totalorder %v4045, 0
        %vm4174 = vcmp.ge.u32.totalorder %v4046, 0
        %vm4175 = vcmp.ge.u32.totalorder %v4047, 0
        %vm4176 = vcmp.ge.u32.totalorder %v4048, 0
        %vm4177 = vcmp.ge.u32.totalorder %v4049, 0
        %vm4178 = vcmp.ge.u32.totalorder %v4050, 0
        %vm4179 = vcmp.ge.u32.totalorder %v4051, 0
        %vm4180 = vcmp.ge.u32.totalorder %v4052, 0
        %vm4181 = vcmp.ge.u32.totalorder %v4053, 0
        %vm4182 = vcmp.ge.u32.totalorder %v4054, 0
        %vm4183 = vcmp.ge.u32.totalorder %v4055, 0
        %vm4184 = vcmp.ge.u32.totalorder %v4056, 0
        %vm4185 = vcmp.ge.u32.totalorder %v4057, 0
        %vm4186 = vcmp.ge.u32.totalorder %v4058, 0
        %vm4187 = vcmp.ge.u32.totalorder %v4059, 0
        %vm4188 = vcmp.ge.u32.totalorder %v4060, 0
        %vm4189 = vcmp.ge.u32.totalorder %v4061, 0
        %vm4190 = vcmp.ge.u32.totalorder %v4062, 0
        %vm4191 = vcmp.ge.u32.totalorder %v4063, 0
        %vm4192 = vcmp.ge.u32.totalorder %v4064, 0
        %vm4193 = vcmp.ge.u32.totalorder %v4065, 0
        %vm4194 = vcmp.ge.u32.totalorder %v4066, 0
        %vm4195 = vcmp.ge.u32.totalorder %v4067, 0
        %vm4196 = vcmp.ge.u32.totalorder %v4068, 0
        %vm4197 = vcmp.ge.u32.totalorder %v4069, 0
        %vm4198 = vcmp.ge.u32.totalorder %v4070, 0
        %vm4199 = vcmp.ge.u32.totalorder %v4071, 0
        %vm4200 = vcmp.ge.u32.totalorder %v4072, 0
        %vm4201 = vcmp.ge.u32.totalorder %v4073, 0
        %vm4202 = vcmp.ge.u32.totalorder %v4074, 0
        %vm4203 = vcmp.ge.u32.totalorder %v4075, 0
        %vm4204 = vcmp.ge.u32.totalorder %v4076, 0
        %vm4205 = vcmp.ge.u32.totalorder %v4077, 0
        %vm4206 = vcmp.ge.u32.totalorder %v4078, 0
        %vm4207 = vcmp.ge.u32.totalorder %v4079, 0
        %vm4208 = vcmp.ge.u32.totalorder %v4080, 0
        %vm4209 = vcmp.ge.u32.totalorder %v4081, 0
        %vm4210 = vcmp.ge.u32.totalorder %v4082, 0
        %vm4211 = vcmp.ge.u32.totalorder %v4083, 0
        %vm4212 = vcmp.ge.u32.totalorder %v4084, 0
        %vm4213 = vcmp.ge.u32.totalorder %v4085, 0
        %vm4214 = vcmp.ge.u32.totalorder %v4086, 0
        %vm4215 = vcmp.ge.u32.totalorder %v4087, 0
        %vm4216 = vcmp.ge.u32.totalorder %v4088, 0
        %vm4217 = vcmp.ge.u32.totalorder %v4089, 0
        %vm4218 = vcmp.ge.u32.totalorder %v4090, 0
        %vm4219 = vcmp.ge.u32.totalorder %v4091, 0
        %vm4220 = vcmp.ge.u32.totalorder %v4092, 0
        %vm4221 = vcmp.ge.u32.totalorder %v4093, 0
        %vm4222 = vcmp.ge.u32.totalorder %v4094, 0
        %vm4223 = vcmp.ge.u32.totalorder %v4095, 0
        %vm4224 = vcmp.ge.u32.totalorder %v4096, 0
        %vm4225 = vcmp.ge.u32.totalorder %v4097, 0
        %vm4226 = vcmp.ge.u32.totalorder %v4098, 0
        %vm4227 = vcmp.ge.u32.totalorder %v4099, 0
        %vm4228 = vcmp.ge.u32.totalorder %v4100, 0
        %vm4229 = vcmp.ge.u32.totalorder %v4101, 0
        %vm4230 = vcmp.ge.u32.totalorder %v4102, 0
        %vm4231 = vcmp.ge.u32.totalorder %v4103, 0
        %vm4232 = vcmp.ge.u32.totalorder %v4104, 0
        %vm4233 = vcmp.ge.u32.totalorder %v4105, 0
        %vm4234 = vcmp.ge.u32.totalorder %v4106, 0
        %vm4235 = vcmp.ge.u32.totalorder %v4107, 0
        %vm4236 = vcmp.ge.u32.totalorder %v4108, 0
        %vm4237 = vcmp.ge.u32.totalorder %v4109, 0
        %vm4238 = vcmp.ge.u32.totalorder %v4110, 0
        %vm4239 = vcmp.ge.u32.totalorder %v4111, 0
        %vm4240 = vcmp.ge.u32.totalorder %v4112, 0
        %vm4241 = vcmp.ge.u32.totalorder %v4113, 0
        %vm4242 = vcmp.ge.u32.totalorder %v4114, 0
        %vm4243 = vcmp.ge.u32.totalorder %v4115, 0
        %vm4244 = vcmp.ge.u32.totalorder %v4116, 0
        %vm4245 = vcmp.ge.u32.totalorder %v4117, 0
        %vm4246 = vcmp.ge.u32.totalorder %v4118, 0
        %vm4247 = vcmp.ge.u32.totalorder %v4119, 0
        %vm4248 = vcmp.ge.u32.totalorder %v4120, 0
        %vm4249 = vcmp.ge.u32.totalorder %v4121, 0
        %vm4250 = vcmp.ge.u32.totalorder %v4122, 0
        %vm4251 = vcmp.ge.u32.totalorder %v4123, 0
        %vm4252 = vcmp.ge.u32.totalorder %v4124, 0
        %vm4253 = vcmp.ge.u32.totalorder %v4125, 0
        %vm4254 = vcmp.ge.u32.totalorder %v4126, 0
        %vm4255 = vcmp.ge.u32.totalorder %v4127, 0
        %vm4256 = vcmp.ge.u32.totalorder %v4128, 0
        %vm4257 = vcmp.ge.u32.totalorder %v4129, 0
        %vm4258 = vcmp.ge.u32.totalorder %v4130, 0
        %vm4259 = vcmp.ge.u32.totalorder %v4131, 0
        %vm4260 = vcmp.ge.u32.totalorder %v4132, 0
        %vm4261 = vcmp.ge.u32.totalorder %v4133, 0
        %vm4262 = vcmp.ge.u32.totalorder %v4134, 0
        %vm4263 = vcmp.ge.u32.totalorder %v4135, 0
        %vm4264 = vcmp.ge.u32.totalorder %v4136, 0
        %vm4265 = vcmp.ge.u32.totalorder %v4137, 0
        %vm4266 = vcmp.ge.u32.totalorder %v4138, 0
        %vm4267 = vcmp.ge.u32.totalorder %v4139, 0
        %vm4268 = vcmp.ge.u32.totalorder %v4140, 0
        %vm4269 = vcmp.ge.u32.totalorder %v4141, 0
        %vm4270 = vcmp.ge.u32.totalorder %v4142, 0
        %vm4271 = vcmp.ge.u32.totalorder %v4143, 0
        %vm4272 = vcmp.ge.u32.totalorder %v4144, 0
        %vm4273 = vcmp.ge.u32.totalorder %v4145, 0
        %vm4274 = vcmp.ge.u32.totalorder %v4146, 0
        %vm4275 = vcmp.ge.u32.totalorder %v4147, 0
        %vm4276 = vcmp.ge.u32.totalorder %v4148, 0
        %vm4277 = vcmp.ge.u32.totalorder %v4149, 0
        %vm4278 = vcmp.ge.u32.totalorder %v4150, 0
        %vm4279 = vcmp.ge.u32.totalorder %v4151, 0
        %vm4280 = vcmp.ge.u32.totalorder %v4152, 0
        %vm4281 = vcmp.ge.u32.totalorder %v4153, 0
        %vm4282 = vcmp.ge.u32.totalorder %v4154, 0
        %vm4283 = vcmp.ge.u32.totalorder %v4155, 0
        %vm4284 = vcmp.ge.u32.totalorder %v4156, 0
        %vm4285 = vcmp.ge.u32.totalorder %v4157, 0
        %vm4286 = vcmp.ge.u32.totalorder %v4158, 0
        %vm4287 = vcmp.ge.u32.totalorder %v4159, 0
        %vm4288 = vcmp.ge.u32.totalorder %v4160, 0
        %vm4289 = vcmp.ge.u32.totalorder %v4161, 0
        %vm4290 = vcmp.ge.u32.totalorder %v4162, 0
        %vm4291 = vcmp.ge.u32.totalorder %v4163, 0
        %vm4292 = vcmp.ge.u32.totalorder %v4164, 0
        %vm4293 = vcmp.ge.u32.totalorder %v4165, 0
        %vm4294 = vcmp.ge.u32.totalorder %v4166, 0
        %vm4295 = vcmp.ge.u32.totalorder %v4167, 0
        %vm4296 = vcmp.ge.u32.totalorder %v4168, 0
        %vm4297 = vcmp.ge.u32.totalorder %v4169, 0
        %vm4298 = vcmp.ge.u32.totalorder %v4170, 0
        %v4299 = vrcp.pop %v2333
        %v4300 = vmul.f32 1.0, %v4299
        %v4301 = vrcp.pop %v2335
        %v4302 = vmul.f32 1.0, %v4301
        %v4303 = vrcp.pop %v2337
        %v4304 = vmul.f32 1.0, %v4303
        %v4305 = vrcp.pop %v2339
        %v4306 = vmul.f32 1.0, %v4305
        %v4307 = vrcp.pop %v2341
        %v4308 = vmul.f32 1.0, %v4307
        %v4309 = vrcp.pop %v2343
        %v4310 = vmul.f32 1.0, %v4309
        %v4311 = vrcp.pop %v2345
        %v4312 = vmul.f32 1.0, %v4311
        %v4313 = vrcp.pop %v2347
        %v4314 = vmul.f32 1.0, %v4313
        %v4315 = vrcp.pop %v2349
        %v4316 = vmul.f32 1.0, %v4315
        %v4317 = vrcp.pop %v2351
        %v4318 = vmul.f32 1.0, %v4317
        %v4319 = vrcp.pop %v2353
        %v4320 = vmul.f32 1.0, %v4319
        %v4321 = vrcp.pop %v2355
        %v4322 = vmul.f32 1.0, %v4321
        %v4323 = vrcp.pop %v2357
        %v4324 = vmul.f32 1.0, %v4323
        %v4325 = vrcp.pop %v2359
        %v4326 = vmul.f32 1.0, %v4325
        %v4327 = vrcp.pop %v2361
        %v4328 = vmul.f32 1.0, %v4327
        %v4329 = vrcp.pop %v2363
        %v4330 = vmul.f32 1.0, %v4329
        %v4331 = vrcp.pop %v2365
        %v4332 = vmul.f32 1.0, %v4331
        %v4333 = vrcp.pop %v2367
        %v4334 = vmul.f32 1.0, %v4333
        %v4335 = vrcp.pop %v2369
        %v4336 = vmul.f32 1.0, %v4335
        %v4337 = vrcp.pop %v2371
        %v4338 = vmul.f32 1.0, %v4337
        %v4339 = vrcp.pop %v2373
        %v4340 = vmul.f32 1.0, %v4339
        %v4341 = vrcp.pop %v2375
        %v4342 = vmul.f32 1.0, %v4341
        %v4343 = vrcp.pop %v2377
        %v4344 = vmul.f32 1.0, %v4343
        %v4345 = vrcp.pop %v2379
        %v4346 = vmul.f32 1.0, %v4345
        %v4347 = vrcp.pop %v2381
        %v4348 = vmul.f32 1.0, %v4347
        %v4349 = vrcp.pop %v2383
        %v4350 = vmul.f32 1.0, %v4349
        %v4351 = vrcp.pop %v2385
        %v4352 = vmul.f32 1.0, %v4351
        %v4353 = vrcp.pop %v2387
        %v4354 = vmul.f32 1.0, %v4353
        %v4355 = vrcp.pop %v2389
        %v4356 = vmul.f32 1.0, %v4355
        %v4357 = vrcp.pop %v2391
        %v4358 = vmul.f32 1.0, %v4357
        %v4359 = vrcp.pop %v2393
        %v4360 = vmul.f32 1.0, %v4359
        %v4361 = vrcp.pop %v2395
        %v4362 = vmul.f32 1.0, %v4361
        %v4363 = vrcp.pop %v2397
        %v4364 = vmul.f32 1.0, %v4363
        %v4365 = vrcp.pop %v2399
        %v4366 = vmul.f32 1.0, %v4365
        %v4367 = vrcp.pop %v2401
        %v4368 = vmul.f32 1.0, %v4367
        %v4369 = vrcp.pop %v2403
        %v4370 = vmul.f32 1.0, %v4369
        %v4371 = vrcp.pop %v2405
        %v4372 = vmul.f32 1.0, %v4371
        %v4373 = vrcp.pop %v2407
        %v4374 = vmul.f32 1.0, %v4373
        %v4375 = vrcp.pop %v2409
        %v4376 = vmul.f32 1.0, %v4375
        %v4377 = vrcp.pop %v2411
        %v4378 = vmul.f32 1.0, %v4377
        %v4379 = vrcp.pop %v2413
        %v4380 = vmul.f32 1.0, %v4379
        %v4381 = vrcp.pop %v2415
        %v4382 = vmul.f32 1.0, %v4381
        %v4383 = vrcp.pop %v2417
        %v4384 = vmul.f32 1.0, %v4383
        %v4385 = vrcp.pop %v2419
        %v4386 = vmul.f32 1.0, %v4385
        %v4387 = vrcp.pop %v2421
        %v4388 = vmul.f32 1.0, %v4387
        %v4389 = vrcp.pop %v2423
        %v4390 = vmul.f32 1.0, %v4389
        %v4391 = vrcp.pop %v2425
        %v4392 = vmul.f32 1.0, %v4391
        %v4393 = vrcp.pop %v2427
        %v4394 = vmul.f32 1.0, %v4393
        %v4395 = vrcp.pop %v2429
        %v4396 = vmul.f32 1.0, %v4395
        %v4397 = vrcp.pop %v2431
        %v4398 = vmul.f32 1.0, %v4397
        %v4399 = vrcp.pop %v2433
        %v4400 = vmul.f32 1.0, %v4399
        %v4401 = vrcp.pop %v2435
        %v4402 = vmul.f32 1.0, %v4401
        %v4403 = vrcp.pop %v2437
        %v4404 = vmul.f32 1.0, %v4403
        %v4405 = vrcp.pop %v2439
        %v4406 = vmul.f32 1.0, %v4405
        %v4407 = vrcp.pop %v2441
        %v4408 = vmul.f32 1.0, %v4407
        %v4409 = vrcp.pop %v2443
        %v4410 = vmul.f32 1.0, %v4409
        %v4411 = vrcp.pop %v2445
        %v4412 = vmul.f32 1.0, %v4411
        %v4413 = vrcp.pop %v2447
        %v4414 = vmul.f32 1.0, %v4413
        %v4415 = vrcp.pop %v2449
        %v4416 = vmul.f32 1.0, %v4415
        %v4417 = vrcp.pop %v2451
        %v4418 = vmul.f32 1.0, %v4417
        %v4419 = vrcp.pop %v2453
        %v4420 = vmul.f32 1.0, %v4419
        %v4421 = vrcp.pop %v2455
        %v4422 = vmul.f32 1.0, %v4421
        %v4423 = vrcp.pop %v2457
        %v4424 = vmul.f32 1.0, %v4423
        %v4425 = vrcp.pop %v2459
        %v4426 = vmul.f32 1.0, %v4425
        %v4427 = vrcp.pop %v2461
        %v4428 = vmul.f32 1.0, %v4427
        %v4429 = vrcp.pop %v2463
        %v4430 = vmul.f32 1.0, %v4429
        %v4431 = vrcp.pop %v2465
        %v4432 = vmul.f32 1.0, %v4431
        %v4433 = vrcp.pop %v2467
        %v4434 = vmul.f32 1.0, %v4433
        %v4435 = vrcp.pop %v2469
        %v4436 = vmul.f32 1.0, %v4435
        %v4437 = vrcp.pop %v2471
        %v4438 = vmul.f32 1.0, %v4437
        %v4439 = vrcp.pop %v2473
        %v4440 = vmul.f32 1.0, %v4439
        %v4441 = vrcp.pop %v2475
        %v4442 = vmul.f32 1.0, %v4441
        %v4443 = vrcp.pop %v2477
        %v4444 = vmul.f32 1.0, %v4443
        %v4445 = vrcp.pop %v2479
        %v4446 = vmul.f32 1.0, %v4445
        %v4447 = vrcp.pop %v2481
        %v4448 = vmul.f32 1.0, %v4447
        %v4449 = vrcp.pop %v2483
        %v4450 = vmul.f32 1.0, %v4449
        %v4451 = vrcp.pop %v2485
        %v4452 = vmul.f32 1.0, %v4451
        %v4453 = vrcp.pop %v2487
        %v4454 = vmul.f32 1.0, %v4453
        %v4455 = vrcp.pop %v2489
        %v4456 = vmul.f32 1.0, %v4455
        %v4457 = vrcp.pop %v2491
        %v4458 = vmul.f32 1.0, %v4457
        %v4459 = vrcp.pop %v2493
        %v4460 = vmul.f32 1.0, %v4459
        %v4461 = vrcp.pop %v2495
        %v4462 = vmul.f32 1.0, %v4461
        %v4463 = vrcp.pop %v2497
        %v4464 = vmul.f32 1.0, %v4463
        %v4465 = vrcp.pop %v2499
        %v4466 = vmul.f32 1.0, %v4465
        %v4467 = vrcp.pop %v2501
        %v4468 = vmul.f32 1.0, %v4467
        %v4469 = vrcp.pop %v2503
        %v4470 = vmul.f32 1.0, %v4469
        %v4471 = vrcp.pop %v2505
        %v4472 = vmul.f32 1.0, %v4471
        %v4473 = vrcp.pop %v2507
        %v4474 = vmul.f32 1.0, %v4473
        %v4475 = vrcp.pop %v2509
        %v4476 = vmul.f32 1.0, %v4475
        %v4477 = vrcp.pop %v2511
        %v4478 = vmul.f32 1.0, %v4477
        %v4479 = vrcp.pop %v2513
        %v4480 = vmul.f32 1.0, %v4479
        %v4481 = vrcp.pop %v2515
        %v4482 = vmul.f32 1.0, %v4481
        %v4483 = vrcp.pop %v2517
        %v4484 = vmul.f32 1.0, %v4483
        %v4485 = vrcp.pop %v2519
        %v4486 = vmul.f32 1.0, %v4485
        %v4487 = vrcp.pop %v2521
        %v4488 = vmul.f32 1.0, %v4487
        %v4489 = vrcp.pop %v2523
        %v4490 = vmul.f32 1.0, %v4489
        %v4491 = vrcp.pop %v2525
        %v4492 = vmul.f32 1.0, %v4491
        %v4493 = vrcp.pop %v2527
        %v4494 = vmul.f32 1.0, %v4493
        %v4495 = vrcp.pop %v2529
        %v4496 = vmul.f32 1.0, %v4495
        %v4497 = vrcp.pop %v2531
        %v4498 = vmul.f32 1.0, %v4497
        %v4499 = vrcp.pop %v2533
        %v4500 = vmul.f32 1.0, %v4499
        %v4501 = vrcp.pop %v2535
        %v4502 = vmul.f32 1.0, %v4501
        %v4503 = vrcp.pop %v2537
        %v4504 = vmul.f32 1.0, %v4503
        %v4505 = vrcp.pop %v2539
        %v4506 = vmul.f32 1.0, %v4505
        %v4507 = vrcp.pop %v2541
        %v4508 = vmul.f32 1.0, %v4507
        %v4509 = vrcp.pop %v2543
        %v4510 = vmul.f32 1.0, %v4509
        %v4511 = vrcp.pop %v2545
        %v4512 = vmul.f32 1.0, %v4511
        %v4513 = vrcp.pop %v2547
        %v4514 = vmul.f32 1.0, %v4513
        %v4515 = vrcp.pop %v2549
        %v4516 = vmul.f32 1.0, %v4515
        %v4517 = vrcp.pop %v2551
        %v4518 = vmul.f32 1.0, %v4517
        %v4519 = vrcp.pop %v2553
        %v4520 = vmul.f32 1.0, %v4519
        %v4521 = vrcp.pop %v2555
        %v4522 = vmul.f32 1.0, %v4521
        %v4523 = vrcp.pop %v2557
        %v4524 = vmul.f32 1.0, %v4523
        %v4525 = vrcp.pop %v2559
        %v4526 = vmul.f32 1.0, %v4525
        %v4527 = vrcp.pop %v2561
        %v4528 = vmul.f32 1.0, %v4527
        %v4529 = vrcp.pop %v2563
        %v4530 = vmul.f32 1.0, %v4529
        %v4531 = vrcp.pop %v2565
        %v4532 = vmul.f32 1.0, %v4531
        %v4533 = vrcp.pop %v2567
        %v4534 = vmul.f32 1.0, %v4533
        %v4535 = vrcp.pop %v2569
        %v4536 = vmul.f32 1.0, %v4535
        %v4537 = vrcp.pop %v2571
        %v4538 = vmul.f32 1.0, %v4537
        %v4539 = vrcp.pop %v2573
        %v4540 = vmul.f32 1.0, %v4539
        %v4541 = vrcp.pop %v2575
        %v4542 = vmul.f32 1.0, %v4541
        %v4543 = vrcp.pop %v2577
        %v4544 = vmul.f32 1.0, %v4543
        %v4545 = vrcp.pop %v2579
        %v4546 = vmul.f32 1.0, %v4545
        %v4547 = vrcp.pop %v2581
        %v4548 = vmul.f32 1.0, %v4547
        %v4549 = vrcp.pop %v2583
        %v4550 = vmul.f32 1.0, %v4549
        %v4551 = vrcp.pop %v2585
        %v4552 = vmul.f32 1.0, %v4551
        %v4553 = vrcp.pop %v2587
        %v4554 = vmul.f32 1.0, %v4553
        %v4555 = vsel %vm4171, %v2077, 0.0
        %v4556 = vsel %vm4172, %v2079, 0.0
        %v4557 = vsel %vm4173, %v2081, 0.0
        %v4558 = vsel %vm4174, %v2083, 0.0
        %v4559 = vsel %vm4175, %v2085, 0.0
        %v4560 = vsel %vm4176, %v2087, 0.0
        %v4561 = vsel %vm4177, %v2089, 0.0
        %v4562 = vsel %vm4178, %v2091, 0.0
        %v4563 = vsel %vm4179, %v2093, 0.0
        %v4564 = vsel %vm4180, %v2095, 0.0
        %v4565 = vsel %vm4181, %v2097, 0.0
        %v4566 = vsel %vm4182, %v2099, 0.0
        %v4567 = vsel %vm4183, %v2101, 0.0
        %v4568 = vsel %vm4184, %v2103, 0.0
        %v4569 = vsel %vm4185, %v2105, 0.0
        %v4570 = vsel %vm4186, %v2107, 0.0
        %v4571 = vsel %vm4187, %v2109, 0.0
        %v4572 = vsel %vm4188, %v2111, 0.0
        %v4573 = vsel %vm4189, %v2113, 0.0
        %v4574 = vsel %vm4190, %v2115, 0.0
        %v4575 = vsel %vm4191, %v2117, 0.0
        %v4576 = vsel %vm4192, %v2119, 0.0
        %v4577 = vsel %vm4193, %v2121, 0.0
        %v4578 = vsel %vm4194, %v2123, 0.0
        %v4579 = vsel %vm4195, %v2125, 0.0
        %v4580 = vsel %vm4196, %v2127, 0.0
        %v4581 = vsel %vm4197, %v2129, 0.0
        %v4582 = vsel %vm4198, %v2131, 0.0
        %v4583 = vsel %vm4199, %v2133, 0.0
        %v4584 = vsel %vm4200, %v2135, 0.0
        %v4585 = vsel %vm4201, %v2137, 0.0
        %v4586 = vsel %vm4202, %v2139, 0.0
        %v4587 = vsel %vm4203, %v2141, 0.0
        %v4588 = vsel %vm4204, %v2143, 0.0
        %v4589 = vsel %vm4205, %v2145, 0.0
        %v4590 = vsel %vm4206, %v2147, 0.0
        %v4591 = vsel %vm4207, %v2149, 0.0
        %v4592 = vsel %vm4208, %v2151, 0.0
        %v4593 = vsel %vm4209, %v2153, 0.0
        %v4594 = vsel %vm4210, %v2155, 0.0
        %v4595 = vsel %vm4211, %v2157, 0.0
        %v4596 = vsel %vm4212, %v2159, 0.0
        %v4597 = vsel %vm4213, %v2161, 0.0
        %v4598 = vsel %vm4214, %v2163, 0.0
        %v4599 = vsel %vm4215, %v2165, 0.0
        %v4600 = vsel %vm4216, %v2167, 0.0
        %v4601 = vsel %vm4217, %v2169, 0.0
        %v4602 = vsel %vm4218, %v2171, 0.0
        %v4603 = vsel %vm4219, %v2173, 0.0
        %v4604 = vsel %vm4220, %v2175, 0.0
        %v4605 = vsel %vm4221, %v2177, 0.0
        %v4606 = vsel %vm4222, %v2179, 0.0
        %v4607 = vsel %vm4223, %v2181, 0.0
        %v4608 = vsel %vm4224, %v2183, 0.0
        %v4609 = vsel %vm4225, %v2185, 0.0
        %v4610 = vsel %vm4226, %v2187, 0.0
        %v4611 = vsel %vm4227, %v2189, 0.0
        %v4612 = vsel %vm4228, %v2191, 0.0
        %v4613 = vsel %vm4229, %v2193, 0.0
        %v4614 = vsel %vm4230, %v2195, 0.0
        %v4615 = vsel %vm4231, %v2197, 0.0
        %v4616 = vsel %vm4232, %v2199, 0.0
        %v4617 = vsel %vm4233, %v2201, 0.0
        %v4618 = vsel %vm4234, %v2203, 0.0
        %v4619 = vsel %vm4235, %v2205, 0.0
        %v4620 = vsel %vm4236, %v2207, 0.0
        %v4621 = vsel %vm4237, %v2209, 0.0
        %v4622 = vsel %vm4238, %v2211, 0.0
        %v4623 = vsel %vm4239, %v2213, 0.0
        %v4624 = vsel %vm4240, %v2215, 0.0
        %v4625 = vsel %vm4241, %v2217, 0.0
        %v4626 = vsel %vm4242, %v2219, 0.0
        %v4627 = vsel %vm4243, %v2221, 0.0
        %v4628 = vsel %vm4244, %v2223, 0.0
        %v4629 = vsel %vm4245, %v2225, 0.0
        %v4630 = vsel %vm4246, %v2227, 0.0
        %v4631 = vsel %vm4247, %v2229, 0.0
        %v4632 = vsel %vm4248, %v2231, 0.0
        %v4633 = vsel %vm4249, %v2233, 0.0
        %v4634 = vsel %vm4250, %v2235, 0.0
        %v4635 = vsel %vm4251, %v2237, 0.0
        %v4636 = vsel %vm4252, %v2239, 0.0
        %v4637 = vsel %vm4253, %v2241, 0.0
        %v4638 = vsel %vm4254, %v2243, 0.0
        %v4639 = vsel %vm4255, %v2245, 0.0
        %v4640 = vsel %vm4256, %v2247, 0.0
        %v4641 = vsel %vm4257, %v2249, 0.0
        %v4642 = vsel %vm4258, %v2251, 0.0
        %v4643 = vsel %vm4259, %v2253, 0.0
        %v4644 = vsel %vm4260, %v2255, 0.0
        %v4645 = vsel %vm4261, %v2257, 0.0
        %v4646 = vsel %vm4262, %v2259, 0.0
        %v4647 = vsel %vm4263, %v2261, 0.0
        %v4648 = vsel %vm4264, %v2263, 0.0
        %v4649 = vsel %vm4265, %v2265, 0.0
        %v4650 = vsel %vm4266, %v2267, 0.0
        %v4651 = vsel %vm4267, %v2269, 0.0
        %v4652 = vsel %vm4268, %v2271, 0.0
        %v4653 = vsel %vm4269, %v2273, 0.0
        %v4654 = vsel %vm4270, %v2275, 0.0
        %v4655 = vsel %vm4271, %v2277, 0.0
        %v4656 = vsel %vm4272, %v2279, 0.0
        %v4657 = vsel %vm4273, %v2281, 0.0
        %v4658 = vsel %vm4274, %v2283, 0.0
        %v4659 = vsel %vm4275, %v2285, 0.0
        %v4660 = vsel %vm4276, %v2287, 0.0
        %v4661 = vsel %vm4277, %v2289, 0.0
        %v4662 = vsel %vm4278, %v2291, 0.0
        %v4663 = vsel %vm4279, %v2293, 0.0
        %v4664 = vsel %vm4280, %v2295, 0.0
        %v4665 = vsel %vm4281, %v2297, 0.0
        %v4666 = vsel %vm4282, %v2299, 0.0
        %v4667 = vsel %vm4283, %v2301, 0.0
        %v4668 = vsel %vm4284, %v2303, 0.0
        %v4669 = vsel %vm4285, %v2305, 0.0
        %v4670 = vsel %vm4286, %v2307, 0.0
        %v4671 = vsel %vm4287, %v2309, 0.0
        %v4672 = vsel %vm4288, %v2311, 0.0
        %v4673 = vsel %vm4289, %v2313, 0.0
        %v4674 = vsel %vm4290, %v2315, 0.0
        %v4675 = vsel %vm4291, %v2317, 0.0
        %v4676 = vsel %vm4292, %v2319, 0.0
        %v4677 = vsel %vm4293, %v2321, 0.0
        %v4678 = vsel %vm4294, %v2323, 0.0
        %v4679 = vsel %vm4295, %v2325, 0.0
        %v4680 = vsel %vm4296, %v2327, 0.0
        %v4681 = vsel %vm4297, %v2329, 0.0
        %v4682 = vsel %vm4298, %v2331, 0.0
        %v4683 = vmul.f32 %v4555, %v4300
        %v4684 = vmul.f32 %v4556, %v4302
        %v4685 = vmul.f32 %v4557, %v4304
        %v4686 = vmul.f32 %v4558, %v4306
        %v4687 = vmul.f32 %v4559, %v4308
        %v4688 = vmul.f32 %v4560, %v4310
        %v4689 = vmul.f32 %v4561, %v4312
        %v4690 = vmul.f32 %v4562, %v4314
        %v4691 = vmul.f32 %v4563, %v4316
        %v4692 = vmul.f32 %v4564, %v4318
        %v4693 = vmul.f32 %v4565, %v4320
        %v4694 = vmul.f32 %v4566, %v4322
        %v4695 = vmul.f32 %v4567, %v4324
        %v4696 = vmul.f32 %v4568, %v4326
        %v4697 = vmul.f32 %v4569, %v4328
        %v4698 = vmul.f32 %v4570, %v4330
        %v4699 = vmul.f32 %v4571, %v4332
        %v4700 = vmul.f32 %v4572, %v4334
        %v4701 = vmul.f32 %v4573, %v4336
        %v4702 = vmul.f32 %v4574, %v4338
        %v4703 = vmul.f32 %v4575, %v4340
        %v4704 = vmul.f32 %v4576, %v4342
        %v4705 = vmul.f32 %v4577, %v4344
        %v4706 = vmul.f32 %v4578, %v4346
        %v4707 = vmul.f32 %v4579, %v4348
        %v4708 = vmul.f32 %v4580, %v4350
        %v4709 = vmul.f32 %v4581, %v4352
        %v4710 = vmul.f32 %v4582, %v4354
        %v4711 = vmul.f32 %v4583, %v4356
        %v4712 = vmul.f32 %v4584, %v4358
        %v4713 = vmul.f32 %v4585, %v4360
        %v4714 = vmul.f32 %v4586, %v4362
        %v4715 = vmul.f32 %v4587, %v4364
        %v4716 = vmul.f32 %v4588, %v4366
        %v4717 = vmul.f32 %v4589, %v4368
        %v4718 = vmul.f32 %v4590, %v4370
        %v4719 = vmul.f32 %v4591, %v4372
        %v4720 = vmul.f32 %v4592, %v4374
        %v4721 = vmul.f32 %v4593, %v4376
        %v4722 = vmul.f32 %v4594, %v4378
        %v4723 = vmul.f32 %v4595, %v4380
        %v4724 = vmul.f32 %v4596, %v4382
        %v4725 = vmul.f32 %v4597, %v4384
        %v4726 = vmul.f32 %v4598, %v4386
        %v4727 = vmul.f32 %v4599, %v4388
        %v4728 = vmul.f32 %v4600, %v4390
        %v4729 = vmul.f32 %v4601, %v4392
        %v4730 = vmul.f32 %v4602, %v4394
        %v4731 = vmul.f32 %v4603, %v4396
        %v4732 = vmul.f32 %v4604, %v4398
        %v4733 = vmul.f32 %v4605, %v4400
        %v4734 = vmul.f32 %v4606, %v4402
        %v4735 = vmul.f32 %v4607, %v4404
        %v4736 = vmul.f32 %v4608, %v4406
        %v4737 = vmul.f32 %v4609, %v4408
        %v4738 = vmul.f32 %v4610, %v4410
        %v4739 = vmul.f32 %v4611, %v4412
        %v4740 = vmul.f32 %v4612, %v4414
        %v4741 = vmul.f32 %v4613, %v4416
        %v4742 = vmul.f32 %v4614, %v4418
        %v4743 = vmul.f32 %v4615, %v4420
        %v4744 = vmul.f32 %v4616, %v4422
        %v4745 = vmul.f32 %v4617, %v4424
        %v4746 = vmul.f32 %v4618, %v4426
        %v4747 = vmul.f32 %v4619, %v4428
        %v4748 = vmul.f32 %v4620, %v4430
        %v4749 = vmul.f32 %v4621, %v4432
        %v4750 = vmul.f32 %v4622, %v4434
        %v4751 = vmul.f32 %v4623, %v4436
        %v4752 = vmul.f32 %v4624, %v4438
        %v4753 = vmul.f32 %v4625, %v4440
        %v4754 = vmul.f32 %v4626, %v4442
        %v4755 = vmul.f32 %v4627, %v4444
        %v4756 = vmul.f32 %v4628, %v4446
        %v4757 = vmul.f32 %v4629, %v4448
        %v4758 = vmul.f32 %v4630, %v4450
        %v4759 = vmul.f32 %v4631, %v4452
        %v4760 = vmul.f32 %v4632, %v4454
        %v4761 = vmul.f32 %v4633, %v4456
        %v4762 = vmul.f32 %v4634, %v4458
        %v4763 = vmul.f32 %v4635, %v4460
        %v4764 = vmul.f32 %v4636, %v4462
        %v4765 = vmul.f32 %v4637, %v4464
        %v4766 = vmul.f32 %v4638, %v4466
        %v4767 = vmul.f32 %v4639, %v4468
        %v4768 = vmul.f32 %v4640, %v4470
        %v4769 = vmul.f32 %v4641, %v4472
        %v4770 = vmul.f32 %v4642, %v4474
        %v4771 = vmul.f32 %v4643, %v4476
        %v4772 = vmul.f32 %v4644, %v4478
        %v4773 = vmul.f32 %v4645, %v4480
        %v4774 = vmul.f32 %v4646, %v4482
        %v4775 = vmul.f32 %v4647, %v4484
        %v4776 = vmul.f32 %v4648, %v4486
        %v4777 = vmul.f32 %v4649, %v4488
        %v4778 = vmul.f32 %v4650, %v4490
        %v4779 = vmul.f32 %v4651, %v4492
        %v4780 = vmul.f32 %v4652, %v4494
        %v4781 = vmul.f32 %v4653, %v4496
        %v4782 = vmul.f32 %v4654, %v4498
        %v4783 = vmul.f32 %v4655, %v4500
        %v4784 = vmul.f32 %v4656, %v4502
        %v4785 = vmul.f32 %v4657, %v4504
        %v4786 = vmul.f32 %v4658, %v4506
        %v4787 = vmul.f32 %v4659, %v4508
        %v4788 = vmul.f32 %v4660, %v4510
        %v4789 = vmul.f32 %v4661, %v4512
        %v4790 = vmul.f32 %v4662, %v4514
        %v4791 = vmul.f32 %v4663, %v4516
        %v4792 = vmul.f32 %v4664, %v4518
        %v4793 = vmul.f32 %v4665, %v4520
        %v4794 = vmul.f32 %v4666, %v4522
        %v4795 = vmul.f32 %v4667, %v4524
        %v4796 = vmul.f32 %v4668, %v4526
        %v4797 = vmul.f32 %v4669, %v4528
        %v4798 = vmul.f32 %v4670, %v4530
        %v4799 = vmul.f32 %v4671, %v4532
        %v4800 = vmul.f32 %v4672, %v4534
        %v4801 = vmul.f32 %v4673, %v4536
        %v4802 = vmul.f32 %v4674, %v4538
        %v4803 = vmul.f32 %v4675, %v4540
        %v4804 = vmul.f32 %v4676, %v4542
        %v4805 = vmul.f32 %v4677, %v4544
        %v4806 = vmul.f32 %v4678, %v4546
        %v4807 = vmul.f32 %v4679, %v4548
        %v4808 = vmul.f32 %v4680, %v4550
        %v4809 = vmul.f32 %v4681, %v4552
        %v4810 = vmul.f32 %v4682, %v4554
        %v4811 = vpack.c.bf16 %v4684, %v4683
        %v4812 = vpack.c.bf16 %v4686, %v4685
        %v4813 = vpack.c.bf16 %v4688, %v4687
        %v4814 = vpack.c.bf16 %v4690, %v4689
        %v4815 = vpack.c.bf16 %v4692, %v4691
        %v4816 = vpack.c.bf16 %v4694, %v4693
        %v4817 = vpack.c.bf16 %v4696, %v4695
        %v4818 = vpack.c.bf16 %v4698, %v4697
        %v4819 = vpack.c.bf16 %v4700, %v4699
        %v4820 = vpack.c.bf16 %v4702, %v4701
        %v4821 = vpack.c.bf16 %v4704, %v4703
        %v4822 = vpack.c.bf16 %v4706, %v4705
        %v4823 = vpack.c.bf16 %v4708, %v4707
        %v4824 = vpack.c.bf16 %v4710, %v4709
        %v4825 = vpack.c.bf16 %v4712, %v4711
        %v4826 = vpack.c.bf16 %v4714, %v4713
        %v4827 = vpack.c.bf16 %v4716, %v4715
        %v4828 = vpack.c.bf16 %v4718, %v4717
        %v4829 = vpack.c.bf16 %v4720, %v4719
        %v4830 = vpack.c.bf16 %v4722, %v4721
        %v4831 = vpack.c.bf16 %v4724, %v4723
        %v4832 = vpack.c.bf16 %v4726, %v4725
        %v4833 = vpack.c.bf16 %v4728, %v4727
        %v4834 = vpack.c.bf16 %v4730, %v4729
        %v4835 = vpack.c.bf16 %v4732, %v4731
        %v4836 = vpack.c.bf16 %v4734, %v4733
        %v4837 = vpack.c.bf16 %v4736, %v4735
        %v4838 = vpack.c.bf16 %v4738, %v4737
        %v4839 = vpack.c.bf16 %v4740, %v4739
        %v4840 = vpack.c.bf16 %v4742, %v4741
        %v4841 = vpack.c.bf16 %v4744, %v4743
        %v4842 = vpack.c.bf16 %v4746, %v4745
        %v4843 = vpack.c.bf16 %v4748, %v4747
        %v4844 = vpack.c.bf16 %v4750, %v4749
        %v4845 = vpack.c.bf16 %v4752, %v4751
        %v4846 = vpack.c.bf16 %v4754, %v4753
        %v4847 = vpack.c.bf16 %v4756, %v4755
        %v4848 = vpack.c.bf16 %v4758, %v4757
        %v4849 = vpack.c.bf16 %v4760, %v4759
        %v4850 = vpack.c.bf16 %v4762, %v4761
        %v4851 = vpack.c.bf16 %v4764, %v4763
        %v4852 = vpack.c.bf16 %v4766, %v4765
        %v4853 = vpack.c.bf16 %v4768, %v4767
        %v4854 = vpack.c.bf16 %v4770, %v4769
        %v4855 = vpack.c.bf16 %v4772, %v4771
        %v4856 = vpack.c.bf16 %v4774, %v4773
        %v4857 = vpack.c.bf16 %v4776, %v4775
        %v4858 = vpack.c.bf16 %v4778, %v4777
        %v4859 = vpack.c.bf16 %v4780, %v4779
        %v4860 = vpack.c.bf16 %v4782, %v4781
        %v4861 = vpack.c.bf16 %v4784, %v4783
        %v4862 = vpack.c.bf16 %v4786, %v4785
        %v4863 = vpack.c.bf16 %v4788, %v4787
        %v4864 = vpack.c.bf16 %v4790, %v4789
        %v4865 = vpack.c.bf16 %v4792, %v4791
        %v4866 = vpack.c.bf16 %v4794, %v4793
        %v4867 = vpack.c.bf16 %v4796, %v4795
        %v4868 = vpack.c.bf16 %v4798, %v4797
        %v4869 = vpack.c.bf16 %v4800, %v4799
        %v4870 = vpack.c.bf16 %v4802, %v4801
        %v4871 = vpack.c.bf16 %v4804, %v4803
        %v4872 = vpack.c.bf16 %v4806, %v4805
        %v4873 = vpack.c.bf16 %v4808, %v4807
        %v4874 = vpack.c.bf16 %v4810, %v4809
        %v4875 = vpack.c.bf16 %v533, %v532
        %v4876 = vpack.c.bf16 %v535, %v534
        %v4877 = vpack.c.bf16 %v537, %v536
        %v4878 = vpack.c.bf16 %v539, %v538
        %v4879 = vpack.c.bf16 %v541, %v540
        %v4880 = vpack.c.bf16 %v543, %v542
        %v4881 = vpack.c.bf16 %v545, %v544
        %v4882 = vpack.c.bf16 %v547, %v546
        %v4883 = vpack.c.bf16 %v549, %v548
        %v4884 = vpack.c.bf16 %v551, %v550
        %v4885 = vpack.c.bf16 %v553, %v552
        %v4886 = vpack.c.bf16 %v555, %v554
        %v4887 = vpack.c.bf16 %v557, %v556
        %v4888 = vpack.c.bf16 %v559, %v558
        %v4889 = vpack.c.bf16 %v561, %v560
        %v4890 = vpack.c.bf16 %v563, %v562
        %v4891 = vpack.c.bf16 %v565, %v564
        %v4892 = vpack.c.bf16 %v567, %v566
        %v4893 = vpack.c.bf16 %v569, %v568
        %v4894 = vpack.c.bf16 %v571, %v570
        %v4895 = vpack.c.bf16 %v573, %v572
        %v4896 = vpack.c.bf16 %v575, %v574
        %v4897 = vpack.c.bf16 %v577, %v576
        %v4898 = vpack.c.bf16 %v579, %v578
        %v4899 = vpack.c.bf16 %v581, %v580
        %v4900 = vpack.c.bf16 %v583, %v582
        %v4901 = vpack.c.bf16 %v585, %v584
        %v4902 = vpack.c.bf16 %v587, %v586
        %v4903 = vpack.c.bf16 %v589, %v588
        %v4904 = vpack.c.bf16 %v591, %v590
        %v4905 = vpack.c.bf16 %v593, %v592
        %v4906 = vpack.c.bf16 %v595, %v594
        %v4907 = vpack.c.bf16 %v597, %v596
        %v4908 = vpack.c.bf16 %v599, %v598
        %v4909 = vpack.c.bf16 %v601, %v600
        %v4910 = vpack.c.bf16 %v603, %v602
        %v4911 = vpack.c.bf16 %v605, %v604
        %v4912 = vpack.c.bf16 %v607, %v606
        %v4913 = vpack.c.bf16 %v609, %v608
        %v4914 = vpack.c.bf16 %v611, %v610
        %v4915 = vpack.c.bf16 %v613, %v612
        %v4916 = vpack.c.bf16 %v615, %v614
        %v4917 = vpack.c.bf16 %v617, %v616
        %v4918 = vpack.c.bf16 %v619, %v618
        %v4919 = vpack.c.bf16 %v621, %v620
        %v4920 = vpack.c.bf16 %v623, %v622
        %v4921 = vpack.c.bf16 %v625, %v624
        %v4922 = vpack.c.bf16 %v627, %v626
        %v4923 = vpack.c.bf16 %v629, %v628
        %v4924 = vpack.c.bf16 %v631, %v630
        %v4925 = vpack.c.bf16 %v633, %v632
        %v4926 = vpack.c.bf16 %v635, %v634
        %v4927 = vpack.c.bf16 %v637, %v636
        %v4928 = vpack.c.bf16 %v639, %v638
        %v4929 = vpack.c.bf16 %v641, %v640
        %v4930 = vpack.c.bf16 %v643, %v642
        %v4931 = vpack.c.bf16 %v645, %v644
        %v4932 = vpack.c.bf16 %v647, %v646
        %v4933 = vpack.c.bf16 %v649, %v648
        %v4934 = vpack.c.bf16 %v651, %v650
        %v4935 = vpack.c.bf16 %v653, %v652
        %v4936 = vpack.c.bf16 %v655, %v654
        %v4937 = vpack.c.bf16 %v657, %v656
        %v4938 = vpack.c.bf16 %v659, %v658
        %4939 = vmatprep.subr.bf16.mxu0 0
        %4940 = vmatpush1.bf16.msra.mxu0 %v4875
        %4941 = vmatprep.subr.bf16.mxu0 0
        %4942 = vmatpush1.bf16.msra.mxu0 %v4876
        %4943 = vmatprep.subr.bf16.mxu0 0
        %4944 = vmatpush1.bf16.msra.mxu0 %v4877
        %4945 = vmatprep.subr.bf16.mxu0 0
        %4946 = vmatpush1.bf16.msra.mxu0 %v4878
        %4947 = vmatprep.subr.bf16.mxu0 0
        %4948 = vmatpush1.bf16.msra.mxu0 %v4879
        %4949 = vmatprep.subr.bf16.mxu0 0
        %4950 = vmatpush1.bf16.msra.mxu0 %v4880
        %4951 = vmatprep.subr.bf16.mxu0 0
        %4952 = vmatpush1.bf16.msra.mxu0 %v4881
        %4953 = vmatprep.subr.bf16.mxu0 0
        %4954 = vmatpush1.bf16.msra.mxu0 %v4882
        %4955 = vmatprep.subr.bf16.mxu0 0
        %4956 = vmatpush1.bf16.msra.mxu0 0
        %4957 = vmatprep.subr.bf16.mxu0 0
        %4958 = vmatpush1.bf16.msra.mxu0 0
        %4959 = vmatprep.subr.bf16.mxu0 0
        %4960 = vmatpush1.bf16.msra.mxu0 0
        %4961 = vmatprep.subr.bf16.mxu0 0
        %4962 = vmatpush1.bf16.msra.mxu0 0
        %4963 = vmatprep.subr.bf16.mxu0 0
        %4964 = vmatpush1.bf16.msra.mxu0 0
        %4965 = vmatprep.subr.bf16.mxu0 0
        %4966 = vmatpush1.bf16.msra.mxu0 0
        %4967 = vmatprep.subr.bf16.mxu0 0
        %4968 = vmatpush1.bf16.msra.mxu0 0
        %4969 = vmatprep.subr.bf16.mxu0 0
        %4970 = vmatpush1.bf16.msra.mxu0 0
        %4971 = vmatprep.mubr.bf16.mxu0 0
        %4972 = vmatmul.mubr.bf16.gmra.mrb[0].mxu0 %v4811
        %v4973 = vpop.f32.mrb[0].mxu0
        %v4974 = vadd.f32 0.0, %v4973
        %v4975 = vpop.f32.mrb[0].mxu0
        %v4976 = vpop.f32.mrb[0].mxu0
        %v4977 = vadd.f32 0.0, %v4976
        %v4978 = vpop.f32.mrb[0].mxu0
        %4979 = vmatprep.mubr.bf16.mxu0 0
        %4980 = vmatmul.mubr.bf16.gmra.mrb[0].mxu0 %v4812
        %v4981 = vpop.f32.mrb[0].mxu0
        %v4982 = vadd.f32 0.0, %v4981
        %v4983 = vpop.f32.mrb[0].mxu0
        %v4984 = vpop.f32.mrb[0].mxu0
        %v4985 = vadd.f32 0.0, %v4984
        %v4986 = vpop.f32.mrb[0].mxu0
        %4987 = vmatprep.mubr.bf16.mxu0 0
        %4988 = vmatmul.mubr.bf16.gmra.mrb[0].mxu0 %v4813
        %v4989 = vpop.f32.mrb[0].mxu0
        %v4990 = vadd.f32 0.0, %v4989
        %v4991 = vpop.f32.mrb[0].mxu0
        %v4992 = vpop.f32.mrb[0].mxu0
        %v4993 = vadd.f32 0.0, %v4992
        %v4994 = vpop.f32.mrb[0].mxu0
        %4995 = vmatprep.mubr.bf16.mxu0 0
        %4996 = vmatmul.mubr.bf16.gmra.mrb[0].mxu0 %v4814
        %v4997 = vpop.f32.mrb[0].mxu0
        %v4998 = vadd.f32 0.0, %v4997
        %v4999 = vpop.f32.mrb[0].mxu0
        %v5000 = vpop.f32.mrb[0].mxu0
        %v5001 = vadd.f32 0.0, %v5000
        %v5002 = vpop.f32.mrb[0].mxu0
        %5003 = vmatprep.mubr.bf16.mxu0 0
        %5004 = vmatmul.mubr.bf16.gmra.mrb[0].mxu0 %v4815
        %v5005 = vpop.f32.mrb[0].mxu0
        %v5006 = vadd.f32 0.0, %v5005
        %v5007 = vpop.f32.mrb[0].mxu0
        %v5008 = vpop.f32.mrb[0].mxu0
        %v5009 = vadd.f32 0.0, %v5008
        %v5010 = vpop.f32.mrb[0].mxu0
        %5011 = vmatprep.mubr.bf16.mxu0 0
        %5012 = vmatmul.mubr.bf16.gmra.mrb[0].mxu0 %v4816
        %v5013 = vpop.f32.mrb[0].mxu0
        %v5014 = vadd.f32 0.0, %v5013
        %v5015 = vpop.f32.mrb[0].mxu0
        %v5016 = vpop.f32.mrb[0].mxu0
        %v5017 = vadd.f32 0.0, %v5016
        %v5018 = vpop.f32.mrb[0].mxu0
        %5019 = vmatprep.mubr.bf16.mxu0 0
        %5020 = vmatmul.mubr.bf16.gmra.mrb[0].mxu0 %v4817
        %v5021 = vpop.f32.mrb[0].mxu0
        %v5022 = vadd.f32 0.0, %v5021
        %v5023 = vpop.f32.mrb[0].mxu0
        %v5024 = vpop.f32.mrb[0].mxu0
        %v5025 = vadd.f32 0.0, %v5024
        %v5026 = vpop.f32.mrb[0].mxu0
        %5027 = vmatprep.mubr.bf16.mxu0 0
        %5028 = vmatmul.mubr.bf16.gmra.mrb[0].mxu0 %v4818
        %v5029 = vpop.f32.mrb[0].mxu0
        %v5030 = vadd.f32 0.0, %v5029
        %v5031 = vpop.f32.mrb[0].mxu0
        %v5032 = vpop.f32.mrb[0].mxu0
        %v5033 = vadd.f32 0.0, %v5032
        %v5034 = vpop.f32.mrb[0].mxu0
        %5035 = vdwg.mxu0
        %5036 = vmatprep.subr.bf16.mxu0 0
        %5037 = vmatpush1.bf16.msra.mxu0 %v4883
        %5038 = vmatprep.subr.bf16.mxu0 0
        %5039 = vmatpush1.bf16.msra.mxu0 %v4884
        %5040 = vmatprep.subr.bf16.mxu0 0
        %5041 = vmatpush1.bf16.msra.mxu0 %v4885
        %5042 = vmatprep.subr.bf16.mxu0 0
        %5043 = vmatpush1.bf16.msra.mxu0 %v4886
        %5044 = vmatprep.subr.bf16.mxu0 0
        %5045 = vmatpush1.bf16.msra.mxu0 %v4887
        %5046 = vmatprep.subr.bf16.mxu0 0
        %5047 = vmatpush1.bf16.msra.mxu0 %v4888
        %5048 = vmatprep.subr.bf16.mxu0 0
        %5049 = vmatpush1.bf16.msra.mxu0 %v4889
        %5050 = vmatprep.subr.bf16.mxu0 0
        %5051 = vmatpush1.bf16.msra.mxu0 %v4890
        %5052 = vmatprep.subr.bf16.mxu0 0
        %5053 = vmatpush1.bf16.msra.mxu0 0
        %5054 = vmatprep.subr.bf16.mxu0 0
        %5055 = vmatpush1.bf16.msra.mxu0 0
        %5056 = vmatprep.subr.bf16.mxu0 0
        %5057 = vmatpush1.bf16.msra.mxu0 0
        %5058 = vmatprep.subr.bf16.mxu0 0
        %5059 = vmatpush1.bf16.msra.mxu0 0
        %5060 = vmatprep.subr.bf16.mxu0 0
        %5061 = vmatpush1.bf16.msra.mxu0 0
        %5062 = vmatprep.subr.bf16.mxu0 0
        %5063 = vmatpush1.bf16.msra.mxu0 0
        %5064 = vmatprep.subr.bf16.mxu0 0
        %5065 = vmatpush1.bf16.msra.mxu0 0
        %5066 = vmatprep.subr.bf16.mxu0 0
        %5067 = vmatpush1.bf16.msra.mxu0 0
        %5068 = vmatprep.mubr.bf16.mxu0 0
        %5069 = vmatmul.mubr.bf16.gmra.mrb[0].mxu0 %v4819
        %v5070 = vpop.f32.mrb[0].mxu0
        %v5071 = vadd.f32 0.0, %v5070
        %v5072 = vpop.f32.mrb[0].mxu0
        %v5073 = vpop.f32.mrb[0].mxu0
        %v5074 = vadd.f32 0.0, %v5073
        %v5075 = vpop.f32.mrb[0].mxu0
        %5076 = vmatprep.mubr.bf16.mxu0 0
        %5077 = vmatmul.mubr.bf16.gmra.mrb[0].mxu0 %v4820
        %v5078 = vpop.f32.mrb[0].mxu0
        %v5079 = vadd.f32 0.0, %v5078
        %v5080 = vpop.f32.mrb[0].mxu0
        %v5081 = vpop.f32.mrb[0].mxu0
        %v5082 = vadd.f32 0.0, %v5081
        %v5083 = vpop.f32.mrb[0].mxu0
        %5084 = vmatprep.mubr.bf16.mxu0 0
        %5085 = vmatmul.mubr.bf16.gmra.mrb[0].mxu0 %v4821
        %v5086 = vpop.f32.mrb[0].mxu0
        %v5087 = vadd.f32 0.0, %v5086
        %v5088 = vpop.f32.mrb[0].mxu0
        %v5089 = vpop.f32.mrb[0].mxu0
        %v5090 = vadd.f32 0.0, %v5089
        %v5091 = vpop.f32.mrb[0].mxu0
        %5092 = vmatprep.mubr.bf16.mxu0 0
        %5093 = vmatmul.mubr.bf16.gmra.mrb[0].mxu0 %v4822
        %v5094 = vpop.f32.mrb[0].mxu0
        %v5095 = vadd.f32 0.0, %v5094
        %v5096 = vpop.f32.mrb[0].mxu0
        %v5097 = vpop.f32.mrb[0].mxu0
        %v5098 = vadd.f32 0.0, %v5097
        %v5099 = vpop.f32.mrb[0].mxu0
        %5100 = vmatprep.mubr.bf16.mxu0 0
        %5101 = vmatmul.mubr.bf16.gmra.mrb[0].mxu0 %v4823
        %v5102 = vpop.f32.mrb[0].mxu0
        %v5103 = vadd.f32 0.0, %v5102
        %v5104 = vpop.f32.mrb[0].mxu0
        %v5105 = vpop.f32.mrb[0].mxu0
        %v5106 = vadd.f32 0.0, %v5105
        %v5107 = vpop.f32.mrb[0].mxu0
        %5108 = vmatprep.mubr.bf16.mxu0 0
        %5109 = vmatmul.mubr.bf16.gmra.mrb[0].mxu0 %v4824
        %v5110 = vpop.f32.mrb[0].mxu0
        %v5111 = vadd.f32 0.0, %v5110
        %v5112 = vpop.f32.mrb[0].mxu0
        %v5113 = vpop.f32.mrb[0].mxu0
        %v5114 = vadd.f32 0.0, %v5113
        %v5115 = vpop.f32.mrb[0].mxu0
        %5116 = vmatprep.mubr.bf16.mxu0 0
        %5117 = vmatmul.mubr.bf16.gmra.mrb[0].mxu0 %v4825
        %v5118 = vpop.f32.mrb[0].mxu0
        %v5119 = vadd.f32 0.0, %v5118
        %v5120 = vpop.f32.mrb[0].mxu0
        %v5121 = vpop.f32.mrb[0].mxu0
        %v5122 = vadd.f32 0.0, %v5121
        %v5123 = vpop.f32.mrb[0].mxu0
        %5124 = vmatprep.mubr.bf16.mxu0 0
        %5125 = vmatmul.mubr.bf16.gmra.mrb[0].mxu0 %v4826
        %v5126 = vpop.f32.mrb[0].mxu0
        %v5127 = vadd.f32 0.0, %v5126
        %v5128 = vpop.f32.mrb[0].mxu0
        %v5129 = vpop.f32.mrb[0].mxu0
        %v5130 = vadd.f32 0.0, %v5129
        %v5131 = vpop.f32.mrb[0].mxu0
        %5132 = vdwg.mxu0
        %5133 = vmatprep.subr.bf16.mxu0 0
        %5134 = vmatpush1.bf16.msra.mxu0 %v4891
        %5135 = vmatprep.subr.bf16.mxu0 0
        %5136 = vmatpush1.bf16.msra.mxu0 %v4892
        %5137 = vmatprep.subr.bf16.mxu0 0
        %5138 = vmatpush1.bf16.msra.mxu0 %v4893
        %5139 = vmatprep.subr.bf16.mxu0 0
        %5140 = vmatpush1.bf16.msra.mxu0 %v4894
        %5141 = vmatprep.subr.bf16.mxu0 0
        %5142 = vmatpush1.bf16.msra.mxu0 %v4895
        %5143 = vmatprep.subr.bf16.mxu0 0
        %5144 = vmatpush1.bf16.msra.mxu0 %v4896
        %5145 = vmatprep.subr.bf16.mxu0 0
        %5146 = vmatpush1.bf16.msra.mxu0 %v4897
        %5147 = vmatprep.subr.bf16.mxu0 0
        %5148 = vmatpush1.bf16.msra.mxu0 %v4898
        %5149 = vmatprep.subr.bf16.mxu0 0
        %5150 = vmatpush1.bf16.msra.mxu0 0
        %5151 = vmatprep.subr.bf16.mxu0 0
        %5152 = vmatpush1.bf16.msra.mxu0 0
        %5153 = vmatprep.subr.bf16.mxu0 0
        %5154 = vmatpush1.bf16.msra.mxu0 0
        %5155 = vmatprep.subr.bf16.mxu0 0
        %5156 = vmatpush1.bf16.msra.mxu0 0
        %5157 = vmatprep.subr.bf16.mxu0 0
        %5158 = vmatpush1.bf16.msra.mxu0 0
        %5159 = vmatprep.subr.bf16.mxu0 0
        %5160 = vmatpush1.bf16.msra.mxu0 0
        %5161 = vmatprep.subr.bf16.mxu0 0
        %5162 = vmatpush1.bf16.msra.mxu0 0
        %5163 = vmatprep.subr.bf16.mxu0 0
        %5164 = vmatpush1.bf16.msra.mxu0 0
        %5165 = vmatprep.mubr.bf16.mxu0 0
        %5166 = vmatmul.mubr.bf16.gmra.mrb[0].mxu0 %v4827
        %v5167 = vpop.f32.mrb[0].mxu0
        %v5168 = vadd.f32 0.0, %v5167
        %v5169 = vpop.f32.mrb[0].mxu0
        %v5170 = vpop.f32.mrb[0].mxu0
        %v5171 = vadd.f32 0.0, %v5170
        %v5172 = vpop.f32.mrb[0].mxu0
        %5173 = vmatprep.mubr.bf16.mxu0 0
        %5174 = vmatmul.mubr.bf16.gmra.mrb[0].mxu0 %v4828
        %v5175 = vpop.f32.mrb[0].mxu0
        %v5176 = vadd.f32 0.0, %v5175
        %v5177 = vpop.f32.mrb[0].mxu0
        %v5178 = vpop.f32.mrb[0].mxu0
        %v5179 = vadd.f32 0.0, %v5178
        %v5180 = vpop.f32.mrb[0].mxu0
        %5181 = vmatprep.mubr.bf16.mxu0 0
        %5182 = vmatmul.mubr.bf16.gmra.mrb[0].mxu0 %v4829
        %v5183 = vpop.f32.mrb[0].mxu0
        %v5184 = vadd.f32 0.0, %v5183
        %v5185 = vpop.f32.mrb[0].mxu0
        %v5186 = vpop.f32.mrb[0].mxu0
        %v5187 = vadd.f32 0.0, %v5186
        %v5188 = vpop.f32.mrb[0].mxu0
        %5189 = vmatprep.mubr.bf16.mxu0 0
        %5190 = vmatmul.mubr.bf16.gmra.mrb[0].mxu0 %v4830
        %v5191 = vpop.f32.mrb[0].mxu0
        %v5192 = vadd.f32 0.0, %v5191
        %v5193 = vpop.f32.mrb[0].mxu0
        %v5194 = vpop.f32.mrb[0].mxu0
        %v5195 = vadd.f32 0.0, %v5194
        %v5196 = vpop.f32.mrb[0].mxu0
        %5197 = vmatprep.mubr.bf16.mxu0 0
        %5198 = vmatmul.mubr.bf16.gmra.mrb[0].mxu0 %v4831
        %v5199 = vpop.f32.mrb[0].mxu0
        %v5200 = vadd.f32 0.0, %v5199
        %v5201 = vpop.f32.mrb[0].mxu0
        %v5202 = vpop.f32.mrb[0].mxu0
        %v5203 = vadd.f32 0.0, %v5202
        %v5204 = vpop.f32.mrb[0].mxu0
        %5205 = vmatprep.mubr.bf16.mxu0 0
        %5206 = vmatmul.mubr.bf16.gmra.mrb[0].mxu0 %v4832
        %v5207 = vpop.f32.mrb[0].mxu0
        %v5208 = vadd.f32 0.0, %v5207
        %v5209 = vpop.f32.mrb[0].mxu0
        %v5210 = vpop.f32.mrb[0].mxu0
        %v5211 = vadd.f32 0.0, %v5210
        %v5212 = vpop.f32.mrb[0].mxu0
        %5213 = vmatprep.mubr.bf16.mxu0 0
        %5214 = vmatmul.mubr.bf16.gmra.mrb[0].mxu0 %v4833
        %v5215 = vpop.f32.mrb[0].mxu0
        %v5216 = vadd.f32 0.0, %v5215
        %v5217 = vpop.f32.mrb[0].mxu0
        %v5218 = vpop.f32.mrb[0].mxu0
        %v5219 = vadd.f32 0.0, %v5218
        %v5220 = vpop.f32.mrb[0].mxu0
        %5221 = vmatprep.mubr.bf16.mxu0 0
        %5222 = vmatmul.mubr.bf16.gmra.mrb[0].mxu0 %v4834
        %v5223 = vpop.f32.mrb[0].mxu0
        %v5224 = vadd.f32 0.0, %v5223
        %v5225 = vpop.f32.mrb[0].mxu0
        %v5226 = vpop.f32.mrb[0].mxu0
        %v5227 = vadd.f32 0.0, %v5226
        %v5228 = vpop.f32.mrb[0].mxu0
        %5229 = vdwg.mxu0
        %5230 = vmatprep.subr.bf16.mxu0 0
        %5231 = vmatpush1.bf16.msra.mxu0 %v4899
        %5232 = vmatprep.subr.bf16.mxu0 0
        %5233 = vmatpush1.bf16.msra.mxu0 %v4900
        %5234 = vmatprep.subr.bf16.mxu0 0
        %5235 = vmatpush1.bf16.msra.mxu0 %v4901
        %5236 = vmatprep.subr.bf16.mxu0 0
        %5237 = vmatpush1.bf16.msra.mxu0 %v4902
        %5238 = vmatprep.subr.bf16.mxu0 0
        %5239 = vmatpush1.bf16.msra.mxu0 %v4903
        %5240 = vmatprep.subr.bf16.mxu0 0
        %5241 = vmatpush1.bf16.msra.mxu0 %v4904
        %5242 = vmatprep.subr.bf16.mxu0 0
        %5243 = vmatpush1.bf16.msra.mxu0 %v4905
        %5244 = vmatprep.subr.bf16.mxu0 0
        %5245 = vmatpush1.bf16.msra.mxu0 %v4906
        %5246 = vmatprep.subr.bf16.mxu0 0
        %5247 = vmatpush1.bf16.msra.mxu0 0
        %5248 = vmatprep.subr.bf16.mxu0 0
        %5249 = vmatpush1.bf16.msra.mxu0 0
        %5250 = vmatprep.subr.bf16.mxu0 0
        %5251 = vmatpush1.bf16.msra.mxu0 0
        %5252 = vmatprep.subr.bf16.mxu0 0
        %5253 = vmatpush1.bf16.msra.mxu0 0
        %5254 = vmatprep.subr.bf16.mxu0 0
        %5255 = vmatpush1.bf16.msra.mxu0 0
        %5256 = vmatprep.subr.bf16.mxu0 0
        %5257 = vmatpush1.bf16.msra.mxu0 0
        %5258 = vmatprep.subr.bf16.mxu0 0
        %5259 = vmatpush1.bf16.msra.mxu0 0
        %5260 = vmatprep.subr.bf16.mxu0 0
        %5261 = vmatpush1.bf16.msra.mxu0 0
        %5262 = vmatprep.mubr.bf16.mxu0 0
        %5263 = vmatmul.mubr.bf16.gmra.mrb[0].mxu0 %v4835
        %v5264 = vpop.f32.mrb[0].mxu0
        %v5265 = vadd.f32 0.0, %v5264
        %v5266 = vpop.f32.mrb[0].mxu0
        %v5267 = vpop.f32.mrb[0].mxu0
        %v5268 = vadd.f32 0.0, %v5267
        %v5269 = vpop.f32.mrb[0].mxu0
        %5270 = vmatprep.mubr.bf16.mxu0 0
        %5271 = vmatmul.mubr.bf16.gmra.mrb[0].mxu0 %v4836
        %v5272 = vpop.f32.mrb[0].mxu0
        %v5273 = vadd.f32 0.0, %v5272
        %v5274 = vpop.f32.mrb[0].mxu0
        %v5275 = vpop.f32.mrb[0].mxu0
        %v5276 = vadd.f32 0.0, %v5275
        %v5277 = vpop.f32.mrb[0].mxu0
        %5278 = vmatprep.mubr.bf16.mxu0 0
        %5279 = vmatmul.mubr.bf16.gmra.mrb[0].mxu0 %v4837
        %v5280 = vpop.f32.mrb[0].mxu0
        %v5281 = vadd.f32 0.0, %v5280
        %v5282 = vpop.f32.mrb[0].mxu0
        %v5283 = vpop.f32.mrb[0].mxu0
        %v5284 = vadd.f32 0.0, %v5283
        %v5285 = vpop.f32.mrb[0].mxu0
        %5286 = vmatprep.mubr.bf16.mxu0 0
        %5287 = vmatmul.mubr.bf16.gmra.mrb[0].mxu0 %v4838
        %v5288 = vpop.f32.mrb[0].mxu0
        %v5289 = vadd.f32 0.0, %v5288
        %v5290 = vpop.f32.mrb[0].mxu0
        %v5291 = vpop.f32.mrb[0].mxu0
        %v5292 = vadd.f32 0.0, %v5291
        %v5293 = vpop.f32.mrb[0].mxu0
        %5294 = vmatprep.mubr.bf16.mxu0 0
        %5295 = vmatmul.mubr.bf16.gmra.mrb[0].mxu0 %v4839
        %v5296 = vpop.f32.mrb[0].mxu0
        %v5297 = vadd.f32 0.0, %v5296
        %v5298 = vpop.f32.mrb[0].mxu0
        %v5299 = vpop.f32.mrb[0].mxu0
        %v5300 = vadd.f32 0.0, %v5299
        %v5301 = vpop.f32.mrb[0].mxu0
        %5302 = vmatprep.mubr.bf16.mxu0 0
        %5303 = vmatmul.mubr.bf16.gmra.mrb[0].mxu0 %v4840
        %v5304 = vpop.f32.mrb[0].mxu0
        %v5305 = vadd.f32 0.0, %v5304
        %v5306 = vpop.f32.mrb[0].mxu0
        %v5307 = vpop.f32.mrb[0].mxu0
        %v5308 = vadd.f32 0.0, %v5307
        %v5309 = vpop.f32.mrb[0].mxu0
        %5310 = vmatprep.mubr.bf16.mxu0 0
        %5311 = vmatmul.mubr.bf16.gmra.mrb[0].mxu0 %v4841
        %v5312 = vpop.f32.mrb[0].mxu0
        %v5313 = vadd.f32 0.0, %v5312
        %v5314 = vpop.f32.mrb[0].mxu0
        %v5315 = vpop.f32.mrb[0].mxu0
        %v5316 = vadd.f32 0.0, %v5315
        %v5317 = vpop.f32.mrb[0].mxu0
        %5318 = vmatprep.mubr.bf16.mxu0 0
        %5319 = vmatmul.mubr.bf16.gmra.mrb[0].mxu0 %v4842
        %v5320 = vpop.f32.mrb[0].mxu0
        %v5321 = vadd.f32 0.0, %v5320
        %v5322 = vpop.f32.mrb[0].mxu0
        %v5323 = vpop.f32.mrb[0].mxu0
        %v5324 = vadd.f32 0.0, %v5323
        %v5325 = vpop.f32.mrb[0].mxu0
        %5326 = vdwg.mxu0
        %5327 = vmatprep.subr.bf16.mxu0 0
        %5328 = vmatpush1.bf16.msra.mxu0 %v4907
        %5329 = vmatprep.subr.bf16.mxu0 0
        %5330 = vmatpush1.bf16.msra.mxu0 %v4908
        %5331 = vmatprep.subr.bf16.mxu0 0
        %5332 = vmatpush1.bf16.msra.mxu0 %v4909
        %5333 = vmatprep.subr.bf16.mxu0 0
        %5334 = vmatpush1.bf16.msra.mxu0 %v4910
        %5335 = vmatprep.subr.bf16.mxu0 0
        %5336 = vmatpush1.bf16.msra.mxu0 %v4911
        %5337 = vmatprep.subr.bf16.mxu0 0
        %5338 = vmatpush1.bf16.msra.mxu0 %v4912
        %5339 = vmatprep.subr.bf16.mxu0 0
        %5340 = vmatpush1.bf16.msra.mxu0 %v4913
        %5341 = vmatprep.subr.bf16.mxu0 0
        %5342 = vmatpush1.bf16.msra.mxu0 %v4914
        %5343 = vmatprep.subr.bf16.mxu0 0
        %5344 = vmatpush1.bf16.msra.mxu0 0
        %5345 = vmatprep.subr.bf16.mxu0 0
        %5346 = vmatpush1.bf16.msra.mxu0 0
        %5347 = vmatprep.subr.bf16.mxu0 0
        %5348 = vmatpush1.bf16.msra.mxu0 0
        %5349 = vmatprep.subr.bf16.mxu0 0
        %5350 = vmatpush1.bf16.msra.mxu0 0
        %5351 = vmatprep.subr.bf16.mxu0 0
        %5352 = vmatpush1.bf16.msra.mxu0 0
        %5353 = vmatprep.subr.bf16.mxu0 0
        %5354 = vmatpush1.bf16.msra.mxu0 0
        %5355 = vmatprep.subr.bf16.mxu0 0
        %5356 = vmatpush1.bf16.msra.mxu0 0
        %5357 = vmatprep.subr.bf16.mxu0 0
        %5358 = vmatpush1.bf16.msra.mxu0 0
        %5359 = vmatprep.mubr.bf16.mxu0 0
        %5360 = vmatmul.mubr.bf16.gmra.mrb[0].mxu0 %v4843
        %v5361 = vpop.f32.mrb[0].mxu0
        %v5362 = vadd.f32 0.0, %v5361
        %v5363 = vpop.f32.mrb[0].mxu0
        %v5364 = vpop.f32.mrb[0].mxu0
        %v5365 = vadd.f32 0.0, %v5364
        %v5366 = vpop.f32.mrb[0].mxu0
        %5367 = vmatprep.mubr.bf16.mxu0 0
        %5368 = vmatmul.mubr.bf16.gmra.mrb[0].mxu0 %v4844
        %v5369 = vpop.f32.mrb[0].mxu0
        %v5370 = vadd.f32 0.0, %v5369
        %v5371 = vpop.f32.mrb[0].mxu0
        %v5372 = vpop.f32.mrb[0].mxu0
        %v5373 = vadd.f32 0.0, %v5372
        %v5374 = vpop.f32.mrb[0].mxu0
        %5375 = vmatprep.mubr.bf16.mxu0 0
        %5376 = vmatmul.mubr.bf16.gmra.mrb[0].mxu0 %v4845
        %v5377 = vpop.f32.mrb[0].mxu0
        %v5378 = vadd.f32 0.0, %v5377
        %v5379 = vpop.f32.mrb[0].mxu0
        %v5380 = vpop.f32.mrb[0].mxu0
        %v5381 = vadd.f32 0.0, %v5380
        %v5382 = vpop.f32.mrb[0].mxu0
        %5383 = vmatprep.mubr.bf16.mxu0 0
        %5384 = vmatmul.mubr.bf16.gmra.mrb[0].mxu0 %v4846
        %v5385 = vpop.f32.mrb[0].mxu0
        %v5386 = vadd.f32 0.0, %v5385
        %v5387 = vpop.f32.mrb[0].mxu0
        %v5388 = vpop.f32.mrb[0].mxu0
        %v5389 = vadd.f32 0.0, %v5388
        %v5390 = vpop.f32.mrb[0].mxu0
        %5391 = vmatprep.mubr.bf16.mxu0 0
        %5392 = vmatmul.mubr.bf16.gmra.mrb[0].mxu0 %v4847
        %v5393 = vpop.f32.mrb[0].mxu0
        %v5394 = vadd.f32 0.0, %v5393
        %v5395 = vpop.f32.mrb[0].mxu0
        %v5396 = vpop.f32.mrb[0].mxu0
        %v5397 = vadd.f32 0.0, %v5396
        %v5398 = vpop.f32.mrb[0].mxu0
        %5399 = vmatprep.mubr.bf16.mxu0 0
        %5400 = vmatmul.mubr.bf16.gmra.mrb[0].mxu0 %v4848
        %v5401 = vpop.f32.mrb[0].mxu0
        %v5402 = vadd.f32 0.0, %v5401
        %v5403 = vpop.f32.mrb[0].mxu0
        %v5404 = vpop.f32.mrb[0].mxu0
        %v5405 = vadd.f32 0.0, %v5404
        %v5406 = vpop.f32.mrb[0].mxu0
        %5407 = vmatprep.mubr.bf16.mxu0 0
        %5408 = vmatmul.mubr.bf16.gmra.mrb[0].mxu0 %v4849
        %v5409 = vpop.f32.mrb[0].mxu0
        %v5410 = vadd.f32 0.0, %v5409
        %v5411 = vpop.f32.mrb[0].mxu0
        %v5412 = vpop.f32.mrb[0].mxu0
        %v5413 = vadd.f32 0.0, %v5412
        %v5414 = vpop.f32.mrb[0].mxu0
        %5415 = vmatprep.mubr.bf16.mxu0 0
        %5416 = vmatmul.mubr.bf16.gmra.mrb[0].mxu0 %v4850
        %v5417 = vpop.f32.mrb[0].mxu0
        %v5418 = vadd.f32 0.0, %v5417
        %v5419 = vpop.f32.mrb[0].mxu0
        %v5420 = vpop.f32.mrb[0].mxu0
        %v5421 = vadd.f32 0.0, %v5420
        %v5422 = vpop.f32.mrb[0].mxu0
        %5423 = vdwg.mxu0
        %5424 = vmatprep.subr.bf16.mxu0 0
        %5425 = vmatpush1.bf16.msra.mxu0 %v4915
        %5426 = vmatprep.subr.bf16.mxu0 0
        %5427 = vmatpush1.bf16.msra.mxu0 %v4916
        %5428 = vmatprep.subr.bf16.mxu0 0
        %5429 = vmatpush1.bf16.msra.mxu0 %v4917
        %5430 = vmatprep.subr.bf16.mxu0 0
        %5431 = vmatpush1.bf16.msra.mxu0 %v4918
        %5432 = vmatprep.subr.bf16.mxu0 0
        %5433 = vmatpush1.bf16.msra.mxu0 %v4919
        %5434 = vmatprep.subr.bf16.mxu0 0
        %5435 = vmatpush1.bf16.msra.mxu0 %v4920
        %5436 = vmatprep.subr.bf16.mxu0 0
        %5437 = vmatpush1.bf16.msra.mxu0 %v4921
        %5438 = vmatprep.subr.bf16.mxu0 0
        %5439 = vmatpush1.bf16.msra.mxu0 %v4922
        %5440 = vmatprep.subr.bf16.mxu0 0
        %5441 = vmatpush1.bf16.msra.mxu0 0
        %5442 = vmatprep.subr.bf16.mxu0 0
        %5443 = vmatpush1.bf16.msra.mxu0 0
        %5444 = vmatprep.subr.bf16.mxu0 0
        %5445 = vmatpush1.bf16.msra.mxu0 0
        %5446 = vmatprep.subr.bf16.mxu0 0
        %5447 = vmatpush1.bf16.msra.mxu0 0
        %5448 = vmatprep.subr.bf16.mxu0 0
        %5449 = vmatpush1.bf16.msra.mxu0 0
        %5450 = vmatprep.subr.bf16.mxu0 0
        %5451 = vmatpush1.bf16.msra.mxu0 0
        %5452 = vmatprep.subr.bf16.mxu0 0
        %5453 = vmatpush1.bf16.msra.mxu0 0
        %5454 = vmatprep.subr.bf16.mxu0 0
        %5455 = vmatpush1.bf16.msra.mxu0 0
        %5456 = vmatprep.mubr.bf16.mxu0 0
        %5457 = vmatmul.mubr.bf16.gmra.mrb[0].mxu0 %v4851
        %v5458 = vpop.f32.mrb[0].mxu0
        %v5459 = vadd.f32 0.0, %v5458
        %v5460 = vpop.f32.mrb[0].mxu0
        %v5461 = vpop.f32.mrb[0].mxu0
        %v5462 = vadd.f32 0.0, %v5461
        %v5463 = vpop.f32.mrb[0].mxu0
        %5464 = vmatprep.mubr.bf16.mxu0 0
        %5465 = vmatmul.mubr.bf16.gmra.mrb[0].mxu0 %v4852
        %v5466 = vpop.f32.mrb[0].mxu0
        %v5467 = vadd.f32 0.0, %v5466
        %v5468 = vpop.f32.mrb[0].mxu0
        %v5469 = vpop.f32.mrb[0].mxu0
        %v5470 = vadd.f32 0.0, %v5469
        %v5471 = vpop.f32.mrb[0].mxu0
        %5472 = vmatprep.mubr.bf16.mxu0 0
        %5473 = vmatmul.mubr.bf16.gmra.mrb[0].mxu0 %v4853
        %v5474 = vpop.f32.mrb[0].mxu0
        %v5475 = vadd.f32 0.0, %v5474
        %v5476 = vpop.f32.mrb[0].mxu0
        %v5477 = vpop.f32.mrb[0].mxu0
        %v5478 = vadd.f32 0.0, %v5477
        %v5479 = vpop.f32.mrb[0].mxu0
        %5480 = vmatprep.mubr.bf16.mxu0 0
        %5481 = vmatmul.mubr.bf16.gmra.mrb[0].mxu0 %v4854
        %v5482 = vpop.f32.mrb[0].mxu0
        %v5483 = vadd.f32 0.0, %v5482
        %v5484 = vpop.f32.mrb[0].mxu0
        %v5485 = vpop.f32.mrb[0].mxu0
        %v5486 = vadd.f32 0.0, %v5485
        %v5487 = vpop.f32.mrb[0].mxu0
        %5488 = vmatprep.mubr.bf16.mxu0 0
        %5489 = vmatmul.mubr.bf16.gmra.mrb[0].mxu0 %v4855
        %v5490 = vpop.f32.mrb[0].mxu0
        %v5491 = vadd.f32 0.0, %v5490
        %v5492 = vpop.f32.mrb[0].mxu0
        %v5493 = vpop.f32.mrb[0].mxu0
        %v5494 = vadd.f32 0.0, %v5493
        %v5495 = vpop.f32.mrb[0].mxu0
        %5496 = vmatprep.mubr.bf16.mxu0 0
        %5497 = vmatmul.mubr.bf16.gmra.mrb[0].mxu0 %v4856
        %v5498 = vpop.f32.mrb[0].mxu0
        %v5499 = vadd.f32 0.0, %v5498
        %v5500 = vpop.f32.mrb[0].mxu0
        %v5501 = vpop.f32.mrb[0].mxu0
        %v5502 = vadd.f32 0.0, %v5501
        %v5503 = vpop.f32.mrb[0].mxu0
        %5504 = vmatprep.mubr.bf16.mxu0 0
        %5505 = vmatmul.mubr.bf16.gmra.mrb[0].mxu0 %v4857
        %v5506 = vpop.f32.mrb[0].mxu0
        %v5507 = vadd.f32 0.0, %v5506
        %v5508 = vpop.f32.mrb[0].mxu0
        %v5509 = vpop.f32.mrb[0].mxu0
        %v5510 = vadd.f32 0.0, %v5509
        %v5511 = vpop.f32.mrb[0].mxu0
        %5512 = vmatprep.mubr.bf16.mxu0 0
        %5513 = vmatmul.mubr.bf16.gmra.mrb[0].mxu0 %v4858
        %v5514 = vpop.f32.mrb[0].mxu0
        %v5515 = vadd.f32 0.0, %v5514
        %v5516 = vpop.f32.mrb[0].mxu0
        %v5517 = vpop.f32.mrb[0].mxu0
        %v5518 = vadd.f32 0.0, %v5517
        %v5519 = vpop.f32.mrb[0].mxu0
        %5520 = vdwg.mxu0
        %5521 = vmatprep.subr.bf16.mxu0 0
        %5522 = vmatpush1.bf16.msra.mxu0 %v4923
        %5523 = vmatprep.subr.bf16.mxu0 0
        %5524 = vmatpush1.bf16.msra.mxu0 %v4924
        %5525 = vmatprep.subr.bf16.mxu0 0
        %5526 = vmatpush1.bf16.msra.mxu0 %v4925
        %5527 = vmatprep.subr.bf16.mxu0 0
        %5528 = vmatpush1.bf16.msra.mxu0 %v4926
        %5529 = vmatprep.subr.bf16.mxu0 0
        %5530 = vmatpush1.bf16.msra.mxu0 %v4927
        %5531 = vmatprep.subr.bf16.mxu0 0
        %5532 = vmatpush1.bf16.msra.mxu0 %v4928
        %5533 = vmatprep.subr.bf16.mxu0 0
        %5534 = vmatpush1.bf16.msra.mxu0 %v4929
        %5535 = vmatprep.subr.bf16.mxu0 0
        %5536 = vmatpush1.bf16.msra.mxu0 %v4930
        %5537 = vmatprep.subr.bf16.mxu0 0
        %5538 = vmatpush1.bf16.msra.mxu0 0
        %5539 = vmatprep.subr.bf16.mxu0 0
        %5540 = vmatpush1.bf16.msra.mxu0 0
        %5541 = vmatprep.subr.bf16.mxu0 0
        %5542 = vmatpush1.bf16.msra.mxu0 0
        %5543 = vmatprep.subr.bf16.mxu0 0
        %5544 = vmatpush1.bf16.msra.mxu0 0
        %5545 = vmatprep.subr.bf16.mxu0 0
        %5546 = vmatpush1.bf16.msra.mxu0 0
        %5547 = vmatprep.subr.bf16.mxu0 0
        %5548 = vmatpush1.bf16.msra.mxu0 0
        %5549 = vmatprep.subr.bf16.mxu0 0
        %5550 = vmatpush1.bf16.msra.mxu0 0
        %5551 = vmatprep.subr.bf16.mxu0 0
        %5552 = vmatpush1.bf16.msra.mxu0 0
        %5553 = vmatprep.mubr.bf16.mxu0 0
        %5554 = vmatmul.mubr.bf16.gmra.mrb[0].mxu0 %v4859
        %v5555 = vpop.f32.mrb[0].mxu0
        %v5556 = vadd.f32 0.0, %v5555
        %v5557 = vpop.f32.mrb[0].mxu0
        %v5558 = vpop.f32.mrb[0].mxu0
        %v5559 = vadd.f32 0.0, %v5558
        %v5560 = vpop.f32.mrb[0].mxu0
        %5561 = vmatprep.mubr.bf16.mxu0 0
        %5562 = vmatmul.mubr.bf16.gmra.mrb[0].mxu0 %v4860
        %v5563 = vpop.f32.mrb[0].mxu0
        %v5564 = vadd.f32 0.0, %v5563
        %v5565 = vpop.f32.mrb[0].mxu0
        %v5566 = vpop.f32.mrb[0].mxu0
        %v5567 = vadd.f32 0.0, %v5566
        %v5568 = vpop.f32.mrb[0].mxu0
        %5569 = vmatprep.mubr.bf16.mxu0 0
        %5570 = vmatmul.mubr.bf16.gmra.mrb[0].mxu0 %v4861
        %v5571 = vpop.f32.mrb[0].mxu0
        %v5572 = vadd.f32 0.0, %v5571
        %v5573 = vpop.f32.mrb[0].mxu0
        %v5574 = vpop.f32.mrb[0].mxu0
        %v5575 = vadd.f32 0.0, %v5574
        %v5576 = vpop.f32.mrb[0].mxu0
        %5577 = vmatprep.mubr.bf16.mxu0 0
        %5578 = vmatmul.mubr.bf16.gmra.mrb[0].mxu0 %v4862
        %v5579 = vpop.f32.mrb[0].mxu0
        %v5580 = vadd.f32 0.0, %v5579
        %v5581 = vpop.f32.mrb[0].mxu0
        %v5582 = vpop.f32.mrb[0].mxu0
        %v5583 = vadd.f32 0.0, %v5582
        %v5584 = vpop.f32.mrb[0].mxu0
        %5585 = vmatprep.mubr.bf16.mxu0 0
        %5586 = vmatmul.mubr.bf16.gmra.mrb[0].mxu0 %v4863
        %v5587 = vpop.f32.mrb[0].mxu0
        %v5588 = vadd.f32 0.0, %v5587
        %v5589 = vpop.f32.mrb[0].mxu0
        %v5590 = vpop.f32.mrb[0].mxu0
        %v5591 = vadd.f32 0.0, %v5590
        %v5592 = vpop.f32.mrb[0].mxu0
        %5593 = vmatprep.mubr.bf16.mxu0 0
        %5594 = vmatmul.mubr.bf16.gmra.mrb[0].mxu0 %v4864
        %v5595 = vpop.f32.mrb[0].mxu0
        %v5596 = vadd.f32 0.0, %v5595
        %v5597 = vpop.f32.mrb[0].mxu0
        %v5598 = vpop.f32.mrb[0].mxu0
        %v5599 = vadd.f32 0.0, %v5598
        %v5600 = vpop.f32.mrb[0].mxu0
        %5601 = vmatprep.mubr.bf16.mxu0 0
        %5602 = vmatmul.mubr.bf16.gmra.mrb[0].mxu0 %v4865
        %v5603 = vpop.f32.mrb[0].mxu0
        %v5604 = vadd.f32 0.0, %v5603
        %v5605 = vpop.f32.mrb[0].mxu0
        %v5606 = vpop.f32.mrb[0].mxu0
        %v5607 = vadd.f32 0.0, %v5606
        %v5608 = vpop.f32.mrb[0].mxu0
        %5609 = vmatprep.mubr.bf16.mxu0 0
        %5610 = vmatmul.mubr.bf16.gmra.mrb[0].mxu0 %v4866
        %v5611 = vpop.f32.mrb[0].mxu0
        %v5612 = vadd.f32 0.0, %v5611
        %v5613 = vpop.f32.mrb[0].mxu0
        %v5614 = vpop.f32.mrb[0].mxu0
        %v5615 = vadd.f32 0.0, %v5614
        %v5616 = vpop.f32.mrb[0].mxu0
        %5617 = vdwg.mxu0
        %5618 = vmatprep.subr.bf16.mxu0 0
        %5619 = vmatpush1.bf16.msra.mxu0 %v4931
        %5620 = vmatprep.subr.bf16.mxu0 0
        %5621 = vmatpush1.bf16.msra.mxu0 %v4932
        %5622 = vmatprep.subr.bf16.mxu0 0
        %5623 = vmatpush1.bf16.msra.mxu0 %v4933
        %5624 = vmatprep.subr.bf16.mxu0 0
        %5625 = vmatpush1.bf16.msra.mxu0 %v4934
        %5626 = vmatprep.subr.bf16.mxu0 0
        %5627 = vmatpush1.bf16.msra.mxu0 %v4935
        %5628 = vmatprep.subr.bf16.mxu0 0
        %5629 = vmatpush1.bf16.msra.mxu0 %v4936
        %5630 = vmatprep.subr.bf16.mxu0 0
        %5631 = vmatpush1.bf16.msra.mxu0 %v4937
        %5632 = vmatprep.subr.bf16.mxu0 0
        %5633 = vmatpush1.bf16.msra.mxu0 %v4938
        %5634 = vmatprep.subr.bf16.mxu0 0
        %5635 = vmatpush1.bf16.msra.mxu0 0
        %5636 = vmatprep.subr.bf16.mxu0 0
        %5637 = vmatpush1.bf16.msra.mxu0 0
        %5638 = vmatprep.subr.bf16.mxu0 0
        %5639 = vmatpush1.bf16.msra.mxu0 0
        %5640 = vmatprep.subr.bf16.mxu0 0
        %5641 = vmatpush1.bf16.msra.mxu0 0
        %5642 = vmatprep.subr.bf16.mxu0 0
        %5643 = vmatpush1.bf16.msra.mxu0 0
        %5644 = vmatprep.subr.bf16.mxu0 0
        %5645 = vmatpush1.bf16.msra.mxu0 0
        %5646 = vmatprep.subr.bf16.mxu0 0
        %5647 = vmatpush1.bf16.msra.mxu0 0
        %5648 = vmatprep.subr.bf16.mxu0 0
        %5649 = vmatpush1.bf16.msra.mxu0 0
        %5650 = vmatprep.mubr.bf16.mxu0 0
        %5651 = vmatmul.mubr.bf16.gmra.mrb[0].mxu0 %v4867
        %v5652 = vpop.f32.mrb[0].mxu0
        %v5653 = vadd.f32 0.0, %v5652
        %v5654 = vpop.f32.mrb[0].mxu0
        %v5655 = vpop.f32.mrb[0].mxu0
        %v5656 = vadd.f32 0.0, %v5655
        %v5657 = vpop.f32.mrb[0].mxu0
        %5658 = vmatprep.mubr.bf16.mxu0 0
        %5659 = vmatmul.mubr.bf16.gmra.mrb[0].mxu0 %v4868
        %v5660 = vpop.f32.mrb[0].mxu0
        %v5661 = vadd.f32 0.0, %v5660
        %v5662 = vpop.f32.mrb[0].mxu0
        %v5663 = vpop.f32.mrb[0].mxu0
        %v5664 = vadd.f32 0.0, %v5663
        %v5665 = vpop.f32.mrb[0].mxu0
        %5666 = vmatprep.mubr.bf16.mxu0 0
        %5667 = vmatmul.mubr.bf16.gmra.mrb[0].mxu0 %v4869
        %v5668 = vpop.f32.mrb[0].mxu0
        %v5669 = vadd.f32 0.0, %v5668
        %v5670 = vpop.f32.mrb[0].mxu0
        %v5671 = vpop.f32.mrb[0].mxu0
        %v5672 = vadd.f32 0.0, %v5671
        %v5673 = vpop.f32.mrb[0].mxu0
        %5674 = vmatprep.mubr.bf16.mxu0 0
        %5675 = vmatmul.mubr.bf16.gmra.mrb[0].mxu0 %v4870
        %v5676 = vpop.f32.mrb[0].mxu0
        %v5677 = vadd.f32 0.0, %v5676
        %v5678 = vpop.f32.mrb[0].mxu0
        %v5679 = vpop.f32.mrb[0].mxu0
        %v5680 = vadd.f32 0.0, %v5679
        %v5681 = vpop.f32.mrb[0].mxu0
        %5682 = vmatprep.mubr.bf16.mxu0 0
        %5683 = vmatmul.mubr.bf16.gmra.mrb[0].mxu0 %v4871
        %v5684 = vpop.f32.mrb[0].mxu0
        %v5685 = vadd.f32 0.0, %v5684
        %v5686 = vpop.f32.mrb[0].mxu0
        %v5687 = vpop.f32.mrb[0].mxu0
        %v5688 = vadd.f32 0.0, %v5687
        %v5689 = vpop.f32.mrb[0].mxu0
        %5690 = vmatprep.mubr.bf16.mxu0 0
        %5691 = vmatmul.mubr.bf16.gmra.mrb[0].mxu0 %v4872
        %v5692 = vpop.f32.mrb[0].mxu0
        %v5693 = vadd.f32 0.0, %v5692
        %v5694 = vpop.f32.mrb[0].mxu0
        %v5695 = vpop.f32.mrb[0].mxu0
        %v5696 = vadd.f32 0.0, %v5695
        %v5697 = vpop.f32.mrb[0].mxu0
        %5698 = vmatprep.mubr.bf16.mxu0 0
        %5699 = vmatmul.mubr.bf16.gmra.mrb[0].mxu0 %v4873
        %v5700 = vpop.f32.mrb[0].mxu0
        %v5701 = vadd.f32 0.0, %v5700
        %v5702 = vpop.f32.mrb[0].mxu0
        %v5703 = vpop.f32.mrb[0].mxu0
        %v5704 = vadd.f32 0.0, %v5703
        %v5705 = vpop.f32.mrb[0].mxu0
        %5706 = vmatprep.mubr.bf16.mxu0 0
        %5707 = vmatmul.mubr.bf16.gmra.mrb[0].mxu0 %v4874
        %v5708 = vpop.f32.mrb[0].mxu0
        %v5709 = vadd.f32 0.0, %v5708
        %v5710 = vpop.f32.mrb[0].mxu0
        %v5711 = vpop.f32.mrb[0].mxu0
        %v5712 = vadd.f32 0.0, %v5711
        %v5713 = vpop.f32.mrb[0].mxu0
        %5714 = vdwg.mxu0
        %5715 = vst [vmem:[%s270] sm:$0xff] %v4974
        %5716 = vst [vmem:[%s270 + $0x8] sm:$0xff] %v4977
        %5717 = vst [vmem:[%s270 + $0x10] sm:$0xff] %v4982
        %5718 = vst [vmem:[%s270 + $0x18] sm:$0xff] %v4985
        %5719 = vst [vmem:[%s270 + $0x20] sm:$0xff] %v4990
        %5720 = vst [vmem:[%s270 + $0x28] sm:$0xff] %v4993
        %5721 = vst [vmem:[%s270 + $0x30] sm:$0xff] %v4998
        %5722 = vst [vmem:[%s270 + $0x38] sm:$0xff] %v5001
        %5723 = vst [vmem:[%s270 + $0x40] sm:$0xff] %v5006
        %5724 = vst [vmem:[%s270 + $0x48] sm:$0xff] %v5009
        %5725 = vst [vmem:[%s270 + $0x50] sm:$0xff] %v5014
        %5726 = vst [vmem:[%s270 + $0x58] sm:$0xff] %v5017
        %5727 = vst [vmem:[%s270 + $0x60] sm:$0xff] %v5022
        %5728 = vst [vmem:[%s270 + $0x68] sm:$0xff] %v5025
        %5729 = vst [vmem:[%s270 + $0x70] sm:$0xff] %v5030
        %5730 = vst [vmem:[%s270 + $0x78] sm:$0xff] %v5033
        %5731 = vst [vmem:[%s270 + $0x80] sm:$0xff] %v5071
        %5732 = vst [vmem:[%s270 + $0x88] sm:$0xff] %v5074
        %5733 = vst [vmem:[%s270 + $0x90] sm:$0xff] %v5079
        %5734 = vst [vmem:[%s270 + $0x98] sm:$0xff] %v5082
        %5735 = vst [vmem:[%s270 + $0xa0] sm:$0xff] %v5087
        %5736 = vst [vmem:[%s270 + $0xa8] sm:$0xff] %v5090
        %5737 = vst [vmem:[%s270 + $0xb0] sm:$0xff] %v5095
        %5738 = vst [vmem:[%s270 + $0xb8] sm:$0xff] %v5098
        %5739 = vst [vmem:[%s270 + $0xc0] sm:$0xff] %v5103
        %5740 = vst [vmem:[%s270 + $0xc8] sm:$0xff] %v5106
        %5741 = vst [vmem:[%s270 + $0xd0] sm:$0xff] %v5111
        %5742 = vst [vmem:[%s270 + $0xd8] sm:$0xff] %v5114
        %5743 = vst [vmem:[%s270 + $0xe0] sm:$0xff] %v5119
        %5744 = vst [vmem:[%s270 + $0xe8] sm:$0xff] %v5122
        %5745 = vst [vmem:[%s270 + $0xf0] sm:$0xff] %v5127
        %5746 = vst [vmem:[%s270 + $0xf8] sm:$0xff] %v5130
        %5747 = vst [vmem:[%s270 + $0x100] sm:$0xff] %v5168
        %5748 = vst [vmem:[%s270 + $0x108] sm:$0xff] %v5171
        %5749 = vst [vmem:[%s270 + $0x110] sm:$0xff] %v5176
        %5750 = vst [vmem:[%s270 + $0x118] sm:$0xff] %v5179
        %5751 = vst [vmem:[%s270 + $0x120] sm:$0xff] %v5184
        %5752 = vst [vmem:[%s270 + $0x128] sm:$0xff] %v5187
        %5753 = vst [vmem:[%s270 + $0x130] sm:$0xff] %v5192
        %5754 = vst [vmem:[%s270 + $0x138] sm:$0xff] %v5195
        %5755 = vst [vmem:[%s270 + $0x140] sm:$0xff] %v5200
        %5756 = vst [vmem:[%s270 + $0x148] sm:$0xff] %v5203
        %5757 = vst [vmem:[%s270 + $0x150] sm:$0xff] %v5208
        %5758 = vst [vmem:[%s270 + $0x158] sm:$0xff] %v5211
        %5759 = vst [vmem:[%s270 + $0x160] sm:$0xff] %v5216
        %5760 = vst [vmem:[%s270 + $0x168] sm:$0xff] %v5219
        %5761 = vst [vmem:[%s270 + $0x170] sm:$0xff] %v5224
        %5762 = vst [vmem:[%s270 + $0x178] sm:$0xff] %v5227
        %5763 = vst [vmem:[%s270 + $0x180] sm:$0xff] %v5265
        %5764 = vst [vmem:[%s270 + $0x188] sm:$0xff] %v5268
        %5765 = vst [vmem:[%s270 + $0x190] sm:$0xff] %v5273
        %5766 = vst [vmem:[%s270 + $0x198] sm:$0xff] %v5276
        %5767 = vst [vmem:[%s270 + $0x1a0] sm:$0xff] %v5281
        %5768 = vst [vmem:[%s270 + $0x1a8] sm:$0xff] %v5284
        %5769 = vst [vmem:[%s270 + $0x1b0] sm:$0xff] %v5289
        %5770 = vst [vmem:[%s270 + $0x1b8] sm:$0xff] %v5292
        %5771 = vst [vmem:[%s270 + $0x1c0] sm:$0xff] %v5297
        %5772 = vst [vmem:[%s270 + $0x1c8] sm:$0xff] %v5300
        %5773 = vst [vmem:[%s270 + $0x1d0] sm:$0xff] %v5305
        %5774 = vst [vmem:[%s270 + $0x1d8] sm:$0xff] %v5308
        %5775 = vst [vmem:[%s270 + $0x1e0] sm:$0xff] %v5313
        %5776 = vst [vmem:[%s270 + $0x1e8] sm:$0xff] %v5316
        %5777 = vst [vmem:[%s270 + $0x1f0] sm:$0xff] %v5321
        %5778 = vst [vmem:[%s270 + $0x1f8] sm:$0xff] %v5324
        %5779 = vst [vmem:[%s270 + $0x200] sm:$0xff] %v5362
        %5780 = vst [vmem:[%s270 + $0x208] sm:$0xff] %v5365
        %5781 = vst [vmem:[%s270 + $0x210] sm:$0xff] %v5370
        %5782 = vst [vmem:[%s270 + $0x218] sm:$0xff] %v5373
        %5783 = vst [vmem:[%s270 + $0x220] sm:$0xff] %v5378
        %5784 = vst [vmem:[%s270 + $0x228] sm:$0xff] %v5381
        %5785 = vst [vmem:[%s270 + $0x230] sm:$0xff] %v5386
        %5786 = vst [vmem:[%s270 + $0x238] sm:$0xff] %v5389
        %5787 = vst [vmem:[%s270 + $0x240] sm:$0xff] %v5394
        %5788 = vst [vmem:[%s270 + $0x248] sm:$0xff] %v5397
        %5789 = vst [vmem:[%s270 + $0x250] sm:$0xff] %v5402
        %5790 = vst [vmem:[%s270 + $0x258] sm:$0xff] %v5405
        %5791 = vst [vmem:[%s270 + $0x260] sm:$0xff] %v5410
        %5792 = vst [vmem:[%s270 + $0x268] sm:$0xff] %v5413
        %5793 = vst [vmem:[%s270 + $0x270] sm:$0xff] %v5418
        %5794 = vst [vmem:[%s270 + $0x278] sm:$0xff] %v5421
        %5795 = vst [vmem:[%s270 + $0x280] sm:$0xff] %v5459
        %5796 = vst [vmem:[%s270 + $0x288] sm:$0xff] %v5462
        %5797 = vst [vmem:[%s270 + $0x290] sm:$0xff] %v5467
        %5798 = vst [vmem:[%s270 + $0x298] sm:$0xff] %v5470
        %5799 = vst [vmem:[%s270 + $0x2a0] sm:$0xff] %v5475
        %5800 = vst [vmem:[%s270 + $0x2a8] sm:$0xff] %v5478
        %5801 = vst [vmem:[%s270 + $0x2b0] sm:$0xff] %v5483
        %5802 = vst [vmem:[%s270 + $0x2b8] sm:$0xff] %v5486
        %5803 = vst [vmem:[%s270 + $0x2c0] sm:$0xff] %v5491
        %5804 = vst [vmem:[%s270 + $0x2c8] sm:$0xff] %v5494
        %5805 = vst [vmem:[%s270 + $0x2d0] sm:$0xff] %v5499
        %5806 = vst [vmem:[%s270 + $0x2d8] sm:$0xff] %v5502
        %5807 = vst [vmem:[%s270 + $0x2e0] sm:$0xff] %v5507
        %5808 = vst [vmem:[%s270 + $0x2e8] sm:$0xff] %v5510
        %5809 = vst [vmem:[%s270 + $0x2f0] sm:$0xff] %v5515
        %5810 = vst [vmem:[%s270 + $0x2f8] sm:$0xff] %v5518
        %5811 = vst [vmem:[%s270 + $0x300] sm:$0xff] %v5556
        %5812 = vst [vmem:[%s270 + $0x308] sm:$0xff] %v5559
        %5813 = vst [vmem:[%s270 + $0x310] sm:$0xff] %v5564
        %5814 = vst [vmem:[%s270 + $0x318] sm:$0xff] %v5567
        %5815 = vst [vmem:[%s270 + $0x320] sm:$0xff] %v5572
        %5816 = vst [vmem:[%s270 + $0x328] sm:$0xff] %v5575
        %5817 = vst [vmem:[%s270 + $0x330] sm:$0xff] %v5580
        %5818 = vst [vmem:[%s270 + $0x338] sm:$0xff] %v5583
        %5819 = vst [vmem:[%s270 + $0x340] sm:$0xff] %v5588
        %5820 = vst [vmem:[%s270 + $0x348] sm:$0xff] %v5591
        %5821 = vst [vmem:[%s270 + $0x350] sm:$0xff] %v5596
        %5822 = vst [vmem:[%s270 + $0x358] sm:$0xff] %v5599
        %5823 = vst [vmem:[%s270 + $0x360] sm:$0xff] %v5604
        %5824 = vst [vmem:[%s270 + $0x368] sm:$0xff] %v5607
        %5825 = vst [vmem:[%s270 + $0x370] sm:$0xff] %v5612
        %5826 = vst [vmem:[%s270 + $0x378] sm:$0xff] %v5615
        %5827 = vst [vmem:[%s270 + $0x380] sm:$0xff] %v5653
        %5828 = vst [vmem:[%s270 + $0x388] sm:$0xff] %v5656
        %5829 = vst [vmem:[%s270 + $0x390] sm:$0xff] %v5661
        %5830 = vst [vmem:[%s270 + $0x398] sm:$0xff] %v5664
        %5831 = vst [vmem:[%s270 + $0x3a0] sm:$0xff] %v5669
        %5832 = vst [vmem:[%s270 + $0x3a8] sm:$0xff] %v5672
        %5833 = vst [vmem:[%s270 + $0x3b0] sm:$0xff] %v5677
        %5834 = vst [vmem:[%s270 + $0x3b8] sm:$0xff] %v5680
        %5835 = vst [vmem:[%s270 + $0x3c0] sm:$0xff] %v5685
        %5836 = vst [vmem:[%s270 + $0x3c8] sm:$0xff] %v5688
        %5837 = vst [vmem:[%s270 + $0x3d0] sm:$0xff] %v5693
        %5838 = vst [vmem:[%s270 + $0x3d8] sm:$0xff] %v5696
        %5839 = vst [vmem:[%s270 + $0x3e0] sm:$0xff] %v5701
        %5840 = vst [vmem:[%s270 + $0x3e8] sm:$0xff] %v5704
        %5841 = vst [vmem:[%s270 + $0x3f0] sm:$0xff] %v5709
        %5842 = vst [vmem:[%s270 + $0x3f8] sm:$0xff] %v5712
        %s5843 = sand.u32 %s111, 1
        %s5844 = scalar_lea.sflag [#allocation6], %s5843
        %s5845 = sand.u32 %s111, 1
        %s5846 = smul.addr %s5845, 1024
        %s5847 = scalar_lea.vmem [#allocation10], %s5846
        // Predicated region
        $region45: #{tpu_custom_call.1} parent=31 // pred_check
          %p5848 = pneg %p121
        $region46: #{tpu_custom_call.1} parent=31 // pred_check_branch
          %5850 = sbr.rel (%p5848) target = $region48
        $region47: #{tpu_custom_call.1} parent=31 // pred_region
          %s5851 = smul.u32 8, %s25
          %s5853 = ssub.s32 16384, 16384
          %5854 = vsyncadd %s5844, %s5853
          %s5855 = smul.addr %s5851, 16
          %s5856 = smul.addr %s5855, 128
          %s5857 = scalar_lea.hbm %s4, %s5856
          %s5858 = sshll.u32 %s5847, 4
          %s5859 = int_to_ptr.vmem [resolvable:$true] %s5858
          %5864 = dma.vmem_to_hbm [thread:$0]  %s5859, 16384, %s5857, %s5844, 128, 128, 8
        $region48: #{tpu_custom_call.1} parent=31 // pred_fallthru
          _
      $region32: #{tpu_custom_call.1} parent=5 // pred_fallthru
        _
      %p5865 = scmp.le.s32.totalorder 2, %s20
      // Predicated region
      $region49: #{tpu_custom_call.1} parent=5 // pred_check
        %p5866 = pneg %p5865
      $region50: #{tpu_custom_call.1} parent=5 // pred_check_branch
        %5868 = sbr.rel (%p5866) target = $region52
      $region51: #{tpu_custom_call.1} parent=5 // pred_region
        %s5869 = ssub.s32 %s20, 2
        // Predicated region
        $region53: #{tpu_custom_call.1} parent=51 // pred_check
          %p5870 = pneg %p127
        $region54: #{tpu_custom_call.1} parent=51 // pred_check_branch
          %5872 = sbr.rel (%p5870) target = $region56
        $region55: #{tpu_custom_call.1} parent=51 // pred_region
          %s5873 = sand.u32 %s112, 1
          %s5874 = scalar_lea.sflag [#allocation6], %s5873
          %s5875 = sand.u32 %s112, 1
          %s5876 = smul.addr %s5875, 1024
          %s5877 = scalar_lea.vmem [#allocation10], %s5876
          %5878 = dma.done %s5874, 16384
        $region56: #{tpu_custom_call.1} parent=51 // pred_fallthru
          _
      $region52: #{tpu_custom_call.1} parent=5 // pred_fallthru
        _
    $region6: #{tpu_custom_call.1} parent=1 // loop_footer
      %s24 = sadd.s32 1, %s20
    $region7: #{tpu_custom_call.1} parent=1 // loop_footer_branch
      %19 = sbr.rel target = $region3
    $region8: #{tpu_custom_call.1} parent=1 // loop_exit
      _
    %5879 = vsyncpa [#allocation5], 1
    %s5880 = scalar_lea.sflag [#allocation5], 1
    %5881 = vsyncpa %s5880, 1
    %5882 = vsyncpa [#allocation8], 1
    %s5883 = scalar_lea.sflag [#allocation8], 1
    %5884 = vsyncpa %s5883, 1
    %5885 = vsyncpa [#allocation6], 1
    %s5886 = scalar_lea.sflag [#allocation6], 1
    %5887 = vsyncpa %s5886, 1

</llo_original>
